<compile_context>
chip_gen: v7x
topology: tpu7x:2x2x1
jax: 0.10.0
libtpu: 0.0.40
codegen_flags: <defaults>
</compile_context>

<pallas_src>
import math

import jax
import jax.numpy as jnp
from jax.experimental import pallas as pl
from jax.experimental.pallas import tpu as pltpu


# ----------------------------- fused Pallas kernel ------------------------------

def _make_fused_kernel(S, D, nh, L, H):
    dh = D // nh

    def layer_norm(x, g, b):
        mean = jnp.mean(x, axis=-1, keepdims=True)
        var = jnp.mean((x - mean) ** 2, axis=-1, keepdims=True)
        return (x - mean) * jax.lax.rsqrt(var + 1e-12) * g + b

    def kern(emb_ref, mask_ref,
             embg_ref, embb_ref,
             wqkv_ref, bqkv_ref, wo_ref, bo_ref, ln1g_ref, ln1b_ref,
             w1_ref, b1_ref, w2_ref, b2_ref, ln2g_ref, ln2b_ref,
             wih_ref, whh_ref, bih_ref, bhh_ref,
             fcw_ref, fcb_ref,
             o_ref):
        # ---- BERT embedding LayerNorm --------------------------------------------------
        h = layer_norm(emb_ref[0], embg_ref[...], embb_ref[...])            # (S, D) f32
        add_mask = mask_ref[0]                                               # (1, S) additive

        # ---- BERT encoder layers (frozen; torch.no_grad == plain inference) ------------
        for l in range(L):                                                   # static unroll
            # Fused QKV projection: one MXU matmul.  1/sqrt(dh) already folded into Q.
            qkv = jnp.dot(h.astype(jnp.bfloat16), wqkv_ref[l],
                          preferred_element_type=jnp.float32) + bqkv_ref[l]  # (S, 3D)
            ctx_heads = []
            for hd in range(nh):                                             # static unroll
                lo, hi = hd * dh, (hd + 1) * dh
                qh = qkv[:, lo:hi].astype(jnp.bfloat16)
                kh = qkv[:, D + lo:D + hi].astype(jnp.bfloat16)
                vh = qkv[:, 2 * D + lo:2 * D + hi].astype(jnp.bfloat16)
                s = jax.lax.dot_general(qh, kh, (((1,), (1,)), ((), ())),
                                        preferred_element_type=jnp.float32)  # (S, S)
                s = s + add_mask
                m = jnp.max(s, axis=-1, keepdims=True)
                p = jnp.exp(s - m)
                denom = jnp.sum(p, axis=-1, keepdims=True)
                p = p * pl.reciprocal(denom, approx=True)                    # EUP slot
                ctx_heads.append(jnp.dot(p.astype(jnp.bfloat16), vh,
                                         preferred_element_type=jnp.float32))
            ctx = jnp.concatenate(ctx_heads, axis=-1)                        # (S, D)
            attn = jnp.dot(ctx.astype(jnp.bfloat16), wo_ref[l],
                           preferred_element_type=jnp.float32) + bo_ref[l]
            h = layer_norm(attn + h, ln1g_ref[l], ln1b_ref[l])

            f = jnp.dot(h.astype(jnp.bfloat16), w1_ref[l],
                        preferred_element_type=jnp.float32) + b1_ref[l]
            # TODO(synk): HF BERT default is exact erf GELU; tanh approximation used here.
            f = jax.nn.gelu(f, approximate=True)
            y = jnp.dot(f.astype(jnp.bfloat16), w2_ref[l],
                        preferred_element_type=jnp.float32) + b2_ref[l] + h
            h = layer_norm(y, ln2g_ref[l], ln2b_ref[l])

        # ---- GRU over this batch element's sequence ------------------------------------
        # Input projection for ALL timesteps at once (hoisted out of the recurrence).
        gi = jnp.dot(h.astype(jnp.bfloat16), wih_ref[...],
                     preferred_element_type=jnp.float32) + bih_ref[...]      # (S, 3H) [r|z|n]
        whh = whh_ref[...]                                                   # (H, 3H) f32
        bhh = bhh_ref[...]                                                   # (1, 3H)

        hstate = jnp.zeros((1, H), jnp.float32)
        for t in range(S):   # fully unrolled; ONE (1,H)x(H,3H) matmul per serial step
            gh = jnp.dot(hstate, whh, preferred_element_type=jnp.float32) + bhh
            r = jax.nn.sigmoid(gi[t:t + 1, 0:H] + gh[:, 0:H])
            z = jax.nn.sigmoid(gi[t:t + 1, H:2 * H] + gh[:, H:2 * H])
            n = jnp.tanh(gi[t:t + 1, 2 * H:3 * H] + r * gh[:, 2 * H:3 * H])  # b_hn inside r-gate
            hstate = (1.0 - z) * n + z * hstate

        # ---- Dropout (identity at inference) + FC head (lane-dense, 128-wide padded) ---
        # TODO(synk): nn.Dropout(0.3) is identity at inference time; no stochastic masking.
        logits = jnp.dot(hstate, fcw_ref[...],
                         preferred_element_type=jnp.float32) + fcb_ref[...]  # (1, FC_PAD)
        o_ref[0] = logits.astype(o_ref.dtype)

    return kern


# ----------------------------- kernel wrapper ------------------------------

def fused_forward(emb, addmask, params):
    cfg = params['cfg']
    B, S, D = emb.shape
    nh, L, F = cfg['nh'], cfg['n_layers'], cfg['ffn']
    H, FC_PAD = cfg['gru_hidden'], cfg['fc_pad']
    enc, gru = params['enc'], params['gru']

    kern = _make_fused_kernel(S, D, nh, L, H)

    def bcast(shape):
        # Whole-array block, identical for every grid step (fetched once).
        return pl.BlockSpec(shape, lambda b, _s=shape: (0,) * len(_s))

    in_specs = [
        pl.BlockSpec((1, S, D), lambda b: (b, 0, 0)),        # embeddings of batch b
        pl.BlockSpec((1, 1, S), lambda b: (b, 0, 0)),        # additive mask of batch b
        bcast((1, D)), bcast((1, D)),                        # embedding LayerNorm
        bcast((L, D, 3 * D)), bcast((L, 1, 3 * D)),          # fused QKV (bf16) + bias
        bcast((L, D, D)), bcast((L, 1, D)),                  # attention out proj
        bcast((L, 1, D)), bcast((L, 1, D)),                  # LN1
        bcast((L, D, F)), bcast((L, 1, F)),                  # FFN W1
        bcast((L, F, D)), bcast((L, 1, D)),                  # FFN W2
        bcast((L, 1, D)), bcast((L, 1, D)),                  # LN2
        bcast((D, 3 * H)), bcast((H, 3 * H)),                # GRU weights
        bcast((1, 3 * H)), bcast((1, 3 * H)),                # GRU biases
        bcast((H, FC_PAD)), bcast((1, FC_PAD)),              # FC head (lane-padded)
    ]

    out = pl.pallas_call(
        kern,
        out_shape=jax.ShapeDtypeStruct((B, 1, FC_PAD), jnp.float32),
        grid_spec=pltpu.PrefetchScalarGridSpec(
            num_scalar_prefetch=0,
            grid=(B,),
            in_specs=in_specs,
            out_specs=pl.BlockSpec((1, 1, FC_PAD), lambda b: (b, 0, 0))),
        compiler_params=pltpu.CompilerParams(dimension_semantics=("parallel",)),
    )(emb, addmask,
      params['emb_ln_g'], params['emb_ln_b'],
      enc['wqkv'], enc['bqkv'], enc['wo'], enc['bo'], enc['ln1_g'], enc['ln1_b'],
      enc['w1'], enc['b1'], enc['w2'], enc['b2'], enc['ln2_g'], enc['ln2_b'],
      gru['wih'], gru['whh'], gru['bih'], gru['bhh'],
      params['fc_w_pad'], params['fc_b_pad'])
    return out.reshape(B, FC_PAD)


# ----------------------------- parameters & forward ------------------------------

def init_params(key, vocab=100, D=32, nh=2, ffn=64, n_layers=2, max_pos=16,
                gru_hidden=32, num_classes=28, fc_pad=128):
    keys = iter(jax.random.split(key, 256))

    def nrm(shape, scale=0.02):
        return scale * jax.random.normal(next(keys), shape, dtype=jnp.float32)

    dh = D // nh
    qk_scale = 1.0 / math.sqrt(dh)

    params = {
        'cfg': dict(vocab=vocab, D=D, nh=nh, ffn=ffn, n_layers=n_layers,
                    max_pos=max_pos, gru_hidden=gru_hidden,
                    num_classes=num_classes, fc_pad=fc_pad),
        'word_emb': nrm((vocab, D)),
        'pos_emb': nrm((max_pos, D)),
        'type_emb': nrm((2, D)),
        'emb_ln_g': jnp.ones((1, D), jnp.float32),
        'emb_ln_b': jnp.zeros((1, D), jnp.float32),
    }

    per_layer = []
    for _ in range(n_layers):
        wq, wk, wv = nrm((D, D)), nrm((D, D)), nrm((D, D))
        bq, bk, bv = nrm((D,)), nrm((D,)), nrm((D,))
        # Fuse QKV into one (D, 3D) weight; fold the 1/sqrt(dh) attention scale into Q.
        wqkv = jnp.concatenate([wq * qk_scale, wk, wv], axis=1).astype(jnp.bfloat16)
        bqkv = jnp.concatenate([bq * qk_scale, bk, bv], axis=0).reshape(1, 3 * D)
        per_layer.append({
            'wqkv': wqkv, 'bqkv': bqkv,
            'wo': nrm((D, D)).astype(jnp.bfloat16), 'bo': nrm((D,)).reshape(1, D),
            'ln1_g': jnp.ones((1, D), jnp.float32), 'ln1_b': jnp.zeros((1, D), jnp.float32),
            'w1': nrm((D, ffn)).astype(jnp.bfloat16), 'b1': nrm((ffn,)).reshape(1, ffn),
            'w2': nrm((ffn, D)).astype(jnp.bfloat16), 'b2': nrm((D,)).reshape(1, D),
            'ln2_g': jnp.ones((1, D), jnp.float32), 'ln2_b': jnp.zeros((1, D), jnp.float32),
        })
    # Stack per-layer weights along a leading L axis so ONE kernel can statically index them.
    params['enc'] = {k: jnp.stack([lp[k] for lp in per_layer], axis=0)
                     for k in per_layer[0]}

    # GRU params (PyTorch layout: weight_ih_l0 (3H, D), weight_hh_l0 (3H, H), gate order [r,z,n]).
    H = gru_hidden
    w_ih = nrm((3 * H, D))
    w_hh = nrm((3 * H, H))
    b_ih = nrm((3 * H,))
    b_hh = nrm((3 * H,))
    params['gru'] = {
        'wih': w_ih.T.astype(jnp.bfloat16),   # (D, 3H) bf16 — input projection, hoisted
        'whh': w_hh.T,                        # (H, 3H) f32 — serial recurrence kept in f32
        'bih': b_ih.reshape(1, 3 * H),
        'bhh': b_hh.reshape(1, 3 * H),
    }

    # fc head: pad output lanes to 128 so the store is lane-dense; slice to num_classes outside.
    fc_w = nrm((H, num_classes))
    fc_b = nrm((num_classes,))
    params['fc_w_pad'] = jnp.pad(fc_w, ((0, 0), (0, fc_pad - num_classes)))
    params['fc_b_pad'] = jnp.pad(fc_b, (0, fc_pad - num_classes)).reshape(1, fc_pad)
    return params


def model_forward(params, input_ids, attention_mask):
    cfg = params['cfg']
    B, S = input_ids.shape

    # --- BERT embeddings (gathers are JAX glue; everything downstream is ONE Pallas kernel) ---
    emb = (params['word_emb'][input_ids]
           + params['pos_emb'][None, :S, :]
           + params['type_emb'][None, None, 0, :])          # token_type_ids == 0
    # Additive mask computed ONCE as (B, 1, S); broadcast inside the kernel.
    addmask = ((1.0 - attention_mask.astype(jnp.float32)) * -10000.0).reshape(B, 1, S)

    logits_padded = fused_forward(emb, addmask, params)     # (B, 128) lane-dense
    return logits_padded[:, :cfg['num_classes']]


# ----------------------------- main ------------------------------

if __name__ == "__main__":
    B, S = 2, 8
    params = init_params(jax.random.PRNGKey(0))
    input_ids = jax.random.randint(jax.random.PRNGKey(1), (B, S), 0,
                                   params['cfg']['vocab'], dtype=jnp.int32)
    attention_mask = jnp.ones((B, S), dtype=jnp.float32)

    logits = model_forward(params, input_ids, attention_mask)
    jax.block_until_ready(logits)

    assert logits.shape == (B, params['cfg']['num_classes'])
    assert bool(jnp.all(jnp.isfinite(logits)))
    print("KERNEL_OK")
</pallas_src>

<mosaic_0001>
module attributes {stable_mosaic.version = 11 : i64} {
  func.func @kern(%arg0: i32, %arg1: memref<1x8x32xf32, #tpu.memory_space<vmem>>, %arg2: memref<1x1x8xf32, #tpu.memory_space<vmem>>, %arg3: memref<1x32xf32, #tpu.memory_space<vmem>>, %arg4: memref<1x32xf32, #tpu.memory_space<vmem>>, %arg5: memref<2x32x96xbf16, #tpu.memory_space<vmem>>, %arg6: memref<2x1x96xf32, #tpu.memory_space<vmem>>, %arg7: memref<2x32x32xbf16, #tpu.memory_space<vmem>>, %arg8: memref<2x1x32xf32, #tpu.memory_space<vmem>>, %arg9: memref<2x1x32xf32, #tpu.memory_space<vmem>>, %arg10: memref<2x1x32xf32, #tpu.memory_space<vmem>>, %arg11: memref<2x32x64xbf16, #tpu.memory_space<vmem>>, %arg12: memref<2x1x64xf32, #tpu.memory_space<vmem>>, %arg13: memref<2x64x32xbf16, #tpu.memory_space<vmem>>, %arg14: memref<2x1x32xf32, #tpu.memory_space<vmem>>, %arg15: memref<2x1x32xf32, #tpu.memory_space<vmem>>, %arg16: memref<2x1x32xf32, #tpu.memory_space<vmem>>, %arg17: memref<32x96xbf16, #tpu.memory_space<vmem>>, %arg18: memref<32x96xf32, #tpu.memory_space<vmem>>, %arg19: memref<1x96xf32, #tpu.memory_space<vmem>>, %arg20: memref<1x96xf32, #tpu.memory_space<vmem>>, %arg21: memref<32x128xf32, #tpu.memory_space<vmem>>, %arg22: memref<1x128xf32, #tpu.memory_space<vmem>>, %arg23: memref<1x1x128xf32, #tpu.memory_space<vmem>>) attributes {dimension_semantics = [#tpu.dimension_semantics<parallel>], iteration_bounds = array<i64: 2>, scalar_prefetch = 0 : i64, scratch_operands = 0 : i64, tpu.core_type = #tpu.core_type<tc>, window_params = [{transform_indices = @transform_0, window_bounds = array<i64: 1, 8, 32>}, {transform_indices = @transform_1, window_bounds = array<i64: 1, 1, 8>}, {pipeline_mode = #tpu.pipeline_mode<synchronous>, transform_indices = @transform_2, window_bounds = array<i64: 1, 32>}, {pipeline_mode = #tpu.pipeline_mode<synchronous>, transform_indices = @transform_3, window_bounds = array<i64: 1, 32>}, {pipeline_mode = #tpu.pipeline_mode<synchronous>, transform_indices = @transform_4, window_bounds = array<i64: 2, 32, 96>}, {pipeline_mode = #tpu.pipeline_mode<synchronous>, transform_indices = @transform_5, window_bounds = array<i64: 2, 1, 96>}, {pipeline_mode = #tpu.pipeline_mode<synchronous>, transform_indices = @transform_6, window_bounds = array<i64: 2, 32, 32>}, {pipeline_mode = #tpu.pipeline_mode<synchronous>, transform_indices = @transform_7, window_bounds = array<i64: 2, 1, 32>}, {pipeline_mode = #tpu.pipeline_mode<synchronous>, transform_indices = @transform_8, window_bounds = array<i64: 2, 1, 32>}, {pipeline_mode = #tpu.pipeline_mode<synchronous>, transform_indices = @transform_9, window_bounds = array<i64: 2, 1, 32>}, {pipeline_mode = #tpu.pipeline_mode<synchronous>, transform_indices = @transform_10, window_bounds = array<i64: 2, 32, 64>}, {pipeline_mode = #tpu.pipeline_mode<synchronous>, transform_indices = @transform_11, window_bounds = array<i64: 2, 1, 64>}, {pipeline_mode = #tpu.pipeline_mode<synchronous>, transform_indices = @transform_12, window_bounds = array<i64: 2, 64, 32>}, {pipeline_mode = #tpu.pipeline_mode<synchronous>, transform_indices = @transform_13, window_bounds = array<i64: 2, 1, 32>}, {pipeline_mode = #tpu.pipeline_mode<synchronous>, transform_indices = @transform_14, window_bounds = array<i64: 2, 1, 32>}, {pipeline_mode = #tpu.pipeline_mode<synchronous>, transform_indices = @transform_15, window_bounds = array<i64: 2, 1, 32>}, {pipeline_mode = #tpu.pipeline_mode<synchronous>, transform_indices = @transform_16, window_bounds = array<i64: 32, 96>}, {pipeline_mode = #tpu.pipeline_mode<synchronous>, transform_indices = @transform_17, window_bounds = array<i64: 32, 96>}, {pipeline_mode = #tpu.pipeline_mode<synchronous>, transform_indices = @transform_18, window_bounds = array<i64: 1, 96>}, {pipeline_mode = #tpu.pipeline_mode<synchronous>, transform_indices = @transform_19, window_bounds = array<i64: 1, 96>}, {pipeline_mode = #tpu.pipeline_mode<synchronous>, transform_indices = @transform_20, window_bounds = array<i64: 32, 128>}, {pipeline_mode = #tpu.pipeline_mode<synchronous>, transform_indices = @transform_21, window_bounds = array<i64: 1, 128>}, {transform_indices = @transform_22, window_bounds = array<i64: 1, 1, 128>}]} {
    %c0 = arith.constant 0 : index
    %c0_0 = arith.constant 0 : index
    %c0_1 = arith.constant 0 : index
    %0 = vector.load %arg1[%c0, %c0_0, %c0_1] : memref<1x8x32xf32, #tpu.memory_space<vmem>>, vector<1x8x32xf32>
    %1 = vector.shape_cast %0 : vector<1x8x32xf32> to vector<8x32xf32>
    %c0_2 = arith.constant 0 : index
    %c0_3 = arith.constant 0 : index
    %2 = vector.load %arg3[%c0_2, %c0_3] : memref<1x32xf32, #tpu.memory_space<vmem>>, vector<1x32xf32>
    %c0_4 = arith.constant 0 : index
    %c0_5 = arith.constant 0 : index
    %3 = vector.load %arg4[%c0_4, %c0_5] : memref<1x32xf32, #tpu.memory_space<vmem>>, vector<1x32xf32>
    %cst = arith.constant dense<0.000000e+00> : vector<8xf32>
    %4 = vector.multi_reduction <add>, %1, %cst [1] : vector<8x32xf32> to vector<8xf32>
    %5 = vector.shape_cast %4 : vector<8xf32> to vector<8x1xf32>
    %cst_6 = arith.constant 3.200000e+01 : f32
    %6 = vector.broadcast %cst_6 : f32 to vector<8x1xf32>
    %7 = arith.divf %5, %6 : vector<8x1xf32>
    %8 = vector.broadcast %7 : vector<8x1xf32> to vector<8x32xf32>
    %9 = arith.subf %1, %8 : vector<8x32xf32>
    %10 = arith.mulf %9, %9 : vector<8x32xf32>
    %cst_7 = arith.constant dense<0.000000e+00> : vector<8xf32>
    %11 = vector.multi_reduction <add>, %10, %cst_7 [1] : vector<8x32xf32> to vector<8xf32>
    %12 = vector.shape_cast %11 : vector<8xf32> to vector<8x1xf32>
    %cst_8 = arith.constant 3.200000e+01 : f32
    %13 = vector.broadcast %cst_8 : f32 to vector<8x1xf32>
    %14 = arith.divf %12, %13 : vector<8x1xf32>
    %15 = vector.broadcast %7 : vector<8x1xf32> to vector<8x32xf32>
    %16 = arith.subf %1, %15 : vector<8x32xf32>
    %cst_9 = arith.constant 9.99999996E-13 : f32
    %17 = vector.broadcast %cst_9 : f32 to vector<8x1xf32>
    %18 = arith.addf %14, %17 : vector<8x1xf32>
    %19 = math.rsqrt %18 : vector<8x1xf32>
    %20 = vector.broadcast %19 : vector<8x1xf32> to vector<8x32xf32>
    %21 = arith.mulf %16, %20 : vector<8x32xf32>
    %22 = vector.broadcast %2 : vector<1x32xf32> to vector<8x32xf32>
    %23 = arith.mulf %21, %22 : vector<8x32xf32>
    %24 = vector.broadcast %3 : vector<1x32xf32> to vector<8x32xf32>
    %25 = arith.addf %23, %24 : vector<8x32xf32>
    %c0_10 = arith.constant 0 : index
    %c0_11 = arith.constant 0 : index
    %c0_12 = arith.constant 0 : index
    %26 = vector.load %arg2[%c0_10, %c0_11, %c0_12] : memref<1x1x8xf32, #tpu.memory_space<vmem>>, vector<1x1x8xf32>
    %27 = vector.shape_cast %26 : vector<1x1x8xf32> to vector<1x8xf32>
    %28 = arith.truncf %25 : vector<8x32xf32> to vector<8x32xbf16>
    %c0_13 = arith.constant 0 : index
    %c0_14 = arith.constant 0 : index
    %c0_15 = arith.constant 0 : index
    %29 = vector.load %arg5[%c0_13, %c0_14, %c0_15] : memref<2x32x96xbf16, #tpu.memory_space<vmem>>, vector<1x32x96xbf16>
    %30 = vector.shape_cast %29 : vector<1x32x96xbf16> to vector<32x96xbf16>
    %cst_16 = arith.constant dense<0.000000e+00> : vector<8x96xf32>
    %31 = tpu.matmul %28, %30, %cst_16 {dimension_numbers = #tpu.dot_dimension_numbers<[1], [0], [0], [1], [0, 0, 1, 1], [], []>} : vector<8x32xbf16>, vector<32x96xbf16>, vector<8x96xf32> -> vector<8x96xf32>
    %c0_17 = arith.constant 0 : index
    %c0_18 = arith.constant 0 : index
    %c0_19 = arith.constant 0 : index
    %32 = vector.load %arg6[%c0_17, %c0_18, %c0_19] : memref<2x1x96xf32, #tpu.memory_space<vmem>>, vector<1x1x96xf32>
    %33 = vector.shape_cast %32 : vector<1x1x96xf32> to vector<1x96xf32>
    %34 = vector.broadcast %33 : vector<1x96xf32> to vector<8x96xf32>
    %35 = arith.addf %31, %34 : vector<8x96xf32>
    %36 = vector.extract_strided_slice %35 {offsets = [0, 0], sizes = [8, 16], strides = [1, 1]} : vector<8x96xf32> to vector<8x16xf32>
    %37 = arith.truncf %36 : vector<8x16xf32> to vector<8x16xbf16>
    %38 = vector.extract_strided_slice %35 {offsets = [0, 32], sizes = [8, 16], strides = [1, 1]} : vector<8x96xf32> to vector<8x16xf32>
    %39 = arith.truncf %38 : vector<8x16xf32> to vector<8x16xbf16>
    %40 = vector.extract_strided_slice %35 {offsets = [0, 64], sizes = [8, 16], strides = [1, 1]} : vector<8x96xf32> to vector<8x16xf32>
    %41 = arith.truncf %40 : vector<8x16xf32> to vector<8x16xbf16>
    %cst_20 = arith.constant dense<0.000000e+00> : vector<8x8xf32>
    %42 = tpu.matmul %37, %39, %cst_20 {dimension_numbers = #tpu.dot_dimension_numbers<[1], [1], [0], [0], [0, 0, 1, 0], [], []>} : vector<8x16xbf16>, vector<8x16xbf16>, vector<8x8xf32> -> vector<8x8xf32>
    %43 = vector.broadcast %27 : vector<1x8xf32> to vector<8x8xf32>
    %44 = arith.addf %42, %43 : vector<8x8xf32>
    %cst_21 = arith.constant dense<0xFF800000> : vector<8xf32>
    %45 = vector.multi_reduction <maximumf>, %44, %cst_21 [1] : vector<8x8xf32> to vector<8xf32>
    %46 = vector.shape_cast %45 : vector<8xf32> to vector<8x1xf32>
    %47 = vector.broadcast %46 : vector<8x1xf32> to vector<8x8xf32>
    %48 = arith.subf %44, %47 : vector<8x8xf32>
    %49 = math.exp %48 : vector<8x8xf32>
    %cst_22 = arith.constant dense<0.000000e+00> : vector<8xf32>
    %50 = vector.multi_reduction <add>, %49, %cst_22 [1] : vector<8x8xf32> to vector<8xf32>
    %51 = vector.shape_cast %50 : vector<8xf32> to vector<8x1xf32>
    %52 = tpu.reciprocal %51 {approx = true} : vector<8x1xf32> -> vector<8x1xf32>
    %53 = vector.broadcast %52 : vector<8x1xf32> to vector<8x8xf32>
    %54 = arith.mulf %49, %53 : vector<8x8xf32>
    %55 = arith.truncf %54 : vector<8x8xf32> to vector<8x8xbf16>
    %cst_23 = arith.constant dense<0.000000e+00> : vector<8x16xf32>
    %56 = tpu.matmul %55, %41, %cst_23 {dimension_numbers = #tpu.dot_dimension_numbers<[1], [0], [0], [1], [0, 0, 1, 1], [], []>} : vector<8x8xbf16>, vector<8x16xbf16>, vector<8x16xf32> -> vector<8x16xf32>
    %57 = vector.extract_strided_slice %35 {offsets = [0, 16], sizes = [8, 16], strides = [1, 1]} : vector<8x96xf32> to vector<8x16xf32>
    %58 = arith.truncf %57 : vector<8x16xf32> to vector<8x16xbf16>
    %59 = vector.extract_strided_slice %35 {offsets = [0, 48], sizes = [8, 16], strides = [1, 1]} : vector<8x96xf32> to vector<8x16xf32>
    %60 = arith.truncf %59 : vector<8x16xf32> to vector<8x16xbf16>
    %61 = vector.extract_strided_slice %35 {offsets = [0, 80], sizes = [8, 16], strides = [1, 1]} : vector<8x96xf32> to vector<8x16xf32>
    %62 = arith.truncf %61 : vector<8x16xf32> to vector<8x16xbf16>
    %cst_24 = arith.constant dense<0.000000e+00> : vector<8x8xf32>
    %63 = tpu.matmul %58, %60, %cst_24 {dimension_numbers = #tpu.dot_dimension_numbers<[1], [1], [0], [0], [0, 0, 1, 0], [], []>} : vector<8x16xbf16>, vector<8x16xbf16>, vector<8x8xf32> -> vector<8x8xf32>
    %64 = vector.broadcast %27 : vector<1x8xf32> to vector<8x8xf32>
    %65 = arith.addf %63, %64 : vector<8x8xf32>
    %cst_25 = arith.constant dense<0xFF800000> : vector<8xf32>
    %66 = vector.multi_reduction <maximumf>, %65, %cst_25 [1] : vector<8x8xf32> to vector<8xf32>
    %67 = vector.shape_cast %66 : vector<8xf32> to vector<8x1xf32>
    %68 = vector.broadcast %67 : vector<8x1xf32> to vector<8x8xf32>
    %69 = arith.subf %65, %68 : vector<8x8xf32>
    %70 = math.exp %69 : vector<8x8xf32>
    %cst_26 = arith.constant dense<0.000000e+00> : vector<8xf32>
    %71 = vector.multi_reduction <add>, %70, %cst_26 [1] : vector<8x8xf32> to vector<8xf32>
    %72 = vector.shape_cast %71 : vector<8xf32> to vector<8x1xf32>
    %73 = tpu.reciprocal %72 {approx = true} : vector<8x1xf32> -> vector<8x1xf32>
    %74 = vector.broadcast %73 : vector<8x1xf32> to vector<8x8xf32>
    %75 = arith.mulf %70, %74 : vector<8x8xf32>
    %76 = arith.truncf %75 : vector<8x8xf32> to vector<8x8xbf16>
    %cst_27 = arith.constant dense<0.000000e+00> : vector<8x16xf32>
    %77 = tpu.matmul %76, %62, %cst_27 {dimension_numbers = #tpu.dot_dimension_numbers<[1], [0], [0], [1], [0, 0, 1, 1], [], []>} : vector<8x8xbf16>, vector<8x16xbf16>, vector<8x16xf32> -> vector<8x16xf32>
    %78 = tpu.concatenate %56, %77 in 1 : vector<8x16xf32>, vector<8x16xf32> -> vector<8x32xf32>
    %79 = arith.truncf %78 : vector<8x32xf32> to vector<8x32xbf16>
    %c0_28 = arith.constant 0 : index
    %c0_29 = arith.constant 0 : index
    %c0_30 = arith.constant 0 : index
    %80 = vector.load %arg7[%c0_28, %c0_29, %c0_30] : memref<2x32x32xbf16, #tpu.memory_space<vmem>>, vector<1x32x32xbf16>
    %81 = vector.shape_cast %80 : vector<1x32x32xbf16> to vector<32x32xbf16>
    %cst_31 = arith.constant dense<0.000000e+00> : vector<8x32xf32>
    %82 = tpu.matmul %79, %81, %cst_31 {dimension_numbers = #tpu.dot_dimension_numbers<[1], [0], [0], [1], [0, 0, 1, 1], [], []>} : vector<8x32xbf16>, vector<32x32xbf16>, vector<8x32xf32> -> vector<8x32xf32>
    %c0_32 = arith.constant 0 : index
    %c0_33 = arith.constant 0 : index
    %c0_34 = arith.constant 0 : index
    %83 = vector.load %arg8[%c0_32, %c0_33, %c0_34] : memref<2x1x32xf32, #tpu.memory_space<vmem>>, vector<1x1x32xf32>
    %84 = vector.shape_cast %83 : vector<1x1x32xf32> to vector<1x32xf32>
    %85 = vector.broadcast %84 : vector<1x32xf32> to vector<8x32xf32>
    %86 = arith.addf %82, %85 : vector<8x32xf32>
    %87 = arith.addf %86, %25 : vector<8x32xf32>
    %c0_35 = arith.constant 0 : index
    %c0_36 = arith.constant 0 : index
    %c0_37 = arith.constant 0 : index
    %88 = vector.load %arg9[%c0_35, %c0_36, %c0_37] : memref<2x1x32xf32, #tpu.memory_space<vmem>>, vector<1x1x32xf32>
    %89 = vector.shape_cast %88 : vector<1x1x32xf32> to vector<1x32xf32>
    %c0_38 = arith.constant 0 : index
    %c0_39 = arith.constant 0 : index
    %c0_40 = arith.constant 0 : index
    %90 = vector.load %arg10[%c0_38, %c0_39, %c0_40] : memref<2x1x32xf32, #tpu.memory_space<vmem>>, vector<1x1x32xf32>
    %91 = vector.shape_cast %90 : vector<1x1x32xf32> to vector<1x32xf32>
    %cst_41 = arith.constant dense<0.000000e+00> : vector<8xf32>
    %92 = vector.multi_reduction <add>, %87, %cst_41 [1] : vector<8x32xf32> to vector<8xf32>
    %93 = vector.shape_cast %92 : vector<8xf32> to vector<8x1xf32>
    %cst_42 = arith.constant 3.200000e+01 : f32
    %94 = vector.broadcast %cst_42 : f32 to vector<8x1xf32>
    %95 = arith.divf %93, %94 : vector<8x1xf32>
    %96 = vector.broadcast %95 : vector<8x1xf32> to vector<8x32xf32>
    %97 = arith.subf %87, %96 : vector<8x32xf32>
    %98 = arith.mulf %97, %97 : vector<8x32xf32>
    %cst_43 = arith.constant dense<0.000000e+00> : vector<8xf32>
    %99 = vector.multi_reduction <add>, %98, %cst_43 [1] : vector<8x32xf32> to vector<8xf32>
    %100 = vector.shape_cast %99 : vector<8xf32> to vector<8x1xf32>
    %cst_44 = arith.constant 3.200000e+01 : f32
    %101 = vector.broadcast %cst_44 : f32 to vector<8x1xf32>
    %102 = arith.divf %100, %101 : vector<8x1xf32>
    %103 = vector.broadcast %95 : vector<8x1xf32> to vector<8x32xf32>
    %104 = arith.subf %87, %103 : vector<8x32xf32>
    %cst_45 = arith.constant 9.99999996E-13 : f32
    %105 = vector.broadcast %cst_45 : f32 to vector<8x1xf32>
    %106 = arith.addf %102, %105 : vector<8x1xf32>
    %107 = math.rsqrt %106 : vector<8x1xf32>
    %108 = vector.broadcast %107 : vector<8x1xf32> to vector<8x32xf32>
    %109 = arith.mulf %104, %108 : vector<8x32xf32>
    %110 = vector.broadcast %89 : vector<1x32xf32> to vector<8x32xf32>
    %111 = arith.mulf %109, %110 : vector<8x32xf32>
    %112 = vector.broadcast %91 : vector<1x32xf32> to vector<8x32xf32>
    %113 = arith.addf %111, %112 : vector<8x32xf32>
    %114 = arith.truncf %113 : vector<8x32xf32> to vector<8x32xbf16>
    %c0_46 = arith.constant 0 : index
    %c0_47 = arith.constant 0 : index
    %c0_48 = arith.constant 0 : index
    %115 = vector.load %arg11[%c0_46, %c0_47, %c0_48] : memref<2x32x64xbf16, #tpu.memory_space<vmem>>, vector<1x32x64xbf16>
    %116 = vector.shape_cast %115 : vector<1x32x64xbf16> to vector<32x64xbf16>
    %cst_49 = arith.constant dense<0.000000e+00> : vector<8x64xf32>
    %117 = tpu.matmul %114, %116, %cst_49 {dimension_numbers = #tpu.dot_dimension_numbers<[1], [0], [0], [1], [0, 0, 1, 1], [], []>} : vector<8x32xbf16>, vector<32x64xbf16>, vector<8x64xf32> -> vector<8x64xf32>
    %c0_50 = arith.constant 0 : index
    %c0_51 = arith.constant 0 : index
    %c0_52 = arith.constant 0 : index
    %118 = vector.load %arg12[%c0_50, %c0_51, %c0_52] : memref<2x1x64xf32, #tpu.memory_space<vmem>>, vector<1x1x64xf32>
    %119 = vector.shape_cast %118 : vector<1x1x64xf32> to vector<1x64xf32>
    %120 = vector.broadcast %119 : vector<1x64xf32> to vector<8x64xf32>
    %121 = arith.addf %117, %120 : vector<8x64xf32>
    %122 = arith.mulf %121, %121 : vector<8x64xf32>
    %123 = arith.mulf %121, %122 : vector<8x64xf32>
    %cst_53 = arith.constant 4.471500e-02 : f32
    %124 = vector.broadcast %cst_53 : f32 to vector<8x64xf32>
    %125 = arith.mulf %124, %123 : vector<8x64xf32>
    %126 = arith.addf %121, %125 : vector<8x64xf32>
    %cst_54 = arith.constant 0.797884583 : f32
    %127 = vector.broadcast %cst_54 : f32 to vector<8x64xf32>
    %128 = arith.mulf %127, %126 : vector<8x64xf32>
    %129 = math.tanh %128 : vector<8x64xf32>
    %cst_55 = arith.constant 1.000000e+00 : f32
    %130 = vector.broadcast %cst_55 : f32 to vector<8x64xf32>
    %131 = arith.addf %130, %129 : vector<8x64xf32>
    %cst_56 = arith.constant 5.000000e-01 : f32
    %132 = vector.broadcast %cst_56 : f32 to vector<8x64xf32>
    %133 = arith.mulf %132, %131 : vector<8x64xf32>
    %134 = arith.mulf %121, %133 : vector<8x64xf32>
    %135 = arith.truncf %134 : vector<8x64xf32> to vector<8x64xbf16>
    %c0_57 = arith.constant 0 : index
    %c0_58 = arith.constant 0 : index
    %c0_59 = arith.constant 0 : index
    %136 = vector.load %arg13[%c0_57, %c0_58, %c0_59] : memref<2x64x32xbf16, #tpu.memory_space<vmem>>, vector<1x64x32xbf16>
    %137 = vector.shape_cast %136 : vector<1x64x32xbf16> to vector<64x32xbf16>
    %cst_60 = arith.constant dense<0.000000e+00> : vector<8x32xf32>
    %138 = tpu.matmul %135, %137, %cst_60 {dimension_numbers = #tpu.dot_dimension_numbers<[1], [0], [0], [1], [0, 0, 1, 1], [], []>} : vector<8x64xbf16>, vector<64x32xbf16>, vector<8x32xf32> -> vector<8x32xf32>
    %c0_61 = arith.constant 0 : index
    %c0_62 = arith.constant 0 : index
    %c0_63 = arith.constant 0 : index
    %139 = vector.load %arg14[%c0_61, %c0_62, %c0_63] : memref<2x1x32xf32, #tpu.memory_space<vmem>>, vector<1x1x32xf32>
    %140 = vector.shape_cast %139 : vector<1x1x32xf32> to vector<1x32xf32>
    %141 = vector.broadcast %140 : vector<1x32xf32> to vector<8x32xf32>
    %142 = arith.addf %138, %141 : vector<8x32xf32>
    %143 = arith.addf %142, %113 : vector<8x32xf32>
    %c0_64 = arith.constant 0 : index
    %c0_65 = arith.constant 0 : index
    %c0_66 = arith.constant 0 : index
    %144 = vector.load %arg15[%c0_64, %c0_65, %c0_66] : memref<2x1x32xf32, #tpu.memory_space<vmem>>, vector<1x1x32xf32>
    %145 = vector.shape_cast %144 : vector<1x1x32xf32> to vector<1x32xf32>
    %c0_67 = arith.constant 0 : index
    %c0_68 = arith.constant 0 : index
    %c0_69 = arith.constant 0 : index
    %146 = vector.load %arg16[%c0_67, %c0_68, %c0_69] : memref<2x1x32xf32, #tpu.memory_space<vmem>>, vector<1x1x32xf32>
    %147 = vector.shape_cast %146 : vector<1x1x32xf32> to vector<1x32xf32>
    %cst_70 = arith.constant dense<0.000000e+00> : vector<8xf32>
    %148 = vector.multi_reduction <add>, %143, %cst_70 [1] : vector<8x32xf32> to vector<8xf32>
    %149 = vector.shape_cast %148 : vector<8xf32> to vector<8x1xf32>
    %cst_71 = arith.constant 3.200000e+01 : f32
    %150 = vector.broadcast %cst_71 : f32 to vector<8x1xf32>
    %151 = arith.divf %149, %150 : vector<8x1xf32>
    %152 = vector.broadcast %151 : vector<8x1xf32> to vector<8x32xf32>
    %153 = arith.subf %143, %152 : vector<8x32xf32>
    %154 = arith.mulf %153, %153 : vector<8x32xf32>
    %cst_72 = arith.constant dense<0.000000e+00> : vector<8xf32>
    %155 = vector.multi_reduction <add>, %154, %cst_72 [1] : vector<8x32xf32> to vector<8xf32>
    %156 = vector.shape_cast %155 : vector<8xf32> to vector<8x1xf32>
    %cst_73 = arith.constant 3.200000e+01 : f32
    %157 = vector.broadcast %cst_73 : f32 to vector<8x1xf32>
    %158 = arith.divf %156, %157 : vector<8x1xf32>
    %159 = vector.broadcast %151 : vector<8x1xf32> to vector<8x32xf32>
    %160 = arith.subf %143, %159 : vector<8x32xf32>
    %cst_74 = arith.constant 9.99999996E-13 : f32
    %161 = vector.broadcast %cst_74 : f32 to vector<8x1xf32>
    %162 = arith.addf %158, %161 : vector<8x1xf32>
    %163 = math.rsqrt %162 : vector<8x1xf32>
    %164 = vector.broadcast %163 : vector<8x1xf32> to vector<8x32xf32>
    %165 = arith.mulf %160, %164 : vector<8x32xf32>
    %166 = vector.broadcast %145 : vector<1x32xf32> to vector<8x32xf32>
    %167 = arith.mulf %165, %166 : vector<8x32xf32>
    %168 = vector.broadcast %147 : vector<1x32xf32> to vector<8x32xf32>
    %169 = arith.addf %167, %168 : vector<8x32xf32>
    %170 = arith.truncf %169 : vector<8x32xf32> to vector<8x32xbf16>
    %c1 = arith.constant 1 : index
    %c0_75 = arith.constant 0 : index
    %c0_76 = arith.constant 0 : index
    %171 = vector.load %arg5[%c1, %c0_75, %c0_76] : memref<2x32x96xbf16, #tpu.memory_space<vmem>>, vector<1x32x96xbf16>
    %172 = vector.shape_cast %171 : vector<1x32x96xbf16> to vector<32x96xbf16>
    %cst_77 = arith.constant dense<0.000000e+00> : vector<8x96xf32>
    %173 = tpu.matmul %170, %172, %cst_77 {dimension_numbers = #tpu.dot_dimension_numbers<[1], [0], [0], [1], [0, 0, 1, 1], [], []>} : vector<8x32xbf16>, vector<32x96xbf16>, vector<8x96xf32> -> vector<8x96xf32>
    %c1_78 = arith.constant 1 : index
    %c0_79 = arith.constant 0 : index
    %c0_80 = arith.constant 0 : index
    %174 = vector.load %arg6[%c1_78, %c0_79, %c0_80] : memref<2x1x96xf32, #tpu.memory_space<vmem>>, vector<1x1x96xf32>
    %175 = vector.shape_cast %174 : vector<1x1x96xf32> to vector<1x96xf32>
    %176 = vector.broadcast %175 : vector<1x96xf32> to vector<8x96xf32>
    %177 = arith.addf %173, %176 : vector<8x96xf32>
    %178 = vector.extract_strided_slice %177 {offsets = [0, 0], sizes = [8, 16], strides = [1, 1]} : vector<8x96xf32> to vector<8x16xf32>
    %179 = arith.truncf %178 : vector<8x16xf32> to vector<8x16xbf16>
    %180 = vector.extract_strided_slice %177 {offsets = [0, 32], sizes = [8, 16], strides = [1, 1]} : vector<8x96xf32> to vector<8x16xf32>
    %181 = arith.truncf %180 : vector<8x16xf32> to vector<8x16xbf16>
    %182 = vector.extract_strided_slice %177 {offsets = [0, 64], sizes = [8, 16], strides = [1, 1]} : vector<8x96xf32> to vector<8x16xf32>
    %183 = arith.truncf %182 : vector<8x16xf32> to vector<8x16xbf16>
    %cst_81 = arith.constant dense<0.000000e+00> : vector<8x8xf32>
    %184 = tpu.matmul %179, %181, %cst_81 {dimension_numbers = #tpu.dot_dimension_numbers<[1], [1], [0], [0], [0, 0, 1, 0], [], []>} : vector<8x16xbf16>, vector<8x16xbf16>, vector<8x8xf32> -> vector<8x8xf32>
    %185 = vector.broadcast %27 : vector<1x8xf32> to vector<8x8xf32>
    %186 = arith.addf %184, %185 : vector<8x8xf32>
    %cst_82 = arith.constant dense<0xFF800000> : vector<8xf32>
    %187 = vector.multi_reduction <maximumf>, %186, %cst_82 [1] : vector<8x8xf32> to vector<8xf32>
    %188 = vector.shape_cast %187 : vector<8xf32> to vector<8x1xf32>
    %189 = vector.broadcast %188 : vector<8x1xf32> to vector<8x8xf32>
    %190 = arith.subf %186, %189 : vector<8x8xf32>
    %191 = math.exp %190 : vector<8x8xf32>
    %cst_83 = arith.constant dense<0.000000e+00> : vector<8xf32>
    %192 = vector.multi_reduction <add>, %191, %cst_83 [1] : vector<8x8xf32> to vector<8xf32>
    %193 = vector.shape_cast %192 : vector<8xf32> to vector<8x1xf32>
    %194 = tpu.reciprocal %193 {approx = true} : vector<8x1xf32> -> vector<8x1xf32>
    %195 = vector.broadcast %194 : vector<8x1xf32> to vector<8x8xf32>
    %196 = arith.mulf %191, %195 : vector<8x8xf32>
    %197 = arith.truncf %196 : vector<8x8xf32> to vector<8x8xbf16>
    %cst_84 = arith.constant dense<0.000000e+00> : vector<8x16xf32>
    %198 = tpu.matmul %197, %183, %cst_84 {dimension_numbers = #tpu.dot_dimension_numbers<[1], [0], [0], [1], [0, 0, 1, 1], [], []>} : vector<8x8xbf16>, vector<8x16xbf16>, vector<8x16xf32> -> vector<8x16xf32>
    %199 = vector.extract_strided_slice %177 {offsets = [0, 16], sizes = [8, 16], strides = [1, 1]} : vector<8x96xf32> to vector<8x16xf32>
    %200 = arith.truncf %199 : vector<8x16xf32> to vector<8x16xbf16>
    %201 = vector.extract_strided_slice %177 {offsets = [0, 48], sizes = [8, 16], strides = [1, 1]} : vector<8x96xf32> to vector<8x16xf32>
    %202 = arith.truncf %201 : vector<8x16xf32> to vector<8x16xbf16>
    %203 = vector.extract_strided_slice %177 {offsets = [0, 80], sizes = [8, 16], strides = [1, 1]} : vector<8x96xf32> to vector<8x16xf32>
    %204 = arith.truncf %203 : vector<8x16xf32> to vector<8x16xbf16>
    %cst_85 = arith.constant dense<0.000000e+00> : vector<8x8xf32>
    %205 = tpu.matmul %200, %202, %cst_85 {dimension_numbers = #tpu.dot_dimension_numbers<[1], [1], [0], [0], [0, 0, 1, 0], [], []>} : vector<8x16xbf16>, vector<8x16xbf16>, vector<8x8xf32> -> vector<8x8xf32>
    %206 = vector.broadcast %27 : vector<1x8xf32> to vector<8x8xf32>
    %207 = arith.addf %205, %206 : vector<8x8xf32>
    %cst_86 = arith.constant dense<0xFF800000> : vector<8xf32>
    %208 = vector.multi_reduction <maximumf>, %207, %cst_86 [1] : vector<8x8xf32> to vector<8xf32>
    %209 = vector.shape_cast %208 : vector<8xf32> to vector<8x1xf32>
    %210 = vector.broadcast %209 : vector<8x1xf32> to vector<8x8xf32>
    %211 = arith.subf %207, %210 : vector<8x8xf32>
    %212 = math.exp %211 : vector<8x8xf32>
    %cst_87 = arith.constant dense<0.000000e+00> : vector<8xf32>
    %213 = vector.multi_reduction <add>, %212, %cst_87 [1] : vector<8x8xf32> to vector<8xf32>
    %214 = vector.shape_cast %213 : vector<8xf32> to vector<8x1xf32>
    %215 = tpu.reciprocal %214 {approx = true} : vector<8x1xf32> -> vector<8x1xf32>
    %216 = vector.broadcast %215 : vector<8x1xf32> to vector<8x8xf32>
    %217 = arith.mulf %212, %216 : vector<8x8xf32>
    %218 = arith.truncf %217 : vector<8x8xf32> to vector<8x8xbf16>
    %cst_88 = arith.constant dense<0.000000e+00> : vector<8x16xf32>
    %219 = tpu.matmul %218, %204, %cst_88 {dimension_numbers = #tpu.dot_dimension_numbers<[1], [0], [0], [1], [0, 0, 1, 1], [], []>} : vector<8x8xbf16>, vector<8x16xbf16>, vector<8x16xf32> -> vector<8x16xf32>
    %220 = tpu.concatenate %198, %219 in 1 : vector<8x16xf32>, vector<8x16xf32> -> vector<8x32xf32>
    %221 = arith.truncf %220 : vector<8x32xf32> to vector<8x32xbf16>
    %c1_89 = arith.constant 1 : index
    %c0_90 = arith.constant 0 : index
    %c0_91 = arith.constant 0 : index
    %222 = vector.load %arg7[%c1_89, %c0_90, %c0_91] : memref<2x32x32xbf16, #tpu.memory_space<vmem>>, vector<1x32x32xbf16>
    %223 = vector.shape_cast %222 : vector<1x32x32xbf16> to vector<32x32xbf16>
    %cst_92 = arith.constant dense<0.000000e+00> : vector<8x32xf32>
    %224 = tpu.matmul %221, %223, %cst_92 {dimension_numbers = #tpu.dot_dimension_numbers<[1], [0], [0], [1], [0, 0, 1, 1], [], []>} : vector<8x32xbf16>, vector<32x32xbf16>, vector<8x32xf32> -> vector<8x32xf32>
    %c1_93 = arith.constant 1 : index
    %c0_94 = arith.constant 0 : index
    %c0_95 = arith.constant 0 : index
    %225 = vector.load %arg8[%c1_93, %c0_94, %c0_95] : memref<2x1x32xf32, #tpu.memory_space<vmem>>, vector<1x1x32xf32>
    %226 = vector.shape_cast %225 : vector<1x1x32xf32> to vector<1x32xf32>
    %227 = vector.broadcast %226 : vector<1x32xf32> to vector<8x32xf32>
    %228 = arith.addf %224, %227 : vector<8x32xf32>
    %229 = arith.addf %228, %169 : vector<8x32xf32>
    %c1_96 = arith.constant 1 : index
    %c0_97 = arith.constant 0 : index
    %c0_98 = arith.constant 0 : index
    %230 = vector.load %arg9[%c1_96, %c0_97, %c0_98] : memref<2x1x32xf32, #tpu.memory_space<vmem>>, vector<1x1x32xf32>
    %231 = vector.shape_cast %230 : vector<1x1x32xf32> to vector<1x32xf32>
    %c1_99 = arith.constant 1 : index
    %c0_100 = arith.constant 0 : index
    %c0_101 = arith.constant 0 : index
    %232 = vector.load %arg10[%c1_99, %c0_100, %c0_101] : memref<2x1x32xf32, #tpu.memory_space<vmem>>, vector<1x1x32xf32>
    %233 = vector.shape_cast %232 : vector<1x1x32xf32> to vector<1x32xf32>
    %cst_102 = arith.constant dense<0.000000e+00> : vector<8xf32>
    %234 = vector.multi_reduction <add>, %229, %cst_102 [1] : vector<8x32xf32> to vector<8xf32>
    %235 = vector.shape_cast %234 : vector<8xf32> to vector<8x1xf32>
    %cst_103 = arith.constant 3.200000e+01 : f32
    %236 = vector.broadcast %cst_103 : f32 to vector<8x1xf32>
    %237 = arith.divf %235, %236 : vector<8x1xf32>
    %238 = vector.broadcast %237 : vector<8x1xf32> to vector<8x32xf32>
    %239 = arith.subf %229, %238 : vector<8x32xf32>
    %240 = arith.mulf %239, %239 : vector<8x32xf32>
    %cst_104 = arith.constant dense<0.000000e+00> : vector<8xf32>
    %241 = vector.multi_reduction <add>, %240, %cst_104 [1] : vector<8x32xf32> to vector<8xf32>
    %242 = vector.shape_cast %241 : vector<8xf32> to vector<8x1xf32>
    %cst_105 = arith.constant 3.200000e+01 : f32
    %243 = vector.broadcast %cst_105 : f32 to vector<8x1xf32>
    %244 = arith.divf %242, %243 : vector<8x1xf32>
    %245 = vector.broadcast %237 : vector<8x1xf32> to vector<8x32xf32>
    %246 = arith.subf %229, %245 : vector<8x32xf32>
    %cst_106 = arith.constant 9.99999996E-13 : f32
    %247 = vector.broadcast %cst_106 : f32 to vector<8x1xf32>
    %248 = arith.addf %244, %247 : vector<8x1xf32>
    %249 = math.rsqrt %248 : vector<8x1xf32>
    %250 = vector.broadcast %249 : vector<8x1xf32> to vector<8x32xf32>
    %251 = arith.mulf %246, %250 : vector<8x32xf32>
    %252 = vector.broadcast %231 : vector<1x32xf32> to vector<8x32xf32>
    %253 = arith.mulf %251, %252 : vector<8x32xf32>
    %254 = vector.broadcast %233 : vector<1x32xf32> to vector<8x32xf32>
    %255 = arith.addf %253, %254 : vector<8x32xf32>
    %256 = arith.truncf %255 : vector<8x32xf32> to vector<8x32xbf16>
    %c1_107 = arith.constant 1 : index
    %c0_108 = arith.constant 0 : index
    %c0_109 = arith.constant 0 : index
    %257 = vector.load %arg11[%c1_107, %c0_108, %c0_109] : memref<2x32x64xbf16, #tpu.memory_space<vmem>>, vector<1x32x64xbf16>
    %258 = vector.shape_cast %257 : vector<1x32x64xbf16> to vector<32x64xbf16>
    %cst_110 = arith.constant dense<0.000000e+00> : vector<8x64xf32>
    %259 = tpu.matmul %256, %258, %cst_110 {dimension_numbers = #tpu.dot_dimension_numbers<[1], [0], [0], [1], [0, 0, 1, 1], [], []>} : vector<8x32xbf16>, vector<32x64xbf16>, vector<8x64xf32> -> vector<8x64xf32>
    %c1_111 = arith.constant 1 : index
    %c0_112 = arith.constant 0 : index
    %c0_113 = arith.constant 0 : index
    %260 = vector.load %arg12[%c1_111, %c0_112, %c0_113] : memref<2x1x64xf32, #tpu.memory_space<vmem>>, vector<1x1x64xf32>
    %261 = vector.shape_cast %260 : vector<1x1x64xf32> to vector<1x64xf32>
    %262 = vector.broadcast %261 : vector<1x64xf32> to vector<8x64xf32>
    %263 = arith.addf %259, %262 : vector<8x64xf32>
    %264 = arith.mulf %263, %263 : vector<8x64xf32>
    %265 = arith.mulf %263, %264 : vector<8x64xf32>
    %cst_114 = arith.constant 4.471500e-02 : f32
    %266 = vector.broadcast %cst_114 : f32 to vector<8x64xf32>
    %267 = arith.mulf %266, %265 : vector<8x64xf32>
    %268 = arith.addf %263, %267 : vector<8x64xf32>
    %cst_115 = arith.constant 0.797884583 : f32
    %269 = vector.broadcast %cst_115 : f32 to vector<8x64xf32>
    %270 = arith.mulf %269, %268 : vector<8x64xf32>
    %271 = math.tanh %270 : vector<8x64xf32>
    %cst_116 = arith.constant 1.000000e+00 : f32
    %272 = vector.broadcast %cst_116 : f32 to vector<8x64xf32>
    %273 = arith.addf %272, %271 : vector<8x64xf32>
    %cst_117 = arith.constant 5.000000e-01 : f32
    %274 = vector.broadcast %cst_117 : f32 to vector<8x64xf32>
    %275 = arith.mulf %274, %273 : vector<8x64xf32>
    %276 = arith.mulf %263, %275 : vector<8x64xf32>
    %277 = arith.truncf %276 : vector<8x64xf32> to vector<8x64xbf16>
    %c1_118 = arith.constant 1 : index
    %c0_119 = arith.constant 0 : index
    %c0_120 = arith.constant 0 : index
    %278 = vector.load %arg13[%c1_118, %c0_119, %c0_120] : memref<2x64x32xbf16, #tpu.memory_space<vmem>>, vector<1x64x32xbf16>
    %279 = vector.shape_cast %278 : vector<1x64x32xbf16> to vector<64x32xbf16>
    %cst_121 = arith.constant dense<0.000000e+00> : vector<8x32xf32>
    %280 = tpu.matmul %277, %279, %cst_121 {dimension_numbers = #tpu.dot_dimension_numbers<[1], [0], [0], [1], [0, 0, 1, 1], [], []>} : vector<8x64xbf16>, vector<64x32xbf16>, vector<8x32xf32> -> vector<8x32xf32>
    %c1_122 = arith.constant 1 : index
    %c0_123 = arith.constant 0 : index
    %c0_124 = arith.constant 0 : index
    %281 = vector.load %arg14[%c1_122, %c0_123, %c0_124] : memref<2x1x32xf32, #tpu.memory_space<vmem>>, vector<1x1x32xf32>
    %282 = vector.shape_cast %281 : vector<1x1x32xf32> to vector<1x32xf32>
    %283 = vector.broadcast %282 : vector<1x32xf32> to vector<8x32xf32>
    %284 = arith.addf %280, %283 : vector<8x32xf32>
    %285 = arith.addf %284, %255 : vector<8x32xf32>
    %c1_125 = arith.constant 1 : index
    %c0_126 = arith.constant 0 : index
    %c0_127 = arith.constant 0 : index
    %286 = vector.load %arg15[%c1_125, %c0_126, %c0_127] : memref<2x1x32xf32, #tpu.memory_space<vmem>>, vector<1x1x32xf32>
    %287 = vector.shape_cast %286 : vector<1x1x32xf32> to vector<1x32xf32>
    %c1_128 = arith.constant 1 : index
    %c0_129 = arith.constant 0 : index
    %c0_130 = arith.constant 0 : index
    %288 = vector.load %arg16[%c1_128, %c0_129, %c0_130] : memref<2x1x32xf32, #tpu.memory_space<vmem>>, vector<1x1x32xf32>
    %289 = vector.shape_cast %288 : vector<1x1x32xf32> to vector<1x32xf32>
    %cst_131 = arith.constant dense<0.000000e+00> : vector<8xf32>
    %290 = vector.multi_reduction <add>, %285, %cst_131 [1] : vector<8x32xf32> to vector<8xf32>
    %291 = vector.shape_cast %290 : vector<8xf32> to vector<8x1xf32>
    %cst_132 = arith.constant 3.200000e+01 : f32
    %292 = vector.broadcast %cst_132 : f32 to vector<8x1xf32>
    %293 = arith.divf %291, %292 : vector<8x1xf32>
    %294 = vector.broadcast %293 : vector<8x1xf32> to vector<8x32xf32>
    %295 = arith.subf %285, %294 : vector<8x32xf32>
    %296 = arith.mulf %295, %295 : vector<8x32xf32>
    %cst_133 = arith.constant dense<0.000000e+00> : vector<8xf32>
    %297 = vector.multi_reduction <add>, %296, %cst_133 [1] : vector<8x32xf32> to vector<8xf32>
    %298 = vector.shape_cast %297 : vector<8xf32> to vector<8x1xf32>
    %cst_134 = arith.constant 3.200000e+01 : f32
    %299 = vector.broadcast %cst_134 : f32 to vector<8x1xf32>
    %300 = arith.divf %298, %299 : vector<8x1xf32>
    %301 = vector.broadcast %293 : vector<8x1xf32> to vector<8x32xf32>
    %302 = arith.subf %285, %301 : vector<8x32xf32>
    %cst_135 = arith.constant 9.99999996E-13 : f32
    %303 = vector.broadcast %cst_135 : f32 to vector<8x1xf32>
    %304 = arith.addf %300, %303 : vector<8x1xf32>
    %305 = math.rsqrt %304 : vector<8x1xf32>
    %306 = vector.broadcast %305 : vector<8x1xf32> to vector<8x32xf32>
    %307 = arith.mulf %302, %306 : vector<8x32xf32>
    %308 = vector.broadcast %287 : vector<1x32xf32> to vector<8x32xf32>
    %309 = arith.mulf %307, %308 : vector<8x32xf32>
    %310 = vector.broadcast %289 : vector<1x32xf32> to vector<8x32xf32>
    %311 = arith.addf %309, %310 : vector<8x32xf32>
    %312 = arith.truncf %311 : vector<8x32xf32> to vector<8x32xbf16>
    %c0_136 = arith.constant 0 : index
    %c0_137 = arith.constant 0 : index
    %313 = vector.load %arg17[%c0_136, %c0_137] : memref<32x96xbf16, #tpu.memory_space<vmem>>, vector<32x96xbf16>
    %cst_138 = arith.constant dense<0.000000e+00> : vector<8x96xf32>
    %314 = tpu.matmul %312, %313, %cst_138 {dimension_numbers = #tpu.dot_dimension_numbers<[1], [0], [0], [1], [0, 0, 1, 1], [], []>} : vector<8x32xbf16>, vector<32x96xbf16>, vector<8x96xf32> -> vector<8x96xf32>
    %c0_139 = arith.constant 0 : index
    %c0_140 = arith.constant 0 : index
    %315 = vector.load %arg19[%c0_139, %c0_140] : memref<1x96xf32, #tpu.memory_space<vmem>>, vector<1x96xf32>
    %316 = vector.broadcast %315 : vector<1x96xf32> to vector<8x96xf32>
    %317 = arith.addf %314, %316 : vector<8x96xf32>
    %c0_141 = arith.constant 0 : index
    %c0_142 = arith.constant 0 : index
    %318 = vector.load %arg18[%c0_141, %c0_142] : memref<32x96xf32, #tpu.memory_space<vmem>>, vector<32x96xf32>
    %c0_143 = arith.constant 0 : index
    %c0_144 = arith.constant 0 : index
    %319 = vector.load %arg20[%c0_143, %c0_144] : memref<1x96xf32, #tpu.memory_space<vmem>>, vector<1x96xf32>
    %cst_145 = arith.constant 0.000000e+00 : f32
    %320 = vector.broadcast %cst_145 : f32 to vector<1x32xf32>
    %cst_146 = arith.constant dense<0.000000e+00> : vector<1x96xf32>
    %321 = tpu.matmul %320, %318, %cst_146 {dimension_numbers = #tpu.dot_dimension_numbers<[1], [0], [0], [1], [0, 0, 1, 1], [], []>} : vector<1x32xf32>, vector<32x96xf32>, vector<1x96xf32> -> vector<1x96xf32>
    %322 = arith.addf %321, %319 : vector<1x96xf32>
    %323 = vector.extract_strided_slice %317 {offsets = [0, 0], sizes = [1, 32], strides = [1, 1]} : vector<8x96xf32> to vector<1x32xf32>
    %324 = vector.extract_strided_slice %322 {offsets = [0, 0], sizes = [1, 32], strides = [1, 1]} : vector<1x96xf32> to vector<1x32xf32>
    %325 = arith.addf %323, %324 : vector<1x32xf32>
    %326 = arith.negf %325 : vector<1x32xf32>
    %327 = math.exp %326 : vector<1x32xf32>
    %cst_147 = arith.constant 1.000000e+00 : f32
    %328 = vector.broadcast %cst_147 : f32 to vector<1x32xf32>
    %329 = arith.addf %328, %327 : vector<1x32xf32>
    %330 = arith.divf %328, %329 : vector<1x32xf32>
    %331 = vector.extract_strided_slice %317 {offsets = [0, 32], sizes = [1, 32], strides = [1, 1]} : vector<8x96xf32> to vector<1x32xf32>
    %332 = vector.extract_strided_slice %322 {offsets = [0, 32], sizes = [1, 32], strides = [1, 1]} : vector<1x96xf32> to vector<1x32xf32>
    %333 = arith.addf %331, %332 : vector<1x32xf32>
    %334 = arith.negf %333 : vector<1x32xf32>
    %335 = math.exp %334 : vector<1x32xf32>
    %cst_148 = arith.constant 1.000000e+00 : f32
    %336 = vector.broadcast %cst_148 : f32 to vector<1x32xf32>
    %337 = arith.addf %336, %335 : vector<1x32xf32>
    %338 = arith.divf %336, %337 : vector<1x32xf32>
    %339 = vector.extract_strided_slice %317 {offsets = [0, 64], sizes = [1, 32], strides = [1, 1]} : vector<8x96xf32> to vector<1x32xf32>
    %340 = vector.extract_strided_slice %322 {offsets = [0, 64], sizes = [1, 32], strides = [1, 1]} : vector<1x96xf32> to vector<1x32xf32>
    %341 = arith.mulf %330, %340 : vector<1x32xf32>
    %342 = arith.addf %339, %341 : vector<1x32xf32>
    %343 = math.tanh %342 : vector<1x32xf32>
    %cst_149 = arith.constant 1.000000e+00 : f32
    %344 = vector.broadcast %cst_149 : f32 to vector<1x32xf32>
    %345 = arith.subf %344, %338 : vector<1x32xf32>
    %346 = arith.mulf %345, %343 : vector<1x32xf32>
    %347 = arith.mulf %338, %320 : vector<1x32xf32>
    %348 = arith.addf %346, %347 : vector<1x32xf32>
    %cst_150 = arith.constant dense<0.000000e+00> : vector<1x96xf32>
    %349 = tpu.matmul %348, %318, %cst_150 {dimension_numbers = #tpu.dot_dimension_numbers<[1], [0], [0], [1], [0, 0, 1, 1], [], []>} : vector<1x32xf32>, vector<32x96xf32>, vector<1x96xf32> -> vector<1x96xf32>
    %350 = arith.addf %349, %319 : vector<1x96xf32>
    %351 = vector.extract_strided_slice %317 {offsets = [1, 0], sizes = [1, 32], strides = [1, 1]} : vector<8x96xf32> to vector<1x32xf32>
    %352 = vector.extract_strided_slice %350 {offsets = [0, 0], sizes = [1, 32], strides = [1, 1]} : vector<1x96xf32> to vector<1x32xf32>
    %353 = arith.addf %351, %352 : vector<1x32xf32>
    %354 = arith.negf %353 : vector<1x32xf32>
    %355 = math.exp %354 : vector<1x32xf32>
    %cst_151 = arith.constant 1.000000e+00 : f32
    %356 = vector.broadcast %cst_151 : f32 to vector<1x32xf32>
    %357 = arith.addf %356, %355 : vector<1x32xf32>
    %358 = arith.divf %356, %357 : vector<1x32xf32>
    %359 = vector.extract_strided_slice %317 {offsets = [1, 32], sizes = [1, 32], strides = [1, 1]} : vector<8x96xf32> to vector<1x32xf32>
    %360 = vector.extract_strided_slice %350 {offsets = [0, 32], sizes = [1, 32], strides = [1, 1]} : vector<1x96xf32> to vector<1x32xf32>
    %361 = arith.addf %359, %360 : vector<1x32xf32>
    %362 = arith.negf %361 : vector<1x32xf32>
    %363 = math.exp %362 : vector<1x32xf32>
    %cst_152 = arith.constant 1.000000e+00 : f32
    %364 = vector.broadcast %cst_152 : f32 to vector<1x32xf32>
    %365 = arith.addf %364, %363 : vector<1x32xf32>
    %366 = arith.divf %364, %365 : vector<1x32xf32>
    %367 = vector.extract_strided_slice %317 {offsets = [1, 64], sizes = [1, 32], strides = [1, 1]} : vector<8x96xf32> to vector<1x32xf32>
    %368 = vector.extract_strided_slice %350 {offsets = [0, 64], sizes = [1, 32], strides = [1, 1]} : vector<1x96xf32> to vector<1x32xf32>
    %369 = arith.mulf %358, %368 : vector<1x32xf32>
    %370 = arith.addf %367, %369 : vector<1x32xf32>
    %371 = math.tanh %370 : vector<1x32xf32>
    %cst_153 = arith.constant 1.000000e+00 : f32
    %372 = vector.broadcast %cst_153 : f32 to vector<1x32xf32>
    %373 = arith.subf %372, %366 : vector<1x32xf32>
    %374 = arith.mulf %373, %371 : vector<1x32xf32>
    %375 = arith.mulf %366, %348 : vector<1x32xf32>
    %376 = arith.addf %374, %375 : vector<1x32xf32>
    %cst_154 = arith.constant dense<0.000000e+00> : vector<1x96xf32>
    %377 = tpu.matmul %376, %318, %cst_154 {dimension_numbers = #tpu.dot_dimension_numbers<[1], [0], [0], [1], [0, 0, 1, 1], [], []>} : vector<1x32xf32>, vector<32x96xf32>, vector<1x96xf32> -> vector<1x96xf32>
    %378 = arith.addf %377, %319 : vector<1x96xf32>
    %379 = vector.extract_strided_slice %317 {offsets = [2, 0], sizes = [1, 32], strides = [1, 1]} : vector<8x96xf32> to vector<1x32xf32>
    %380 = vector.extract_strided_slice %378 {offsets = [0, 0], sizes = [1, 32], strides = [1, 1]} : vector<1x96xf32> to vector<1x32xf32>
    %381 = arith.addf %379, %380 : vector<1x32xf32>
    %382 = arith.negf %381 : vector<1x32xf32>
    %383 = math.exp %382 : vector<1x32xf32>
    %cst_155 = arith.constant 1.000000e+00 : f32
    %384 = vector.broadcast %cst_155 : f32 to vector<1x32xf32>
    %385 = arith.addf %384, %383 : vector<1x32xf32>
    %386 = arith.divf %384, %385 : vector<1x32xf32>
    %387 = vector.extract_strided_slice %317 {offsets = [2, 32], sizes = [1, 32], strides = [1, 1]} : vector<8x96xf32> to vector<1x32xf32>
    %388 = vector.extract_strided_slice %378 {offsets = [0, 32], sizes = [1, 32], strides = [1, 1]} : vector<1x96xf32> to vector<1x32xf32>
    %389 = arith.addf %387, %388 : vector<1x32xf32>
    %390 = arith.negf %389 : vector<1x32xf32>
    %391 = math.exp %390 : vector<1x32xf32>
    %cst_156 = arith.constant 1.000000e+00 : f32
    %392 = vector.broadcast %cst_156 : f32 to vector<1x32xf32>
    %393 = arith.addf %392, %391 : vector<1x32xf32>
    %394 = arith.divf %392, %393 : vector<1x32xf32>
    %395 = vector.extract_strided_slice %317 {offsets = [2, 64], sizes = [1, 32], strides = [1, 1]} : vector<8x96xf32> to vector<1x32xf32>
    %396 = vector.extract_strided_slice %378 {offsets = [0, 64], sizes = [1, 32], strides = [1, 1]} : vector<1x96xf32> to vector<1x32xf32>
    %397 = arith.mulf %386, %396 : vector<1x32xf32>
    %398 = arith.addf %395, %397 : vector<1x32xf32>
    %399 = math.tanh %398 : vector<1x32xf32>
    %cst_157 = arith.constant 1.000000e+00 : f32
    %400 = vector.broadcast %cst_157 : f32 to vector<1x32xf32>
    %401 = arith.subf %400, %394 : vector<1x32xf32>
    %402 = arith.mulf %401, %399 : vector<1x32xf32>
    %403 = arith.mulf %394, %376 : vector<1x32xf32>
    %404 = arith.addf %402, %403 : vector<1x32xf32>
    %cst_158 = arith.constant dense<0.000000e+00> : vector<1x96xf32>
    %405 = tpu.matmul %404, %318, %cst_158 {dimension_numbers = #tpu.dot_dimension_numbers<[1], [0], [0], [1], [0, 0, 1, 1], [], []>} : vector<1x32xf32>, vector<32x96xf32>, vector<1x96xf32> -> vector<1x96xf32>
    %406 = arith.addf %405, %319 : vector<1x96xf32>
    %407 = vector.extract_strided_slice %317 {offsets = [3, 0], sizes = [1, 32], strides = [1, 1]} : vector<8x96xf32> to vector<1x32xf32>
    %408 = vector.extract_strided_slice %406 {offsets = [0, 0], sizes = [1, 32], strides = [1, 1]} : vector<1x96xf32> to vector<1x32xf32>
    %409 = arith.addf %407, %408 : vector<1x32xf32>
    %410 = arith.negf %409 : vector<1x32xf32>
    %411 = math.exp %410 : vector<1x32xf32>
    %cst_159 = arith.constant 1.000000e+00 : f32
    %412 = vector.broadcast %cst_159 : f32 to vector<1x32xf32>
    %413 = arith.addf %412, %411 : vector<1x32xf32>
    %414 = arith.divf %412, %413 : vector<1x32xf32>
    %415 = vector.extract_strided_slice %317 {offsets = [3, 32], sizes = [1, 32], strides = [1, 1]} : vector<8x96xf32> to vector<1x32xf32>
    %416 = vector.extract_strided_slice %406 {offsets = [0, 32], sizes = [1, 32], strides = [1, 1]} : vector<1x96xf32> to vector<1x32xf32>
    %417 = arith.addf %415, %416 : vector<1x32xf32>
    %418 = arith.negf %417 : vector<1x32xf32>
    %419 = math.exp %418 : vector<1x32xf32>
    %cst_160 = arith.constant 1.000000e+00 : f32
    %420 = vector.broadcast %cst_160 : f32 to vector<1x32xf32>
    %421 = arith.addf %420, %419 : vector<1x32xf32>
    %422 = arith.divf %420, %421 : vector<1x32xf32>
    %423 = vector.extract_strided_slice %317 {offsets = [3, 64], sizes = [1, 32], strides = [1, 1]} : vector<8x96xf32> to vector<1x32xf32>
    %424 = vector.extract_strided_slice %406 {offsets = [0, 64], sizes = [1, 32], strides = [1, 1]} : vector<1x96xf32> to vector<1x32xf32>
    %425 = arith.mulf %414, %424 : vector<1x32xf32>
    %426 = arith.addf %423, %425 : vector<1x32xf32>
    %427 = math.tanh %426 : vector<1x32xf32>
    %cst_161 = arith.constant 1.000000e+00 : f32
    %428 = vector.broadcast %cst_161 : f32 to vector<1x32xf32>
    %429 = arith.subf %428, %422 : vector<1x32xf32>
    %430 = arith.mulf %429, %427 : vector<1x32xf32>
    %431 = arith.mulf %422, %404 : vector<1x32xf32>
    %432 = arith.addf %430, %431 : vector<1x32xf32>
    %cst_162 = arith.constant dense<0.000000e+00> : vector<1x96xf32>
    %433 = tpu.matmul %432, %318, %cst_162 {dimension_numbers = #tpu.dot_dimension_numbers<[1], [0], [0], [1], [0, 0, 1, 1], [], []>} : vector<1x32xf32>, vector<32x96xf32>, vector<1x96xf32> -> vector<1x96xf32>
    %434 = arith.addf %433, %319 : vector<1x96xf32>
    %435 = vector.extract_strided_slice %317 {offsets = [4, 0], sizes = [1, 32], strides = [1, 1]} : vector<8x96xf32> to vector<1x32xf32>
    %436 = vector.extract_strided_slice %434 {offsets = [0, 0], sizes = [1, 32], strides = [1, 1]} : vector<1x96xf32> to vector<1x32xf32>
    %437 = arith.addf %435, %436 : vector<1x32xf32>
    %438 = arith.negf %437 : vector<1x32xf32>
    %439 = math.exp %438 : vector<1x32xf32>
    %cst_163 = arith.constant 1.000000e+00 : f32
    %440 = vector.broadcast %cst_163 : f32 to vector<1x32xf32>
    %441 = arith.addf %440, %439 : vector<1x32xf32>
    %442 = arith.divf %440, %441 : vector<1x32xf32>
    %443 = vector.extract_strided_slice %317 {offsets = [4, 32], sizes = [1, 32], strides = [1, 1]} : vector<8x96xf32> to vector<1x32xf32>
    %444 = vector.extract_strided_slice %434 {offsets = [0, 32], sizes = [1, 32], strides = [1, 1]} : vector<1x96xf32> to vector<1x32xf32>
    %445 = arith.addf %443, %444 : vector<1x32xf32>
    %446 = arith.negf %445 : vector<1x32xf32>
    %447 = math.exp %446 : vector<1x32xf32>
    %cst_164 = arith.constant 1.000000e+00 : f32
    %448 = vector.broadcast %cst_164 : f32 to vector<1x32xf32>
    %449 = arith.addf %448, %447 : vector<1x32xf32>
    %450 = arith.divf %448, %449 : vector<1x32xf32>
    %451 = vector.extract_strided_slice %317 {offsets = [4, 64], sizes = [1, 32], strides = [1, 1]} : vector<8x96xf32> to vector<1x32xf32>
    %452 = vector.extract_strided_slice %434 {offsets = [0, 64], sizes = [1, 32], strides = [1, 1]} : vector<1x96xf32> to vector<1x32xf32>
    %453 = arith.mulf %442, %452 : vector<1x32xf32>
    %454 = arith.addf %451, %453 : vector<1x32xf32>
    %455 = math.tanh %454 : vector<1x32xf32>
    %cst_165 = arith.constant 1.000000e+00 : f32
    %456 = vector.broadcast %cst_165 : f32 to vector<1x32xf32>
    %457 = arith.subf %456, %450 : vector<1x32xf32>
    %458 = arith.mulf %457, %455 : vector<1x32xf32>
    %459 = arith.mulf %450, %432 : vector<1x32xf32>
    %460 = arith.addf %458, %459 : vector<1x32xf32>
    %cst_166 = arith.constant dense<0.000000e+00> : vector<1x96xf32>
    %461 = tpu.matmul %460, %318, %cst_166 {dimension_numbers = #tpu.dot_dimension_numbers<[1], [0], [0], [1], [0, 0, 1, 1], [], []>} : vector<1x32xf32>, vector<32x96xf32>, vector<1x96xf32> -> vector<1x96xf32>
    %462 = arith.addf %461, %319 : vector<1x96xf32>
    %463 = vector.extract_strided_slice %317 {offsets = [5, 0], sizes = [1, 32], strides = [1, 1]} : vector<8x96xf32> to vector<1x32xf32>
    %464 = vector.extract_strided_slice %462 {offsets = [0, 0], sizes = [1, 32], strides = [1, 1]} : vector<1x96xf32> to vector<1x32xf32>
    %465 = arith.addf %463, %464 : vector<1x32xf32>
    %466 = arith.negf %465 : vector<1x32xf32>
    %467 = math.exp %466 : vector<1x32xf32>
    %cst_167 = arith.constant 1.000000e+00 : f32
    %468 = vector.broadcast %cst_167 : f32 to vector<1x32xf32>
    %469 = arith.addf %468, %467 : vector<1x32xf32>
    %470 = arith.divf %468, %469 : vector<1x32xf32>
    %471 = vector.extract_strided_slice %317 {offsets = [5, 32], sizes = [1, 32], strides = [1, 1]} : vector<8x96xf32> to vector<1x32xf32>
    %472 = vector.extract_strided_slice %462 {offsets = [0, 32], sizes = [1, 32], strides = [1, 1]} : vector<1x96xf32> to vector<1x32xf32>
    %473 = arith.addf %471, %472 : vector<1x32xf32>
    %474 = arith.negf %473 : vector<1x32xf32>
    %475 = math.exp %474 : vector<1x32xf32>
    %cst_168 = arith.constant 1.000000e+00 : f32
    %476 = vector.broadcast %cst_168 : f32 to vector<1x32xf32>
    %477 = arith.addf %476, %475 : vector<1x32xf32>
    %478 = arith.divf %476, %477 : vector<1x32xf32>
    %479 = vector.extract_strided_slice %317 {offsets = [5, 64], sizes = [1, 32], strides = [1, 1]} : vector<8x96xf32> to vector<1x32xf32>
    %480 = vector.extract_strided_slice %462 {offsets = [0, 64], sizes = [1, 32], strides = [1, 1]} : vector<1x96xf32> to vector<1x32xf32>
    %481 = arith.mulf %470, %480 : vector<1x32xf32>
    %482 = arith.addf %479, %481 : vector<1x32xf32>
    %483 = math.tanh %482 : vector<1x32xf32>
    %cst_169 = arith.constant 1.000000e+00 : f32
    %484 = vector.broadcast %cst_169 : f32 to vector<1x32xf32>
    %485 = arith.subf %484, %478 : vector<1x32xf32>
    %486 = arith.mulf %485, %483 : vector<1x32xf32>
    %487 = arith.mulf %478, %460 : vector<1x32xf32>
    %488 = arith.addf %486, %487 : vector<1x32xf32>
    %cst_170 = arith.constant dense<0.000000e+00> : vector<1x96xf32>
    %489 = tpu.matmul %488, %318, %cst_170 {dimension_numbers = #tpu.dot_dimension_numbers<[1], [0], [0], [1], [0, 0, 1, 1], [], []>} : vector<1x32xf32>, vector<32x96xf32>, vector<1x96xf32> -> vector<1x96xf32>
    %490 = arith.addf %489, %319 : vector<1x96xf32>
    %491 = vector.extract_strided_slice %317 {offsets = [6, 0], sizes = [1, 32], strides = [1, 1]} : vector<8x96xf32> to vector<1x32xf32>
    %492 = vector.extract_strided_slice %490 {offsets = [0, 0], sizes = [1, 32], strides = [1, 1]} : vector<1x96xf32> to vector<1x32xf32>
    %493 = arith.addf %491, %492 : vector<1x32xf32>
    %494 = arith.negf %493 : vector<1x32xf32>
    %495 = math.exp %494 : vector<1x32xf32>
    %cst_171 = arith.constant 1.000000e+00 : f32
    %496 = vector.broadcast %cst_171 : f32 to vector<1x32xf32>
    %497 = arith.addf %496, %495 : vector<1x32xf32>
    %498 = arith.divf %496, %497 : vector<1x32xf32>
    %499 = vector.extract_strided_slice %317 {offsets = [6, 32], sizes = [1, 32], strides = [1, 1]} : vector<8x96xf32> to vector<1x32xf32>
    %500 = vector.extract_strided_slice %490 {offsets = [0, 32], sizes = [1, 32], strides = [1, 1]} : vector<1x96xf32> to vector<1x32xf32>
    %501 = arith.addf %499, %500 : vector<1x32xf32>
    %502 = arith.negf %501 : vector<1x32xf32>
    %503 = math.exp %502 : vector<1x32xf32>
    %cst_172 = arith.constant 1.000000e+00 : f32
    %504 = vector.broadcast %cst_172 : f32 to vector<1x32xf32>
    %505 = arith.addf %504, %503 : vector<1x32xf32>
    %506 = arith.divf %504, %505 : vector<1x32xf32>
    %507 = vector.extract_strided_slice %317 {offsets = [6, 64], sizes = [1, 32], strides = [1, 1]} : vector<8x96xf32> to vector<1x32xf32>
    %508 = vector.extract_strided_slice %490 {offsets = [0, 64], sizes = [1, 32], strides = [1, 1]} : vector<1x96xf32> to vector<1x32xf32>
    %509 = arith.mulf %498, %508 : vector<1x32xf32>
    %510 = arith.addf %507, %509 : vector<1x32xf32>
    %511 = math.tanh %510 : vector<1x32xf32>
    %cst_173 = arith.constant 1.000000e+00 : f32
    %512 = vector.broadcast %cst_173 : f32 to vector<1x32xf32>
    %513 = arith.subf %512, %506 : vector<1x32xf32>
    %514 = arith.mulf %513, %511 : vector<1x32xf32>
    %515 = arith.mulf %506, %488 : vector<1x32xf32>
    %516 = arith.addf %514, %515 : vector<1x32xf32>
    %cst_174 = arith.constant dense<0.000000e+00> : vector<1x96xf32>
    %517 = tpu.matmul %516, %318, %cst_174 {dimension_numbers = #tpu.dot_dimension_numbers<[1], [0], [0], [1], [0, 0, 1, 1], [], []>} : vector<1x32xf32>, vector<32x96xf32>, vector<1x96xf32> -> vector<1x96xf32>
    %518 = arith.addf %517, %319 : vector<1x96xf32>
    %519 = vector.extract_strided_slice %317 {offsets = [7, 0], sizes = [1, 32], strides = [1, 1]} : vector<8x96xf32> to vector<1x32xf32>
    %520 = vector.extract_strided_slice %518 {offsets = [0, 0], sizes = [1, 32], strides = [1, 1]} : vector<1x96xf32> to vector<1x32xf32>
    %521 = arith.addf %519, %520 : vector<1x32xf32>
    %522 = arith.negf %521 : vector<1x32xf32>
    %523 = math.exp %522 : vector<1x32xf32>
    %cst_175 = arith.constant 1.000000e+00 : f32
    %524 = vector.broadcast %cst_175 : f32 to vector<1x32xf32>
    %525 = arith.addf %524, %523 : vector<1x32xf32>
    %526 = arith.divf %524, %525 : vector<1x32xf32>
    %527 = vector.extract_strided_slice %317 {offsets = [7, 32], sizes = [1, 32], strides = [1, 1]} : vector<8x96xf32> to vector<1x32xf32>
    %528 = vector.extract_strided_slice %518 {offsets = [0, 32], sizes = [1, 32], strides = [1, 1]} : vector<1x96xf32> to vector<1x32xf32>
    %529 = arith.addf %527, %528 : vector<1x32xf32>
    %530 = arith.negf %529 : vector<1x32xf32>
    %531 = math.exp %530 : vector<1x32xf32>
    %cst_176 = arith.constant 1.000000e+00 : f32
    %532 = vector.broadcast %cst_176 : f32 to vector<1x32xf32>
    %533 = arith.addf %532, %531 : vector<1x32xf32>
    %534 = arith.divf %532, %533 : vector<1x32xf32>
    %535 = vector.extract_strided_slice %317 {offsets = [7, 64], sizes = [1, 32], strides = [1, 1]} : vector<8x96xf32> to vector<1x32xf32>
    %536 = vector.extract_strided_slice %518 {offsets = [0, 64], sizes = [1, 32], strides = [1, 1]} : vector<1x96xf32> to vector<1x32xf32>
    %537 = arith.mulf %526, %536 : vector<1x32xf32>
    %538 = arith.addf %535, %537 : vector<1x32xf32>
    %539 = math.tanh %538 : vector<1x32xf32>
    %cst_177 = arith.constant 1.000000e+00 : f32
    %540 = vector.broadcast %cst_177 : f32 to vector<1x32xf32>
    %541 = arith.subf %540, %534 : vector<1x32xf32>
    %542 = arith.mulf %541, %539 : vector<1x32xf32>
    %543 = arith.mulf %534, %516 : vector<1x32xf32>
    %544 = arith.addf %542, %543 : vector<1x32xf32>
    %c0_178 = arith.constant 0 : index
    %c0_179 = arith.constant 0 : index
    %545 = vector.load %arg21[%c0_178, %c0_179] : memref<32x128xf32, #tpu.memory_space<vmem>>, vector<32x128xf32>
    %cst_180 = arith.constant dense<0.000000e+00> : vector<1x128xf32>
    %546 = tpu.matmul %544, %545, %cst_180 {dimension_numbers = #tpu.dot_dimension_numbers<[1], [0], [0], [1], [0, 0, 1, 1], [], []>} : vector<1x32xf32>, vector<32x128xf32>, vector<1x128xf32> -> vector<1x128xf32>
    %c0_181 = arith.constant 0 : index
    %c0_182 = arith.constant 0 : index
    %547 = vector.load %arg22[%c0_181, %c0_182] : memref<1x128xf32, #tpu.memory_space<vmem>>, vector<1x128xf32>
    %548 = arith.addf %546, %547 : vector<1x128xf32>
    %c0_183 = arith.constant 0 : index
    %c0_184 = arith.constant 0 : index
    %c0_185 = arith.constant 0 : index
    %549 = vector.load %arg23[%c0_183, %c0_184, %c0_185] : memref<1x1x128xf32, #tpu.memory_space<vmem>>, vector<1x1x128xf32>
    %550 = vector.shape_cast %549 : vector<1x1x128xf32> to vector<1x128xf32>
    %551 = vector.shape_cast %548 : vector<1x128xf32> to vector<1x1x128xf32>
    tpu.vector_store %arg23[%c0_183, %c0_184, %c0_185], %551 {strides = array<i32>} : memref<1x1x128xf32, #tpu.memory_space<vmem>>, vector<1x1x128xf32>,
    return
  }
  func.func @transform_0(%arg0: i32) -> (i32, i32, i32) {
    %c0_i32 = arith.constant 0 : i32
    %c0_i32_0 = arith.constant 0 : i32
    %c0_i32_1 = arith.constant 0 : i32
    return %arg0, %c0_i32, %c0_i32_0 : i32, i32, i32
  }
  func.func @transform_1(%arg0: i32) -> (i32, i32, i32) {
    %c0_i32 = arith.constant 0 : i32
    %c0_i32_0 = arith.constant 0 : i32
    %c0_i32_1 = arith.constant 0 : i32
    return %arg0, %c0_i32, %c0_i32_0 : i32, i32, i32
  }
  func.func @transform_2(%arg0: i32) -> (i32, i32) {
    %c0_i32 = arith.constant 0 : i32
    %c0_i32_0 = arith.constant 0 : i32
    %c0_i32_1 = arith.constant 0 : i32
    return %c0_i32, %c0_i32_0 : i32, i32
  }
  func.func @transform_3(%arg0: i32) -> (i32, i32) {
    %c0_i32 = arith.constant 0 : i32
    %c0_i32_0 = arith.constant 0 : i32
    %c0_i32_1 = arith.constant 0 : i32
    return %c0_i32, %c0_i32_0 : i32, i32
  }
  func.func @transform_4(%arg0: i32) -> (i32, i32, i32) {
    %c0_i32 = arith.constant 0 : i32
    %c0_i32_0 = arith.constant 0 : i32
    %c0_i32_1 = arith.constant 0 : i32
    %c0_i32_2 = arith.constant 0 : i32
    return %c0_i32, %c0_i32_0, %c0_i32_1 : i32, i32, i32
  }
  func.func @transform_5(%arg0: i32) -> (i32, i32, i32) {
    %c0_i32 = arith.constant 0 : i32
    %c0_i32_0 = arith.constant 0 : i32
    %c0_i32_1 = arith.constant 0 : i32
    %c0_i32_2 = arith.constant 0 : i32
    return %c0_i32, %c0_i32_0, %c0_i32_1 : i32, i32, i32
  }
  func.func @transform_6(%arg0: i32) -> (i32, i32, i32) {
    %c0_i32 = arith.constant 0 : i32
    %c0_i32_0 = arith.constant 0 : i32
    %c0_i32_1 = arith.constant 0 : i32
    %c0_i32_2 = arith.constant 0 : i32
    return %c0_i32, %c0_i32_0, %c0_i32_1 : i32, i32, i32
  }
  func.func @transform_7(%arg0: i32) -> (i32, i32, i32) {
    %c0_i32 = arith.constant 0 : i32
    %c0_i32_0 = arith.constant 0 : i32
    %c0_i32_1 = arith.constant 0 : i32
    %c0_i32_2 = arith.constant 0 : i32
    return %c0_i32, %c0_i32_0, %c0_i32_1 : i32, i32, i32
  }
  func.func @transform_8(%arg0: i32) -> (i32, i32, i32) {
    %c0_i32 = arith.constant 0 : i32
    %c0_i32_0 = arith.constant 0 : i32
    %c0_i32_1 = arith.constant 0 : i32
    %c0_i32_2 = arith.constant 0 : i32
    return %c0_i32, %c0_i32_0, %c0_i32_1 : i32, i32, i32
  }
  func.func @transform_9(%arg0: i32) -> (i32, i32, i32) {
    %c0_i32 = arith.constant 0 : i32
    %c0_i32_0 = arith.constant 0 : i32
    %c0_i32_1 = arith.constant 0 : i32
    %c0_i32_2 = arith.constant 0 : i32
    return %c0_i32, %c0_i32_0, %c0_i32_1 : i32, i32, i32
  }
  func.func @transform_10(%arg0: i32) -> (i32, i32, i32) {
    %c0_i32 = arith.constant 0 : i32
    %c0_i32_0 = arith.constant 0 : i32
    %c0_i32_1 = arith.constant 0 : i32
    %c0_i32_2 = arith.constant 0 : i32
    return %c0_i32, %c0_i32_0, %c0_i32_1 : i32, i32, i32
  }
  func.func @transform_11(%arg0: i32) -> (i32, i32, i32) {
    %c0_i32 = arith.constant 0 : i32
    %c0_i32_0 = arith.constant 0 : i32
    %c0_i32_1 = arith.constant 0 : i32
    %c0_i32_2 = arith.constant 0 : i32
    return %c0_i32, %c0_i32_0, %c0_i32_1 : i32, i32, i32
  }
  func.func @transform_12(%arg0: i32) -> (i32, i32, i32) {
    %c0_i32 = arith.constant 0 : i32
    %c0_i32_0 = arith.constant 0 : i32
    %c0_i32_1 = arith.constant 0 : i32
    %c0_i32_2 = arith.constant 0 : i32
    return %c0_i32, %c0_i32_0, %c0_i32_1 : i32, i32, i32
  }
  func.func @transform_13(%arg0: i32) -> (i32, i32, i32) {
    %c0_i32 = arith.constant 0 : i32
    %c0_i32_0 = arith.constant 0 : i32
    %c0_i32_1 = arith.constant 0 : i32
    %c0_i32_2 = arith.constant 0 : i32
    return %c0_i32, %c0_i32_0, %c0_i32_1 : i32, i32, i32
  }
  func.func @transform_14(%arg0: i32) -> (i32, i32, i32) {
    %c0_i32 = arith.constant 0 : i32
    %c0_i32_0 = arith.constant 0 : i32
    %c0_i32_1 = arith.constant 0 : i32
    %c0_i32_2 = arith.constant 0 : i32
    return %c0_i32, %c0_i32_0, %c0_i32_1 : i32, i32, i32
  }
  func.func @transform_15(%arg0: i32) -> (i32, i32, i32) {
    %c0_i32 = arith.constant 0 : i32
    %c0_i32_0 = arith.constant 0 : i32
    %c0_i32_1 = arith.constant 0 : i32
    %c0_i32_2 = arith.constant 0 : i32
    return %c0_i32, %c0_i32_0, %c0_i32_1 : i32, i32, i32
  }
  func.func @transform_16(%arg0: i32) -> (i32, i32) {
    %c0_i32 = arith.constant 0 : i32
    %c0_i32_0 = arith.constant 0 : i32
    %c0_i32_1 = arith.constant 0 : i32
    return %c0_i32, %c0_i32_0 : i32, i32
  }
  func.func @transform_17(%arg0: i32) -> (i32, i32) {
    %c0_i32 = arith.constant 0 : i32
    %c0_i32_0 = arith.constant 0 : i32
    %c0_i32_1 = arith.constant 0 : i32
    return %c0_i32, %c0_i32_0 : i32, i32
  }
  func.func @transform_18(%arg0: i32) -> (i32, i32) {
    %c0_i32 = arith.constant 0 : i32
    %c0_i32_0 = arith.constant 0 : i32
    %c0_i32_1 = arith.constant 0 : i32
    return %c0_i32, %c0_i32_0 : i32, i32
  }
  func.func @transform_19(%arg0: i32) -> (i32, i32) {
    %c0_i32 = arith.constant 0 : i32
    %c0_i32_0 = arith.constant 0 : i32
    %c0_i32_1 = arith.constant 0 : i32
    return %c0_i32, %c0_i32_0 : i32, i32
  }
  func.func @transform_20(%arg0: i32) -> (i32, i32) {
    %c0_i32 = arith.constant 0 : i32
    %c0_i32_0 = arith.constant 0 : i32
    %c0_i32_1 = arith.constant 0 : i32
    return %c0_i32, %c0_i32_0 : i32, i32
  }
  func.func @transform_21(%arg0: i32) -> (i32, i32) {
    %c0_i32 = arith.constant 0 : i32
    %c0_i32_0 = arith.constant 0 : i32
    %c0_i32_1 = arith.constant 0 : i32
    return %c0_i32, %c0_i32_0 : i32, i32
  }
  func.func @transform_22(%arg0: i32) -> (i32, i32, i32) {
    %c0_i32 = arith.constant 0 : i32
    %c0_i32_0 = arith.constant 0 : i32
    %c0_i32_1 = arith.constant 0 : i32
    return %arg0, %c0_i32, %c0_i32_0 : i32, i32, i32
  }
}

</mosaic_0001>

<llo_original>
// kernel: tpu_custom_call.1
$region0: #{tpu_custom_call.1}
  #allocation0 [shape = 'u32[]', space=smem, size = 0x4, offset = 0x4, fixed_abs, tag = 'smem constant byte address 0x4 - core index']
  #allocation1 [shape = 'u32[144,128]{1,0:T(1,128)}', space=vmem, size = 0x12000, scoped, tag = 'internal scratch']
  %s0 = inlined_call_operand.hbm [shape: f32[2,8,32], index: 0, kind: input, shape index: {}]
  %s1 = inlined_call_operand.hbm [shape: f32[2,1,8], index: 1, kind: input, shape index: {}]
  %s2 = inlined_call_operand.hbm [shape: f32[1,32], index: 2, kind: input, shape index: {}]
  %s3 = inlined_call_operand.hbm [shape: f32[1,32], index: 3, kind: input, shape index: {}]
  %s4 = inlined_call_operand.vmem [shape: bf16[2,32,96], index: 4, kind: input, shape index: {}]
  %s5 = inlined_call_operand.hbm [shape: f32[2,1,96], index: 5, kind: input, shape index: {}]
  %s6 = inlined_call_operand.vmem [shape: bf16[2,32,32], index: 6, kind: input, shape index: {}]
  %s7 = inlined_call_operand.hbm [shape: f32[2,1,32], index: 7, kind: input, shape index: {}]
  %s8 = inlined_call_operand.hbm [shape: f32[2,1,32], index: 8, kind: input, shape index: {}]
  %s9 = inlined_call_operand.hbm [shape: f32[2,1,32], index: 9, kind: input, shape index: {}]
  %s10 = inlined_call_operand.vmem [shape: bf16[2,32,64], index: 10, kind: input, shape index: {}]
  %s11 = inlined_call_operand.hbm [shape: f32[2,1,64], index: 11, kind: input, shape index: {}]
  %s12 = inlined_call_operand.vmem [shape: bf16[2,64,32], index: 12, kind: input, shape index: {}]
  %s13 = inlined_call_operand.hbm [shape: f32[2,1,32], index: 13, kind: input, shape index: {}]
  %s14 = inlined_call_operand.hbm [shape: f32[2,1,32], index: 14, kind: input, shape index: {}]
  %s15 = inlined_call_operand.hbm [shape: f32[2,1,32], index: 15, kind: input, shape index: {}]
  %s16 = inlined_call_operand.hbm [shape: bf16[32,96], index: 16, kind: input, shape index: {}]
  %s17 = inlined_call_operand.vmem [shape: f32[32,96], index: 17, kind: input, shape index: {}]
  %s18 = inlined_call_operand.vmem [shape: f32[1,96], index: 18, kind: input, shape index: {}]
  %s19 = inlined_call_operand.vmem [shape: f32[1,96], index: 19, kind: input, shape index: {}]
  %s20 = inlined_call_operand.hbm [shape: f32[32,128], index: 20, kind: input, shape index: {}]
  %s21 = inlined_call_operand.vmem [shape: f32[1,128], index: 21, kind: input, shape index: {}]
  %s22 = inlined_call_operand.hbm [shape: f32[2,1,128], index: 22, kind: output, shape index: {}]
  %s23 = sld [smem:[#allocation0]]
  $region177: #{tpu_custom_call.1} parent=0
    _
  %s25 = ssub.s32 1, %s23
  %s26 = scalar_select 0, %s25, %s23
  $region1: #{tpu_custom_call.1} parent=0
    #allocation2 [shape = 'u8[8192]{0}', space=vmem, size = 0x2000, scoped, tag = 'input window, operand 0']
    #allocation3 [shape = 's32[2]{0}', space=sflag, size = 0x8, scoped, tag = 'scoped memory for tpu_custom_call.1']
    #allocation4 [shape = 's32[2]{0}', space=sflag, size = 0x8, scoped, tag = 'scoped memory for tpu_custom_call.1']
    #allocation5 [shape = 'u8[1024]{0}', space=vmem, size = 0x400, scoped, tag = 'input window, operand 1']
    #allocation6 [shape = 's32[2]{0}', space=sflag, size = 0x8, scoped, tag = 'scoped memory for tpu_custom_call.1']
    #allocation7 [shape = 'u8[512]{0}', space=vmem, size = 0x400, scoped, tag = 'input window, operand 2, single buffered']
    #allocation8 [shape = 'u8[512]{0}', space=vmem, size = 0x400, scoped, tag = 'input window, operand 3, single buffered']
    #allocation9 [shape = 's32[1]{0}', space=sflag, size = 0x4, scoped, tag = 'scoped memory for tpu_custom_call.1']
    #allocation10 [shape = 'u8[1024]{0}', space=vmem, size = 0x400, scoped, tag = 'input window, operand 5, single buffered']
    #allocation11 [shape = 'u8[1024]{0}', space=vmem, size = 0x400, scoped, tag = 'input window, operand 7, single buffered']
    #allocation12 [shape = 's32[1]{0}', space=sflag, size = 0x4, scoped, tag = 'scoped memory for tpu_custom_call.1']
    #allocation13 [shape = 'u8[1024]{0}', space=vmem, size = 0x400, scoped, tag = 'input window, operand 8, single buffered']
    #allocation14 [shape = 'u8[1024]{0}', space=vmem, size = 0x400, scoped, tag = 'input window, operand 9, single buffered']
    #allocation15 [shape = 's32[1]{0}', space=sflag, size = 0x4, scoped, tag = 'scoped memory for tpu_custom_call.1']
    #allocation16 [shape = 'u8[1024]{0}', space=vmem, size = 0x400, scoped, tag = 'input window, operand 11, single buffered']
    #allocation17 [shape = 'u8[1024]{0}', space=vmem, size = 0x400, scoped, tag = 'input window, operand 13, single buffered']
    #allocation18 [shape = 's32[1]{0}', space=sflag, size = 0x4, scoped, tag = 'scoped memory for tpu_custom_call.1']
    #allocation19 [shape = 'u8[1024]{0}', space=vmem, size = 0x400, scoped, tag = 'input window, operand 14, single buffered']
    #allocation20 [shape = 'u8[1024]{0}', space=vmem, size = 0x400, scoped, tag = 'input window, operand 15, single buffered']
    #allocation21 [shape = 's32[1]{0}', space=sflag, size = 0x4, scoped, tag = 'scoped memory for tpu_custom_call.1']
    #allocation22 [shape = 'u8[8192]{0}', space=vmem, size = 0x2000, scoped, tag = 'input window, operand 16, single buffered']
    #allocation23 [shape = 'u8[16384]{0}', space=vmem, size = 0x4000, scoped, tag = 'input window, operand 20, single buffered']
    #allocation24 [shape = 's32[1]{0}', space=sflag, size = 0x4, scoped, tag = 'scoped memory for tpu_custom_call.1']
    #allocation25 [shape = 'u8[1024]{0}', space=vmem, size = 0x400, scoped, tag = 'output window, operand 0']
    %27 = vsyncpa [#allocation3], 0
    %s28 = scalar_lea.sflag [#allocation3], 1
    %29 = vsyncpa %s28, 0
    %30 = vsyncpa [#allocation6], 0
    %s31 = scalar_lea.sflag [#allocation6], 1
    %32 = vsyncpa %s31, 0
    %33 = vsyncpa [#allocation9], 0
    %34 = vsyncpa [#allocation12], 0
    %35 = vsyncpa [#allocation15], 0
    %36 = vsyncpa [#allocation18], 0
    %37 = vsyncpa [#allocation21], 0
    %38 = vsyncpa [#allocation24], 0
    %39 = vsyncpa [#allocation4], 0
    %s40 = scalar_lea.sflag [#allocation4], 1
    %41 = vsyncpa %s40, 0
    loop: start=0, step=1, limit=4
    $region2: #{tpu_custom_call.1} parent=1 // loop_pre_header
      _
    $region3: #{tpu_custom_call.1} parent=1 // loop_header
      %s43 = sphi 0, %s47
      %p44 = scmp.ge.s32.totalorder %s43, 4
      %s53 = sphi 0, %s55
      %s56 = sphi 0, %s53
      %s57 = sphi 0, %s56
      %s73 = sphi 0, %s57
      %s79 = sphi 0, %s81
      %s82 = sphi 0, %s79
      %s83 = sphi 0, %s82
      %s99 = sphi 0, %s83
      %s103 = sphi 0, %s103
      %s105 = sphi 0, %s103
      %s106 = sphi 0, %s105
      %s120 = sphi 0, %s106
      %s124 = sphi 0, %s124
      %s126 = sphi 0, %s124
      %s127 = sphi 0, %s126
      %s141 = sphi 0, %s127
      %s145 = sphi 0, %s145
      %s147 = sphi 0, %s145
      %s148 = sphi 0, %s147
      %s162 = sphi 0, %s148
      %s166 = sphi 0, %s166
      %s168 = sphi 0, %s166
      %s169 = sphi 0, %s168
      %s183 = sphi 0, %s169
      %s187 = sphi 0, %s187
      %s189 = sphi 0, %s187
      %s190 = sphi 0, %s189
      %s204 = sphi 0, %s190
      %s208 = sphi 0, %s208
      %s210 = sphi 0, %s208
      %s211 = sphi 0, %s210
      %s225 = sphi 0, %s211
      %s229 = sphi 0, %s229
      %s231 = sphi 0, %s229
      %s232 = sphi 0, %s231
      %s246 = sphi 0, %s232
      %s250 = sphi 0, %s250
      %s252 = sphi 0, %s250
      %s253 = sphi 0, %s252
      %s267 = sphi 0, %s253
      %s271 = sphi 0, %s271
      %s273 = sphi 0, %s271
      %s274 = sphi 0, %s273
      %s288 = sphi 0, %s274
      %s292 = sphi 0, %s292
      %s294 = sphi 0, %s292
      %s295 = sphi 0, %s294
      %s309 = sphi 0, %s295
      %s313 = sphi 0, %s313
      %s315 = sphi 0, %s313
      %s316 = sphi 0, %s315
      %s330 = sphi 0, %s316
      %s334 = sphi 0, %s334
      %s336 = sphi 0, %s334
      %s337 = sphi 0, %s336
      %s351 = sphi 0, %s337
      %s355 = sphi 0, %s355
      %s357 = sphi 0, %s355
      %s358 = sphi 0, %s357
      %s372 = sphi 0, %s358
      %s376 = sphi 0, %s376
      %s378 = sphi 0, %s376
      %s379 = sphi 0, %s378
      %s393 = sphi 0, %s379
      %s397 = sphi 0, %s397
      %s399 = sphi 0, %s397
      %s400 = sphi 0, %s399
      %s414 = sphi 0, %s400
      %s418 = sphi 0, %s418
      %s420 = sphi 0, %s418
      %s421 = sphi 0, %s420
      %s435 = sphi 0, %s421
      %s439 = sphi 0, %s439
      %s441 = sphi 0, %s439
      %s442 = sphi 0, %s441
      %s456 = sphi 0, %s442
      %s460 = sphi 0, %s460
      %s462 = sphi 0, %s460
      %s463 = sphi 0, %s462
      %s477 = sphi 0, %s463
      %s481 = sphi 0, %s481
      %s483 = sphi 0, %s481
      %s484 = sphi 0, %s483
      %s498 = sphi 0, %s484
      %s502 = sphi 0, %s502
      %s504 = sphi 0, %s502
      %s505 = sphi 0, %s504
      %s519 = sphi 0, %s505
      %s525 = sphi 0, %s527
      %s528 = sphi 0, %s525
      %s529 = sphi 0, %s528
      %s545 = sphi 0, %s529
    $region4: #{tpu_custom_call.1} parent=1 // loop_header_branch
      %46 = sbr.rel (%p44) target = $region8
    $region5: #{tpu_custom_call.1} parent=1 // loop_body
      %s48 = ssub.s32 %s43, 1
      %s49 = ssub.s32 %s43, 2
      %s50 = sadd.s32 %s43, 1
      %s51 = ssub.s32 %s43, %s50
      %p52 = scmp.eq.s32.totalorder %s51, 0
      %s54 = sadd.s32 %s53, 1
      %s55 = scalar_select %p52, %s53, %s54
      %p58 = pneg %p52
      %p59 = scmp.eq.s32.totalorder %s43, 1
      %p60 = por %p58, %p59
      %p61 = scmp.ne.s32.totalorder %s53, %s56
      %p62 = scmp.eq.s32.totalorder %s43, 0
      %p63 = por %p61, %p62
      %p64 = scmp.ne.s32.totalorder %s53, %s56
      %p65 = scmp.eq.s32.totalorder %s48, 1
      %p66 = por %p64, %p65
      %p67 = scmp.ne.s32.totalorder %s56, %s57
      %p68 = scmp.eq.s32.totalorder %s48, 0
      %p69 = por %p67, %p68
      %p70 = scmp.ne.s32.totalorder %s56, %s57
      %p71 = scmp.eq.s32.totalorder %s49, 1
      %p72 = por %p70, %p71
      %p74 = scmp.ne.s32.totalorder %s57, %s73
      %p75 = scmp.eq.s32.totalorder %s49, 0
      %p76 = por %p74, %p75
      %s77 = ssub.s32 %s43, %s50
      %p78 = scmp.eq.s32.totalorder %s77, 0
      %s80 = sadd.s32 %s79, 1
      %s81 = scalar_select %p78, %s79, %s80
      %p84 = pneg %p78
      %p85 = scmp.eq.s32.totalorder %s43, 1
      %p86 = por %p84, %p85
      %p87 = scmp.ne.s32.totalorder %s79, %s82
      %p88 = scmp.eq.s32.totalorder %s43, 0
      %p89 = por %p87, %p88
      %p90 = scmp.ne.s32.totalorder %s79, %s82
      %p91 = scmp.eq.s32.totalorder %s48, 1
      %p92 = por %p90, %p91
      %p93 = scmp.ne.s32.totalorder %s82, %s83
      %p94 = scmp.eq.s32.totalorder %s48, 0
      %p95 = por %p93, %p94
      %p96 = scmp.ne.s32.totalorder %s82, %s83
      %p97 = scmp.eq.s32.totalorder %s49, 1
      %p98 = por %p96, %p97
      %p100 = scmp.ne.s32.totalorder %s83, %s99
      %p101 = scmp.eq.s32.totalorder %s49, 0
      %p102 = por %p100, %p101
      %s104 = sadd.s32 %s103, 1
      %p107 = scmp.eq.s32.totalorder %s43, 1
      %p108 = scmp.ne.s32.totalorder %s103, %s105
      %p109 = scmp.eq.s32.totalorder %s43, 0
      %p110 = por %p108, %p109
      %p111 = scmp.ne.s32.totalorder %s103, %s105
      %p112 = scmp.eq.s32.totalorder %s48, 1
      %p113 = por %p111, %p112
      %p114 = scmp.ne.s32.totalorder %s105, %s106
      %p115 = scmp.eq.s32.totalorder %s48, 0
      %p116 = por %p114, %p115
      %p117 = scmp.ne.s32.totalorder %s105, %s106
      %p118 = scmp.eq.s32.totalorder %s49, 1
      %p119 = por %p117, %p118
      %p121 = scmp.ne.s32.totalorder %s106, %s120
      %p122 = scmp.eq.s32.totalorder %s49, 0
      %p123 = por %p121, %p122
      %s125 = sadd.s32 %s124, 1
      %p128 = scmp.eq.s32.totalorder %s43, 1
      %p129 = scmp.ne.s32.totalorder %s124, %s126
      %p130 = scmp.eq.s32.totalorder %s43, 0
      %p131 = por %p129, %p130
      %p132 = scmp.ne.s32.totalorder %s124, %s126
      %p133 = scmp.eq.s32.totalorder %s48, 1
      %p134 = por %p132, %p133
      %p135 = scmp.ne.s32.totalorder %s126, %s127
      %p136 = scmp.eq.s32.totalorder %s48, 0
      %p137 = por %p135, %p136
      %p138 = scmp.ne.s32.totalorder %s126, %s127
      %p139 = scmp.eq.s32.totalorder %s49, 1
      %p140 = por %p138, %p139
      %p142 = scmp.ne.s32.totalorder %s127, %s141
      %p143 = scmp.eq.s32.totalorder %s49, 0
      %p144 = por %p142, %p143
      %s146 = sadd.s32 %s145, 1
      %p149 = scmp.eq.s32.totalorder %s43, 1
      %p150 = scmp.ne.s32.totalorder %s145, %s147
      %p151 = scmp.eq.s32.totalorder %s43, 0
      %p152 = por %p150, %p151
      %p153 = scmp.ne.s32.totalorder %s145, %s147
      %p154 = scmp.eq.s32.totalorder %s48, 1
      %p155 = por %p153, %p154
      %p156 = scmp.ne.s32.totalorder %s147, %s148
      %p157 = scmp.eq.s32.totalorder %s48, 0
      %p158 = por %p156, %p157
      %p159 = scmp.ne.s32.totalorder %s147, %s148
      %p160 = scmp.eq.s32.totalorder %s49, 1
      %p161 = por %p159, %p160
      %p163 = scmp.ne.s32.totalorder %s148, %s162
      %p164 = scmp.eq.s32.totalorder %s49, 0
      %p165 = por %p163, %p164
      %s167 = sadd.s32 %s166, 1
      %p170 = scmp.eq.s32.totalorder %s43, 1
      %p171 = scmp.ne.s32.totalorder %s166, %s168
      %p172 = scmp.eq.s32.totalorder %s43, 0
      %p173 = por %p171, %p172
      %p174 = scmp.ne.s32.totalorder %s166, %s168
      %p175 = scmp.eq.s32.totalorder %s48, 1
      %p176 = por %p174, %p175
      %p177 = scmp.ne.s32.totalorder %s168, %s169
      %p178 = scmp.eq.s32.totalorder %s48, 0
      %p179 = por %p177, %p178
      %p180 = scmp.ne.s32.totalorder %s168, %s169
      %p181 = scmp.eq.s32.totalorder %s49, 1
      %p182 = por %p180, %p181
      %p184 = scmp.ne.s32.totalorder %s169, %s183
      %p185 = scmp.eq.s32.totalorder %s49, 0
      %p186 = por %p184, %p185
      %s188 = sadd.s32 %s187, 1
      %p191 = scmp.eq.s32.totalorder %s43, 1
      %p192 = scmp.ne.s32.totalorder %s187, %s189
      %p193 = scmp.eq.s32.totalorder %s43, 0
      %p194 = por %p192, %p193
      %p195 = scmp.ne.s32.totalorder %s187, %s189
      %p196 = scmp.eq.s32.totalorder %s48, 1
      %p197 = por %p195, %p196
      %p198 = scmp.ne.s32.totalorder %s189, %s190
      %p199 = scmp.eq.s32.totalorder %s48, 0
      %p200 = por %p198, %p199
      %p201 = scmp.ne.s32.totalorder %s189, %s190
      %p202 = scmp.eq.s32.totalorder %s49, 1
      %p203 = por %p201, %p202
      %p205 = scmp.ne.s32.totalorder %s190, %s204
      %p206 = scmp.eq.s32.totalorder %s49, 0
      %p207 = por %p205, %p206
      %s209 = sadd.s32 %s208, 1
      %p212 = scmp.eq.s32.totalorder %s43, 1
      %p213 = scmp.ne.s32.totalorder %s208, %s210
      %p214 = scmp.eq.s32.totalorder %s43, 0
      %p215 = por %p213, %p214
      %p216 = scmp.ne.s32.totalorder %s208, %s210
      %p217 = scmp.eq.s32.totalorder %s48, 1
      %p218 = por %p216, %p217
      %p219 = scmp.ne.s32.totalorder %s210, %s211
      %p220 = scmp.eq.s32.totalorder %s48, 0
      %p221 = por %p219, %p220
      %p222 = scmp.ne.s32.totalorder %s210, %s211
      %p223 = scmp.eq.s32.totalorder %s49, 1
      %p224 = por %p222, %p223
      %p226 = scmp.ne.s32.totalorder %s211, %s225
      %p227 = scmp.eq.s32.totalorder %s49, 0
      %p228 = por %p226, %p227
      %s230 = sadd.s32 %s229, 1
      %p233 = scmp.eq.s32.totalorder %s43, 1
      %p234 = scmp.ne.s32.totalorder %s229, %s231
      %p235 = scmp.eq.s32.totalorder %s43, 0
      %p236 = por %p234, %p235
      %p237 = scmp.ne.s32.totalorder %s229, %s231
      %p238 = scmp.eq.s32.totalorder %s48, 1
      %p239 = por %p237, %p238
      %p240 = scmp.ne.s32.totalorder %s231, %s232
      %p241 = scmp.eq.s32.totalorder %s48, 0
      %p242 = por %p240, %p241
      %p243 = scmp.ne.s32.totalorder %s231, %s232
      %p244 = scmp.eq.s32.totalorder %s49, 1
      %p245 = por %p243, %p244
      %p247 = scmp.ne.s32.totalorder %s232, %s246
      %p248 = scmp.eq.s32.totalorder %s49, 0
      %p249 = por %p247, %p248
      %s251 = sadd.s32 %s250, 1
      %p254 = scmp.eq.s32.totalorder %s43, 1
      %p255 = scmp.ne.s32.totalorder %s250, %s252
      %p256 = scmp.eq.s32.totalorder %s43, 0
      %p257 = por %p255, %p256
      %p258 = scmp.ne.s32.totalorder %s250, %s252
      %p259 = scmp.eq.s32.totalorder %s48, 1
      %p260 = por %p258, %p259
      %p261 = scmp.ne.s32.totalorder %s252, %s253
      %p262 = scmp.eq.s32.totalorder %s48, 0
      %p263 = por %p261, %p262
      %p264 = scmp.ne.s32.totalorder %s252, %s253
      %p265 = scmp.eq.s32.totalorder %s49, 1
      %p266 = por %p264, %p265
      %p268 = scmp.ne.s32.totalorder %s253, %s267
      %p269 = scmp.eq.s32.totalorder %s49, 0
      %p270 = por %p268, %p269
      %s272 = sadd.s32 %s271, 1
      %p275 = scmp.eq.s32.totalorder %s43, 1
      %p276 = scmp.ne.s32.totalorder %s271, %s273
      %p277 = scmp.eq.s32.totalorder %s43, 0
      %p278 = por %p276, %p277
      %p279 = scmp.ne.s32.totalorder %s271, %s273
      %p280 = scmp.eq.s32.totalorder %s48, 1
      %p281 = por %p279, %p280
      %p282 = scmp.ne.s32.totalorder %s273, %s274
      %p283 = scmp.eq.s32.totalorder %s48, 0
      %p284 = por %p282, %p283
      %p285 = scmp.ne.s32.totalorder %s273, %s274
      %p286 = scmp.eq.s32.totalorder %s49, 1
      %p287 = por %p285, %p286
      %p289 = scmp.ne.s32.totalorder %s274, %s288
      %p290 = scmp.eq.s32.totalorder %s49, 0
      %p291 = por %p289, %p290
      %s293 = sadd.s32 %s292, 1
      %p296 = scmp.eq.s32.totalorder %s43, 1
      %p297 = scmp.ne.s32.totalorder %s292, %s294
      %p298 = scmp.eq.s32.totalorder %s43, 0
      %p299 = por %p297, %p298
      %p300 = scmp.ne.s32.totalorder %s292, %s294
      %p301 = scmp.eq.s32.totalorder %s48, 1
      %p302 = por %p300, %p301
      %p303 = scmp.ne.s32.totalorder %s294, %s295
      %p304 = scmp.eq.s32.totalorder %s48, 0
      %p305 = por %p303, %p304
      %p306 = scmp.ne.s32.totalorder %s294, %s295
      %p307 = scmp.eq.s32.totalorder %s49, 1
      %p308 = por %p306, %p307
      %p310 = scmp.ne.s32.totalorder %s295, %s309
      %p311 = scmp.eq.s32.totalorder %s49, 0
      %p312 = por %p310, %p311
      %s314 = sadd.s32 %s313, 1
      %p317 = scmp.eq.s32.totalorder %s43, 1
      %p318 = scmp.ne.s32.totalorder %s313, %s315
      %p319 = scmp.eq.s32.totalorder %s43, 0
      %p320 = por %p318, %p319
      %p321 = scmp.ne.s32.totalorder %s313, %s315
      %p322 = scmp.eq.s32.totalorder %s48, 1
      %p323 = por %p321, %p322
      %p324 = scmp.ne.s32.totalorder %s315, %s316
      %p325 = scmp.eq.s32.totalorder %s48, 0
      %p326 = por %p324, %p325
      %p327 = scmp.ne.s32.totalorder %s315, %s316
      %p328 = scmp.eq.s32.totalorder %s49, 1
      %p329 = por %p327, %p328
      %p331 = scmp.ne.s32.totalorder %s316, %s330
      %p332 = scmp.eq.s32.totalorder %s49, 0
      %p333 = por %p331, %p332
      %s335 = sadd.s32 %s334, 1
      %p338 = scmp.eq.s32.totalorder %s43, 1
      %p339 = scmp.ne.s32.totalorder %s334, %s336
      %p340 = scmp.eq.s32.totalorder %s43, 0
      %p341 = por %p339, %p340
      %p342 = scmp.ne.s32.totalorder %s334, %s336
      %p343 = scmp.eq.s32.totalorder %s48, 1
      %p344 = por %p342, %p343
      %p345 = scmp.ne.s32.totalorder %s336, %s337
      %p346 = scmp.eq.s32.totalorder %s48, 0
      %p347 = por %p345, %p346
      %p348 = scmp.ne.s32.totalorder %s336, %s337
      %p349 = scmp.eq.s32.totalorder %s49, 1
      %p350 = por %p348, %p349
      %p352 = scmp.ne.s32.totalorder %s337, %s351
      %p353 = scmp.eq.s32.totalorder %s49, 0
      %p354 = por %p352, %p353
      %s356 = sadd.s32 %s355, 1
      %p359 = scmp.eq.s32.totalorder %s43, 1
      %p360 = scmp.ne.s32.totalorder %s355, %s357
      %p361 = scmp.eq.s32.totalorder %s43, 0
      %p362 = por %p360, %p361
      %p363 = scmp.ne.s32.totalorder %s355, %s357
      %p364 = scmp.eq.s32.totalorder %s48, 1
      %p365 = por %p363, %p364
      %p366 = scmp.ne.s32.totalorder %s357, %s358
      %p367 = scmp.eq.s32.totalorder %s48, 0
      %p368 = por %p366, %p367
      %p369 = scmp.ne.s32.totalorder %s357, %s358
      %p370 = scmp.eq.s32.totalorder %s49, 1
      %p371 = por %p369, %p370
      %p373 = scmp.ne.s32.totalorder %s358, %s372
      %p374 = scmp.eq.s32.totalorder %s49, 0
      %p375 = por %p373, %p374
      %s377 = sadd.s32 %s376, 1
      %p380 = scmp.eq.s32.totalorder %s43, 1
      %p381 = scmp.ne.s32.totalorder %s376, %s378
      %p382 = scmp.eq.s32.totalorder %s43, 0
      %p383 = por %p381, %p382
      %p384 = scmp.ne.s32.totalorder %s376, %s378
      %p385 = scmp.eq.s32.totalorder %s48, 1
      %p386 = por %p384, %p385
      %p387 = scmp.ne.s32.totalorder %s378, %s379
      %p388 = scmp.eq.s32.totalorder %s48, 0
      %p389 = por %p387, %p388
      %p390 = scmp.ne.s32.totalorder %s378, %s379
      %p391 = scmp.eq.s32.totalorder %s49, 1
      %p392 = por %p390, %p391
      %p394 = scmp.ne.s32.totalorder %s379, %s393
      %p395 = scmp.eq.s32.totalorder %s49, 0
      %p396 = por %p394, %p395
      %s398 = sadd.s32 %s397, 1
      %p401 = scmp.eq.s32.totalorder %s43, 1
      %p402 = scmp.ne.s32.totalorder %s397, %s399
      %p403 = scmp.eq.s32.totalorder %s43, 0
      %p404 = por %p402, %p403
      %p405 = scmp.ne.s32.totalorder %s397, %s399
      %p406 = scmp.eq.s32.totalorder %s48, 1
      %p407 = por %p405, %p406
      %p408 = scmp.ne.s32.totalorder %s399, %s400
      %p409 = scmp.eq.s32.totalorder %s48, 0
      %p410 = por %p408, %p409
      %p411 = scmp.ne.s32.totalorder %s399, %s400
      %p412 = scmp.eq.s32.totalorder %s49, 1
      %p413 = por %p411, %p412
      %p415 = scmp.ne.s32.totalorder %s400, %s414
      %p416 = scmp.eq.s32.totalorder %s49, 0
      %p417 = por %p415, %p416
      %s419 = sadd.s32 %s418, 1
      %p422 = scmp.eq.s32.totalorder %s43, 1
      %p423 = scmp.ne.s32.totalorder %s418, %s420
      %p424 = scmp.eq.s32.totalorder %s43, 0
      %p425 = por %p423, %p424
      %p426 = scmp.ne.s32.totalorder %s418, %s420
      %p427 = scmp.eq.s32.totalorder %s48, 1
      %p428 = por %p426, %p427
      %p429 = scmp.ne.s32.totalorder %s420, %s421
      %p430 = scmp.eq.s32.totalorder %s48, 0
      %p431 = por %p429, %p430
      %p432 = scmp.ne.s32.totalorder %s420, %s421
      %p433 = scmp.eq.s32.totalorder %s49, 1
      %p434 = por %p432, %p433
      %p436 = scmp.ne.s32.totalorder %s421, %s435
      %p437 = scmp.eq.s32.totalorder %s49, 0
      %p438 = por %p436, %p437
      %s440 = sadd.s32 %s439, 1
      %p443 = scmp.eq.s32.totalorder %s43, 1
      %p444 = scmp.ne.s32.totalorder %s439, %s441
      %p445 = scmp.eq.s32.totalorder %s43, 0
      %p446 = por %p444, %p445
      %p447 = scmp.ne.s32.totalorder %s439, %s441
      %p448 = scmp.eq.s32.totalorder %s48, 1
      %p449 = por %p447, %p448
      %p450 = scmp.ne.s32.totalorder %s441, %s442
      %p451 = scmp.eq.s32.totalorder %s48, 0
      %p452 = por %p450, %p451
      %p453 = scmp.ne.s32.totalorder %s441, %s442
      %p454 = scmp.eq.s32.totalorder %s49, 1
      %p455 = por %p453, %p454
      %p457 = scmp.ne.s32.totalorder %s442, %s456
      %p458 = scmp.eq.s32.totalorder %s49, 0
      %p459 = por %p457, %p458
      %s461 = sadd.s32 %s460, 1
      %p464 = scmp.eq.s32.totalorder %s43, 1
      %p465 = scmp.ne.s32.totalorder %s460, %s462
      %p466 = scmp.eq.s32.totalorder %s43, 0
      %p467 = por %p465, %p466
      %p468 = scmp.ne.s32.totalorder %s460, %s462
      %p469 = scmp.eq.s32.totalorder %s48, 1
      %p470 = por %p468, %p469
      %p471 = scmp.ne.s32.totalorder %s462, %s463
      %p472 = scmp.eq.s32.totalorder %s48, 0
      %p473 = por %p471, %p472
      %p474 = scmp.ne.s32.totalorder %s462, %s463
      %p475 = scmp.eq.s32.totalorder %s49, 1
      %p476 = por %p474, %p475
      %p478 = scmp.ne.s32.totalorder %s463, %s477
      %p479 = scmp.eq.s32.totalorder %s49, 0
      %p480 = por %p478, %p479
      %s482 = sadd.s32 %s481, 1
      %p485 = scmp.eq.s32.totalorder %s43, 1
      %p486 = scmp.ne.s32.totalorder %s481, %s483
      %p487 = scmp.eq.s32.totalorder %s43, 0
      %p488 = por %p486, %p487
      %p489 = scmp.ne.s32.totalorder %s481, %s483
      %p490 = scmp.eq.s32.totalorder %s48, 1
      %p491 = por %p489, %p490
      %p492 = scmp.ne.s32.totalorder %s483, %s484
      %p493 = scmp.eq.s32.totalorder %s48, 0
      %p494 = por %p492, %p493
      %p495 = scmp.ne.s32.totalorder %s483, %s484
      %p496 = scmp.eq.s32.totalorder %s49, 1
      %p497 = por %p495, %p496
      %p499 = scmp.ne.s32.totalorder %s484, %s498
      %p500 = scmp.eq.s32.totalorder %s49, 0
      %p501 = por %p499, %p500
      %s503 = sadd.s32 %s502, 1
      %p506 = scmp.eq.s32.totalorder %s43, 1
      %p507 = scmp.ne.s32.totalorder %s502, %s504
      %p508 = scmp.eq.s32.totalorder %s43, 0
      %p509 = por %p507, %p508
      %p510 = scmp.ne.s32.totalorder %s502, %s504
      %p511 = scmp.eq.s32.totalorder %s48, 1
      %p512 = por %p510, %p511
      %p513 = scmp.ne.s32.totalorder %s504, %s505
      %p514 = scmp.eq.s32.totalorder %s48, 0
      %p515 = por %p513, %p514
      %p516 = scmp.ne.s32.totalorder %s504, %s505
      %p517 = scmp.eq.s32.totalorder %s49, 1
      %p518 = por %p516, %p517
      %p520 = scmp.ne.s32.totalorder %s505, %s519
      %p521 = scmp.eq.s32.totalorder %s49, 0
      %p522 = por %p520, %p521
      %s523 = ssub.s32 %s43, %s50
      %p524 = scmp.eq.s32.totalorder %s523, 0
      %s526 = sadd.s32 %s525, 1
      %s527 = scalar_select %p524, %s525, %s526
      %p530 = pneg %p524
      %p531 = scmp.eq.s32.totalorder %s43, 1
      %p532 = por %p530, %p531
      %p533 = scmp.ne.s32.totalorder %s525, %s528
      %p534 = scmp.eq.s32.totalorder %s43, 0
      %p535 = por %p533, %p534
      %p536 = scmp.ne.s32.totalorder %s525, %s528
      %p537 = scmp.eq.s32.totalorder %s48, 1
      %p538 = por %p536, %p537
      %p539 = scmp.ne.s32.totalorder %s528, %s529
      %p540 = scmp.eq.s32.totalorder %s48, 0
      %p541 = por %p539, %p540
      %p542 = scmp.ne.s32.totalorder %s528, %s529
      %p543 = scmp.eq.s32.totalorder %s49, 1
      %p544 = por %p542, %p543
      %p546 = scmp.ne.s32.totalorder %s529, %s545
      %p547 = scmp.eq.s32.totalorder %s49, 0
      %p548 = por %p546, %p547
      %p549 = scmp.le.s32.totalorder 1, %s43
      %p550 = scmp.lt.s32.totalorder %s43, 3
      %p551 = pnand %p549, %p550
      %p552 = pneg %p551
      // Predicated region
      $region9: #{tpu_custom_call.1} parent=5 // pred_check
        _
      $region10: #{tpu_custom_call.1} parent=5 // pred_check_branch
        %554 = sbr.rel (%p551) target = $region12
      $region11: #{tpu_custom_call.1} parent=5 // pred_region
        %s555 = ssub.s32 %s43, 1
        // Predicated region
        $region13: #{tpu_custom_call.1} parent=11 // pred_check
          %p556 = pneg %p116
        $region14: #{tpu_custom_call.1} parent=11 // pred_check_branch
          %558 = sbr.rel (%p556) target = $region16
        $region15: #{tpu_custom_call.1} parent=11 // pred_region
          %s560 = ssub.s32 16, 16
          %561 = vsyncadd [#allocation6], %s560
          %s563 = sshll.u32 [#allocation7], 4
          %s564 = int_to_ptr.vmem [resolvable:$true] %s563
          %566 = dma.hbm_to_vmem [thread:$0]  %s2, 16, %s564, [#allocation6]
        $region16: #{tpu_custom_call.1} parent=11 // pred_fallthru
          _
        // Predicated region
        $region17: #{tpu_custom_call.1} parent=11 // pred_check
          %p567 = pneg %p137
        $region18: #{tpu_custom_call.1} parent=11 // pred_check_branch
          %569 = sbr.rel (%p567) target = $region20
        $region19: #{tpu_custom_call.1} parent=11 // pred_region
          %s571 = ssub.s32 16, 16
          %572 = vsyncadd [#allocation9], %s571
          %s574 = sshll.u32 [#allocation8], 4
          %s575 = int_to_ptr.vmem [resolvable:$true] %s574
          %577 = dma.hbm_to_vmem [thread:$0]  %s3, 16, %s575, [#allocation9]
        $region20: #{tpu_custom_call.1} parent=11 // pred_fallthru
          _
        // Predicated region
        $region21: #{tpu_custom_call.1} parent=11 // pred_check
          %p578 = pneg %p158
        $region22: #{tpu_custom_call.1} parent=11 // pred_check_branch
          %580 = sbr.rel (%p578) target = $region24
        $region23: #{tpu_custom_call.1} parent=11 // pred_region
          _
        $region24: #{tpu_custom_call.1} parent=11 // pred_fallthru
          _
        // Predicated region
        $region25: #{tpu_custom_call.1} parent=11 // pred_check
          %p581 = pneg %p179
        $region26: #{tpu_custom_call.1} parent=11 // pred_check_branch
          %583 = sbr.rel (%p581) target = $region28
        $region27: #{tpu_custom_call.1} parent=11 // pred_region
          %s585 = ssub.s32 32, 32
          %586 = vsyncadd [#allocation9], %s585
          %s587 = sshll.u32 [#allocation10], 4
          %s588 = int_to_ptr.vmem [resolvable:$true] %s587
          %593 = dma.hbm_to_vmem [thread:$0]  %s5, 32, %s588, [#allocation9], 16, 16, 1
        $region28: #{tpu_custom_call.1} parent=11 // pred_fallthru
          _
        // Predicated region
        $region29: #{tpu_custom_call.1} parent=11 // pred_check
          %p594 = pneg %p200
        $region30: #{tpu_custom_call.1} parent=11 // pred_check_branch
          %596 = sbr.rel (%p594) target = $region32
        $region31: #{tpu_custom_call.1} parent=11 // pred_region
          _
        $region32: #{tpu_custom_call.1} parent=11 // pred_fallthru
          _
        // Predicated region
        $region33: #{tpu_custom_call.1} parent=11 // pred_check
          %p597 = pneg %p221
        $region34: #{tpu_custom_call.1} parent=11 // pred_check_branch
          %599 = sbr.rel (%p597) target = $region36
        $region35: #{tpu_custom_call.1} parent=11 // pred_region
          %s601 = ssub.s32 32, 32
          %602 = vsyncadd [#allocation12], %s601
          %s603 = sshll.u32 [#allocation11], 4
          %s604 = int_to_ptr.vmem [resolvable:$true] %s603
          %609 = dma.hbm_to_vmem [thread:$0]  %s7, 32, %s604, [#allocation12], 16, 16, 1
        $region36: #{tpu_custom_call.1} parent=11 // pred_fallthru
          _
        // Predicated region
        $region37: #{tpu_custom_call.1} parent=11 // pred_check
          %p610 = pneg %p242
        $region38: #{tpu_custom_call.1} parent=11 // pred_check_branch
          %612 = sbr.rel (%p610) target = $region40
        $region39: #{tpu_custom_call.1} parent=11 // pred_region
          %s614 = ssub.s32 32, 32
          %615 = vsyncadd [#allocation12], %s614
          %s616 = sshll.u32 [#allocation13], 4
          %s617 = int_to_ptr.vmem [resolvable:$true] %s616
          %622 = dma.hbm_to_vmem [thread:$0]  %s8, 32, %s617, [#allocation12], 16, 16, 1
        $region40: #{tpu_custom_call.1} parent=11 // pred_fallthru
          _
        // Predicated region
        $region41: #{tpu_custom_call.1} parent=11 // pred_check
          %p623 = pneg %p263
        $region42: #{tpu_custom_call.1} parent=11 // pred_check_branch
          %625 = sbr.rel (%p623) target = $region44
        $region43: #{tpu_custom_call.1} parent=11 // pred_region
          %s627 = ssub.s32 32, 32
          %628 = vsyncadd [#allocation15], %s627
          %s629 = sshll.u32 [#allocation14], 4
          %s630 = int_to_ptr.vmem [resolvable:$true] %s629
          %635 = dma.hbm_to_vmem [thread:$0]  %s9, 32, %s630, [#allocation15], 16, 16, 1
        $region44: #{tpu_custom_call.1} parent=11 // pred_fallthru
          _
        // Predicated region
        $region45: #{tpu_custom_call.1} parent=11 // pred_check
          %p636 = pneg %p284
        $region46: #{tpu_custom_call.1} parent=11 // pred_check_branch
          %638 = sbr.rel (%p636) target = $region48
        $region47: #{tpu_custom_call.1} parent=11 // pred_region
          _
        $region48: #{tpu_custom_call.1} parent=11 // pred_fallthru
          _
        // Predicated region
        $region49: #{tpu_custom_call.1} parent=11 // pred_check
          %p639 = pneg %p305
        $region50: #{tpu_custom_call.1} parent=11 // pred_check_branch
          %641 = sbr.rel (%p639) target = $region52
        $region51: #{tpu_custom_call.1} parent=11 // pred_region
          %s643 = ssub.s32 32, 32
          %644 = vsyncadd [#allocation15], %s643
          %s645 = sshll.u32 [#allocation16], 4
          %s646 = int_to_ptr.vmem [resolvable:$true] %s645
          %651 = dma.hbm_to_vmem [thread:$0]  %s11, 32, %s646, [#allocation15], 16, 16, 1
        $region52: #{tpu_custom_call.1} parent=11 // pred_fallthru
          _
        // Predicated region
        $region53: #{tpu_custom_call.1} parent=11 // pred_check
          %p652 = pneg %p326
        $region54: #{tpu_custom_call.1} parent=11 // pred_check_branch
          %654 = sbr.rel (%p652) target = $region56
        $region55: #{tpu_custom_call.1} parent=11 // pred_region
          _
        $region56: #{tpu_custom_call.1} parent=11 // pred_fallthru
          _
        // Predicated region
        $region57: #{tpu_custom_call.1} parent=11 // pred_check
          %p655 = pneg %p347
        $region58: #{tpu_custom_call.1} parent=11 // pred_check_branch
          %657 = sbr.rel (%p655) target = $region60
        $region59: #{tpu_custom_call.1} parent=11 // pred_region
          %s659 = ssub.s32 32, 32
          %660 = vsyncadd [#allocation18], %s659
          %s661 = sshll.u32 [#allocation17], 4
          %s662 = int_to_ptr.vmem [resolvable:$true] %s661
          %667 = dma.hbm_to_vmem [thread:$0]  %s13, 32, %s662, [#allocation18], 16, 16, 1
        $region60: #{tpu_custom_call.1} parent=11 // pred_fallthru
          _
        // Predicated region
        $region61: #{tpu_custom_call.1} parent=11 // pred_check
          %p668 = pneg %p368
        $region62: #{tpu_custom_call.1} parent=11 // pred_check_branch
          %670 = sbr.rel (%p668) target = $region64
        $region63: #{tpu_custom_call.1} parent=11 // pred_region
          %s672 = ssub.s32 32, 32
          %673 = vsyncadd [#allocation18], %s672
          %s674 = sshll.u32 [#allocation19], 4
          %s675 = int_to_ptr.vmem [resolvable:$true] %s674
          %680 = dma.hbm_to_vmem [thread:$0]  %s14, 32, %s675, [#allocation18], 16, 16, 1
        $region64: #{tpu_custom_call.1} parent=11 // pred_fallthru
          _
        // Predicated region
        $region65: #{tpu_custom_call.1} parent=11 // pred_check
          %p681 = pneg %p389
        $region66: #{tpu_custom_call.1} parent=11 // pred_check_branch
          %683 = sbr.rel (%p681) target = $region68
        $region67: #{tpu_custom_call.1} parent=11 // pred_region
          %s685 = ssub.s32 32, 32
          %686 = vsyncadd [#allocation21], %s685
          %s687 = sshll.u32 [#allocation20], 4
          %s688 = int_to_ptr.vmem [resolvable:$true] %s687
          %693 = dma.hbm_to_vmem [thread:$0]  %s15, 32, %s688, [#allocation21], 16, 16, 1
        $region68: #{tpu_custom_call.1} parent=11 // pred_fallthru
          _
        // Predicated region
        $region69: #{tpu_custom_call.1} parent=11 // pred_check
          %p694 = pneg %p410
        $region70: #{tpu_custom_call.1} parent=11 // pred_check_branch
          %696 = sbr.rel (%p694) target = $region72
        $region71: #{tpu_custom_call.1} parent=11 // pred_region
          %s698 = ssub.s32 256, 256
          %699 = vsyncadd [#allocation21], %s698
          %s700 = sshll.u32 [#allocation22], 4
          %s701 = int_to_ptr.vmem [resolvable:$true] %s700
          %706 = dma.hbm_to_vmem [thread:$0]  %s16, 256, %s701, [#allocation21], 64, 64, 4
        $region72: #{tpu_custom_call.1} parent=11 // pred_fallthru
          _
        // Predicated region
        $region73: #{tpu_custom_call.1} parent=11 // pred_check
          %p707 = pneg %p431
        $region74: #{tpu_custom_call.1} parent=11 // pred_check_branch
          %709 = sbr.rel (%p707) target = $region76
        $region75: #{tpu_custom_call.1} parent=11 // pred_region
          _
        $region76: #{tpu_custom_call.1} parent=11 // pred_fallthru
          _
        // Predicated region
        $region77: #{tpu_custom_call.1} parent=11 // pred_check
          %p710 = pneg %p452
        $region78: #{tpu_custom_call.1} parent=11 // pred_check_branch
          %712 = sbr.rel (%p710) target = $region80
        $region79: #{tpu_custom_call.1} parent=11 // pred_region
          _
        $region80: #{tpu_custom_call.1} parent=11 // pred_fallthru
          _
        // Predicated region
        $region81: #{tpu_custom_call.1} parent=11 // pred_check
          %p713 = pneg %p473
        $region82: #{tpu_custom_call.1} parent=11 // pred_check_branch
          %715 = sbr.rel (%p713) target = $region84
        $region83: #{tpu_custom_call.1} parent=11 // pred_region
          _
        $region84: #{tpu_custom_call.1} parent=11 // pred_fallthru
          _
        // Predicated region
        $region85: #{tpu_custom_call.1} parent=11 // pred_check
          %p716 = pneg %p494
        $region86: #{tpu_custom_call.1} parent=11 // pred_check_branch
          %718 = sbr.rel (%p716) target = $region88
        $region87: #{tpu_custom_call.1} parent=11 // pred_region
          %s720 = ssub.s32 512, 512
          %721 = vsyncadd [#allocation24], %s720
          %s722 = sshll.u32 [#allocation23], 4
          %s723 = int_to_ptr.vmem [resolvable:$true] %s722
          %728 = dma.hbm_to_vmem [thread:$0]  %s20, 512, %s723, [#allocation24], 128, 128, 8
        $region88: #{tpu_custom_call.1} parent=11 // pred_fallthru
          _
        // Predicated region
        $region89: #{tpu_custom_call.1} parent=11 // pred_check
          %p729 = pneg %p515
        $region90: #{tpu_custom_call.1} parent=11 // pred_check_branch
          %731 = sbr.rel (%p729) target = $region92
        $region91: #{tpu_custom_call.1} parent=11 // pred_region
          _
        $region92: #{tpu_custom_call.1} parent=11 // pred_fallthru
          _
      $region12: #{tpu_custom_call.1} parent=5 // pred_fallthru
        _
      %p732 = scmp.lt.s32.totalorder %s43, 2
      // Predicated region
      $region93: #{tpu_custom_call.1} parent=5 // pred_check
        %p733 = pneg %p732
      $region94: #{tpu_custom_call.1} parent=5 // pred_check_branch
        %735 = sbr.rel (%p733) target = $region96
      $region95: #{tpu_custom_call.1} parent=5 // pred_region
        // Predicated region
        $region97: #{tpu_custom_call.1} parent=95 // pred_check
          %p736 = pneg %p63
        $region98: #{tpu_custom_call.1} parent=95 // pred_check_branch
          %738 = sbr.rel (%p736) target = $region100
        $region99: #{tpu_custom_call.1} parent=95 // pred_region
          %s739 = sand.u32 %s53, 1
          %s740 = scalar_lea.sflag [#allocation3], %s739
          %s741 = sand.u32 %s53, 1
          %s742 = smul.addr %s741, 8
          %s743 = scalar_lea.vmem [#allocation2], %s742
          %s745 = ssub.s32 128, 128
          %746 = vsyncadd %s740, %s745
          %s747 = smul.addr %s43, 128
          %s748 = scalar_lea.hbm %s0, %s747
          %s750 = sshll.u32 %s743, 4
          %s751 = int_to_ptr.vmem [resolvable:$true] %s750
          %753 = dma.hbm_to_vmem [thread:$0]  %s748, 128, %s751, %s740
        $region100: #{tpu_custom_call.1} parent=95 // pred_fallthru
          _
        // Predicated region
        $region101: #{tpu_custom_call.1} parent=95 // pred_check
          %p754 = pneg %p89
        $region102: #{tpu_custom_call.1} parent=95 // pred_check_branch
          %756 = sbr.rel (%p754) target = $region104
        $region103: #{tpu_custom_call.1} parent=95 // pred_region
          %s757 = sand.u32 %s43, 1
          %s758 = scalar_lea.sflag [#allocation6], %s757
          %s759 = sand.u32 %s79, 1
          %s760 = scalar_lea.vmem [#allocation5], %s759
          %s762 = ssub.s32 16, 16
          %763 = vsyncadd %s758, %s762
          %s764 = smul.addr %s43, 16
          %s765 = scalar_lea.hbm %s1, %s764
          %s767 = sshll.u32 %s760, 4
          %s768 = int_to_ptr.vmem [resolvable:$true] %s767
          %770 = dma.hbm_to_vmem [thread:$0]  %s765, 16, %s768, %s758
        $region104: #{tpu_custom_call.1} parent=95 // pred_fallthru
          _
      $region96: #{tpu_custom_call.1} parent=5 // pred_fallthru
        _
      %p771 = scmp.le.s32.totalorder 1, %s43
      %p772 = scmp.lt.s32.totalorder %s43, 3
      %p773 = pnand %p771, %p772
      %p774 = pneg %p773
      // Predicated region
      $region105: #{tpu_custom_call.1} parent=5 // pred_check
        _
      $region106: #{tpu_custom_call.1} parent=5 // pred_check_branch
        %776 = sbr.rel (%p773) target = $region108
      $region107: #{tpu_custom_call.1} parent=5 // pred_region
        %s777 = ssub.s32 %s43, 1
        %s778 = sand.u32 %s56, 1
        %s779 = scalar_lea.sflag [#allocation3], %s778
        %s780 = sand.u32 %s56, 1
        %s781 = smul.addr %s780, 8
        %s782 = scalar_lea.vmem [#allocation2], %s781
        // Predicated region
        $region109: #{tpu_custom_call.1} parent=107 // pred_check
          %p783 = pneg %p69
        $region110: #{tpu_custom_call.1} parent=107 // pred_check_branch
          %785 = sbr.rel (%p783) target = $region112
        $region111: #{tpu_custom_call.1} parent=107 // pred_region
          %786 = dma.done %s779, 128
        $region112: #{tpu_custom_call.1} parent=107 // pred_fallthru
          _
        %s787 = sand.u32 %s48, 1
        %s788 = scalar_lea.sflag [#allocation6], %s787
        %s789 = sand.u32 %s82, 1
        %s790 = scalar_lea.vmem [#allocation5], %s789
        // Predicated region
        $region113: #{tpu_custom_call.1} parent=107 // pred_check
          %p791 = pneg %p95
        $region114: #{tpu_custom_call.1} parent=107 // pred_check_branch
          %793 = sbr.rel (%p791) target = $region116
        $region115: #{tpu_custom_call.1} parent=107 // pred_region
          %794 = dma.done %s788, 16
        $region116: #{tpu_custom_call.1} parent=107 // pred_fallthru
          _
        // Predicated region
        $region117: #{tpu_custom_call.1} parent=107 // pred_check
          %p795 = pneg %p116
        $region118: #{tpu_custom_call.1} parent=107 // pred_check_branch
          %797 = sbr.rel (%p795) target = $region120
        $region119: #{tpu_custom_call.1} parent=107 // pred_region
          %798 = dma.done [#allocation6], 16
        $region120: #{tpu_custom_call.1} parent=107 // pred_fallthru
          _
        // Predicated region
        $region121: #{tpu_custom_call.1} parent=107 // pred_check
          %p799 = pneg %p137
        $region122: #{tpu_custom_call.1} parent=107 // pred_check_branch
          %801 = sbr.rel (%p799) target = $region124
        $region123: #{tpu_custom_call.1} parent=107 // pred_region
          %802 = dma.done [#allocation9], 16
        $region124: #{tpu_custom_call.1} parent=107 // pred_fallthru
          _
        // Predicated region
        $region125: #{tpu_custom_call.1} parent=107 // pred_check
          %p803 = pneg %p179
        $region126: #{tpu_custom_call.1} parent=107 // pred_check_branch
          %805 = sbr.rel (%p803) target = $region128
        $region127: #{tpu_custom_call.1} parent=107 // pred_region
          %806 = dma.done [#allocation9], 32
        $region128: #{tpu_custom_call.1} parent=107 // pred_fallthru
          _
        // Predicated region
        $region129: #{tpu_custom_call.1} parent=107 // pred_check
          %p807 = pneg %p221
        $region130: #{tpu_custom_call.1} parent=107 // pred_check_branch
          %809 = sbr.rel (%p807) target = $region132
        $region131: #{tpu_custom_call.1} parent=107 // pred_region
          %810 = dma.done [#allocation12], 32
        $region132: #{tpu_custom_call.1} parent=107 // pred_fallthru
          _
        // Predicated region
        $region133: #{tpu_custom_call.1} parent=107 // pred_check
          %p811 = pneg %p242
        $region134: #{tpu_custom_call.1} parent=107 // pred_check_branch
          %813 = sbr.rel (%p811) target = $region136
        $region135: #{tpu_custom_call.1} parent=107 // pred_region
          %814 = dma.done [#allocation12], 32
        $region136: #{tpu_custom_call.1} parent=107 // pred_fallthru
          _
        // Predicated region
        $region137: #{tpu_custom_call.1} parent=107 // pred_check
          %p815 = pneg %p263
        $region138: #{tpu_custom_call.1} parent=107 // pred_check_branch
          %817 = sbr.rel (%p815) target = $region140
        $region139: #{tpu_custom_call.1} parent=107 // pred_region
          %818 = dma.done [#allocation15], 32
        $region140: #{tpu_custom_call.1} parent=107 // pred_fallthru
          _
        // Predicated region
        $region141: #{tpu_custom_call.1} parent=107 // pred_check
          %p819 = pneg %p305
        $region142: #{tpu_custom_call.1} parent=107 // pred_check_branch
          %821 = sbr.rel (%p819) target = $region144
        $region143: #{tpu_custom_call.1} parent=107 // pred_region
          %822 = dma.done [#allocation15], 32
        $region144: #{tpu_custom_call.1} parent=107 // pred_fallthru
          _
        // Predicated region
        $region145: #{tpu_custom_call.1} parent=107 // pred_check
          %p823 = pneg %p347
        $region146: #{tpu_custom_call.1} parent=107 // pred_check_branch
          %825 = sbr.rel (%p823) target = $region148
        $region147: #{tpu_custom_call.1} parent=107 // pred_region
          %826 = dma.done [#allocation18], 32
        $region148: #{tpu_custom_call.1} parent=107 // pred_fallthru
          _
        // Predicated region
        $region149: #{tpu_custom_call.1} parent=107 // pred_check
          %p827 = pneg %p368
        $region150: #{tpu_custom_call.1} parent=107 // pred_check_branch
          %829 = sbr.rel (%p827) target = $region152
        $region151: #{tpu_custom_call.1} parent=107 // pred_region
          %830 = dma.done [#allocation18], 32
        $region152: #{tpu_custom_call.1} parent=107 // pred_fallthru
          _
        // Predicated region
        $region153: #{tpu_custom_call.1} parent=107 // pred_check
          %p831 = pneg %p389
        $region154: #{tpu_custom_call.1} parent=107 // pred_check_branch
          %833 = sbr.rel (%p831) target = $region156
        $region155: #{tpu_custom_call.1} parent=107 // pred_region
          %834 = dma.done [#allocation21], 32
        $region156: #{tpu_custom_call.1} parent=107 // pred_fallthru
          _
        // Predicated region
        $region157: #{tpu_custom_call.1} parent=107 // pred_check
          %p835 = pneg %p410
        $region158: #{tpu_custom_call.1} parent=107 // pred_check_branch
          %837 = sbr.rel (%p835) target = $region160
        $region159: #{tpu_custom_call.1} parent=107 // pred_region
          %838 = dma.done [#allocation21], 256
        $region160: #{tpu_custom_call.1} parent=107 // pred_fallthru
          _
        // Predicated region
        $region161: #{tpu_custom_call.1} parent=107 // pred_check
          %p839 = pneg %p494
        $region162: #{tpu_custom_call.1} parent=107 // pred_check_branch
          %841 = sbr.rel (%p839) target = $region164
        $region163: #{tpu_custom_call.1} parent=107 // pred_region
          %842 = dma.done [#allocation24], 512
        $region164: #{tpu_custom_call.1} parent=107 // pred_fallthru
          _
        %s843 = sand.u32 %s56, 1
        %s844 = scalar_lea.sflag [#allocation3], %s843
        %s845 = sand.u32 %s56, 1
        %s846 = smul.addr %s845, 8
        %s847 = scalar_lea.vmem [#allocation2], %s846
        %p848 = pneg %p69
        %p849 = pneg %p66
        %s850 = sand.u32 %s48, 1
        %s851 = scalar_lea.sflag [#allocation6], %s850
        %s852 = sand.u32 %s82, 1
        %s853 = scalar_lea.vmem [#allocation5], %s852
        %p854 = pneg %p95
        %p855 = pneg %p92
        %p856 = pneg %p116
        %p857 = pneg %p113
        %p858 = pneg %p137
        %p859 = pneg %p134
        %p860 = pneg %p158
        %p861 = pneg %p155
        %p862 = pneg %p179
        %p863 = pneg %p176
        %p864 = pneg %p200
        %p865 = pneg %p197
        %p866 = pneg %p221
        %p867 = pneg %p218
        %p868 = pneg %p242
        %p869 = pneg %p239
        %p870 = pneg %p263
        %p871 = pneg %p260
        %p872 = pneg %p284
        %p873 = pneg %p281
        %p874 = pneg %p305
        %p875 = pneg %p302
        %p876 = pneg %p326
        %p877 = pneg %p323
        %p878 = pneg %p347
        %p879 = pneg %p344
        %p880 = pneg %p368
        %p881 = pneg %p365
        %p882 = pneg %p389
        %p883 = pneg %p386
        %p884 = pneg %p410
        %p885 = pneg %p407
        %p886 = pneg %p431
        %p887 = pneg %p428
        %p888 = pneg %p452
        %p889 = pneg %p449
        %p890 = pneg %p473
        %p891 = pneg %p470
        %p892 = pneg %p494
        %p893 = pneg %p491
        %p894 = pneg %p515
        %p895 = pneg %p512
        %p896 = pneg %p541
        %p897 = pneg %p538
        %s898 = sand.u32 %s528, 1
        %s899 = scalar_lea.sflag [#allocation4], %s898
        %s900 = sand.u32 %s528, 1
        %s901 = scalar_lea.vmem [#allocation25], %s900
        %v903 = vld [vmem:[%s782] sm:$0xff]
        %v904 = vld [vmem:[#allocation7] sm:$0x1]
        %v905 = vld [vmem:[#allocation8] sm:$0x1]
        %vm906 = vcmask 261120
        %v907 = vsel %vm906, %v903, 0.0
        %908 = vadd.xlane.f32.xlu0 %v907
        %v909 = vpop.xlane.xlu0 %908
        %v910 = vrcp.pop 32.0
        %v911 = vmul.f32 %v909, %v910
        %v912 = vsub.f32 %v903, %v911
        %v913 = vmul.f32 %v912, %v912
        %v914 = vsel %vm906, %v913, 0.0
        %915 = vadd.xlane.f32.xlu0 %v914
        %v916 = vpop.xlane.xlu0 %915
        %v917 = vmul.f32 %v916, %v910
        %v918 = vadd.f32 %v917, 1e-12
        %v919 = vrsqrt.pop %v918
        %v920 = vmul.f32 %v912, %v919
        %v922 = vlaneseq
        %v923 = vshrl.u32 %v922, 7
        %v924 = vsub.s32 0, %v923
        %v925 = vrot.slane %v904, %v924
        %v927 = vmul.f32 %v920, %v925
        %v929 = vlaneseq
        %v930 = vshrl.u32 %v929, 7
        %v931 = vsub.s32 0, %v930
        %v932 = vrot.slane %v905, %v931
        %v934 = vadd.f32 %v927, %v932
        %v935 = vld [vmem:[%s790] sm:$0x1]
        %v936 = vpack.c.bf16 %v934, %v934
        %v937 = vld [vmem:[%s4] sm:$0xf]
        %v938 = vld [vmem:[%s4 + $0x4] sm:$0xf]
        %v939 = vld [vmem:[%s4 + $0x8] sm:$0xf]
        %v940 = vld [vmem:[%s4 + $0xc] sm:$0xf]
        %v941 = vld [vmem:[#allocation10] sm:$0x1]
        %v943 = vlaneseq
        %v944 = vshrl.u32 %v943, 7
        %v945 = vsub.s32 0, %v944
        %v946 = vrot.slane %v941, %v945
        %v952 = vunpack.c.l.b16 %v937
        %v953 = vunpack.c.l.b16 %v938
        %v954 = vunpack.c.l.b16 %v939
        %v955 = vunpack.c.l.b16 %v940
        %v956 = vpack.c.b16 %v953, %v952
        %v957 = vpack.c.b16 %v955, %v954
        %v961 = vsel %vm906, %v936, 0
        %963 = vmatprep.subr.bf16.mxu0 0
        %964 = vmatpush1.bf16.msra.mxu0 %v956
        %965 = vmatprep.subr.bf16.mxu0 0
        %966 = vmatpush1.bf16.msra.mxu0 %v957
        %967 = vmatprep.subr.bf16.mxu0 0
        %968 = vmatpush1.bf16.msra.mxu0 0
        %969 = vmatprep.subr.bf16.mxu0 0
        %970 = vmatpush1.bf16.msra.mxu0 0
        %971 = vmatprep.subr.bf16.mxu0 0
        %972 = vmatpush1.bf16.msra.mxu0 0
        %973 = vmatprep.subr.bf16.mxu0 0
        %974 = vmatpush1.bf16.msra.mxu0 0
        %975 = vmatprep.subr.bf16.mxu0 0
        %976 = vmatpush1.bf16.msra.mxu0 0
        %977 = vmatprep.subr.bf16.mxu0 0
        %978 = vmatpush1.bf16.msra.mxu0 0
        %979 = vmatprep.subr.bf16.mxu0 0
        %980 = vmatpush1.bf16.msra.mxu0 0
        %981 = vmatprep.subr.bf16.mxu0 0
        %982 = vmatpush1.bf16.msra.mxu0 0
        %983 = vmatprep.subr.bf16.mxu0 0
        %984 = vmatpush1.bf16.msra.mxu0 0
        %985 = vmatprep.subr.bf16.mxu0 0
        %986 = vmatpush1.bf16.msra.mxu0 0
        %987 = vmatprep.subr.bf16.mxu0 0
        %988 = vmatpush1.bf16.msra.mxu0 0
        %989 = vmatprep.subr.bf16.mxu0 0
        %990 = vmatpush1.bf16.msra.mxu0 0
        %991 = vmatprep.subr.bf16.mxu0 0
        %992 = vmatpush1.bf16.msra.mxu0 0
        %993 = vmatprep.subr.bf16.mxu0 0
        %994 = vmatpush1.bf16.msra.mxu0 0
        %995 = vmatprep.mubr.bf16.mxu0 0
        %996 = vmatmul.mubr.bf16.gmra.mrb[0].mxu0 %v961
        %v997 = vpop.f32.mrb[0].mxu0
        %v998 = vadd.f32 %v946, %v997
        %v999 = vpop.f32.mrb[0].mxu0
        %v1000 = vpop.f32.mrb[0].mxu0
        %v1001 = vpop.f32.mrb[0].mxu0
        %1002 = vdwg.mxu0
        %v1003 = vpack.c.bf16 %v998, %v998
        %v1005 = vlaneseq
        %v1006 = vshrl.u32 %v1005, 7
        %v1007 = vsub.s32 0, %v1006
        %v1008 = vrot.slane %v935, %v1007
        %1011 = vrot.lane.b32.xlu0 %v1003, 96
        %v1012 = vpop.permute.xlu0 %1011
        %vm1013 = vcmask 130048
        %v1015 = vsel %vm1013, %v1003, 0
        %v1018 = vsel %vm1013, %v1012, 0
        %1020 = vmatprep.subr.bf16.mxu0 0
        %1021 = vmatpush1.bf16.xpose.msra.mxu0 %v1018
        %1022 = vmatprep.subr.bf16.mxu0 0
        %1023 = vmatpush1.bf16.xpose.msra.mxu0 0
        %1024 = vmatprep.subr.bf16.mxu0 0
        %1025 = vmatpush1.bf16.xpose.msra.mxu0 0
        %1026 = vmatprep.subr.bf16.mxu0 0
        %1027 = vmatpush1.bf16.xpose.msra.mxu0 0
        %1028 = vmatprep.subr.bf16.mxu0 0
        %1029 = vmatpush1.bf16.xpose.msra.mxu0 0
        %1030 = vmatprep.subr.bf16.mxu0 0
        %1031 = vmatpush1.bf16.xpose.msra.mxu0 0
        %1032 = vmatprep.subr.bf16.mxu0 0
        %1033 = vmatpush1.bf16.xpose.msra.mxu0 0
        %1034 = vmatprep.subr.bf16.mxu0 0
        %1035 = vmatpush1.bf16.xpose.msra.mxu0 0
        %1036 = vmatprep.subr.bf16.mxu0 0
        %1037 = vmatpush1.bf16.xpose.msra.mxu0 0
        %1038 = vmatprep.subr.bf16.mxu0 0
        %1039 = vmatpush1.bf16.xpose.msra.mxu0 0
        %1040 = vmatprep.subr.bf16.mxu0 0
        %1041 = vmatpush1.bf16.xpose.msra.mxu0 0
        %1042 = vmatprep.subr.bf16.mxu0 0
        %1043 = vmatpush1.bf16.xpose.msra.mxu0 0
        %1044 = vmatprep.subr.bf16.mxu0 0
        %1045 = vmatpush1.bf16.xpose.msra.mxu0 0
        %1046 = vmatprep.subr.bf16.mxu0 0
        %1047 = vmatpush1.bf16.xpose.msra.mxu0 0
        %1048 = vmatprep.subr.bf16.mxu0 0
        %1049 = vmatpush1.bf16.xpose.msra.mxu0 0
        %1050 = vmatprep.subr.bf16.mxu0 0
        %1051 = vmatpush1.bf16.xpose.msra.mxu0 0
        %1052 = vmatprep.mubr.bf16.mxu0 0
        %1053 = vmatmul.mubr.bf16.gmra.mrb[0].mxu0 %v1015
        %v1054 = vpop.f32.mrb[0].mxu0
        %v1055 = vadd.f32 %v1008, %v1054
        %v1056 = vpop.f32.mrb[0].mxu0
        %v1057 = vpop.f32.mrb[0].mxu0
        %v1058 = vpop.f32.mrb[0].mxu0
        %1059 = vdwg.mxu0
        %vm1060 = vcmask 64512
        %v1061 = vsel %vm1060, %v1055, -inf
        %1062 = vmax.xlane.f32.xlu0 %v1061
        %v1063 = vpop.xlane.xlu0 %1062
        %v1064 = vsub.f32 %v1055, %v1063
        %v1065 = vmul.f32 %v1064, 1.442695
        %v1066 = vpow.pop %v1065
        %v1067 = vsel %vm1060, %v1066, 0.0
        %1068 = vadd.xlane.f32.xlu0 %v1067
        %v1069 = vpop.xlane.xlu0 %1068
        %v1070 = vrcp.pop %v1069
        %v1071 = vmul.f32 %v1066, %v1070
        %v1072 = vpack.c.bf16 %v1071, %v1071
        %1073 = vrot.lane.b32.xlu0 %v1003, 64
        %v1074 = vpop.permute.xlu0 %1073
        %v1076 = vsel %vm1060, %v1072, 0
        %vm1078 = vcmask 1043456
        %v1080 = vsel %vm1078, %v1074, 0
        %1082 = vmatprep.subr.bf16.mxu0 0
        %1083 = vmatpush1.bf16.msra.mxu0 %v1080
        %1084 = vmatprep.subr.bf16.mxu0 0
        %1085 = vmatpush1.bf16.msra.mxu0 0
        %1086 = vmatprep.subr.bf16.mxu0 0
        %1087 = vmatpush1.bf16.msra.mxu0 0
        %1088 = vmatprep.subr.bf16.mxu0 0
        %1089 = vmatpush1.bf16.msra.mxu0 0
        %1090 = vmatprep.subr.bf16.mxu0 0
        %1091 = vmatpush1.bf16.msra.mxu0 0
        %1092 = vmatprep.subr.bf16.mxu0 0
        %1093 = vmatpush1.bf16.msra.mxu0 0
        %1094 = vmatprep.subr.bf16.mxu0 0
        %1095 = vmatpush1.bf16.msra.mxu0 0
        %1096 = vmatprep.subr.bf16.mxu0 0
        %1097 = vmatpush1.bf16.msra.mxu0 0
        %1098 = vmatprep.subr.bf16.mxu0 0
        %1099 = vmatpush1.bf16.msra.mxu0 0
        %1100 = vmatprep.subr.bf16.mxu0 0
        %1101 = vmatpush1.bf16.msra.mxu0 0
        %1102 = vmatprep.subr.bf16.mxu0 0
        %1103 = vmatpush1.bf16.msra.mxu0 0
        %1104 = vmatprep.subr.bf16.mxu0 0
        %1105 = vmatpush1.bf16.msra.mxu0 0
        %1106 = vmatprep.subr.bf16.mxu0 0
        %1107 = vmatpush1.bf16.msra.mxu0 0
        %1108 = vmatprep.subr.bf16.mxu0 0
        %1109 = vmatpush1.bf16.msra.mxu0 0
        %1110 = vmatprep.subr.bf16.mxu0 0
        %1111 = vmatpush1.bf16.msra.mxu0 0
        %1112 = vmatprep.subr.bf16.mxu0 0
        %1113 = vmatpush1.bf16.msra.mxu0 0
        %1114 = vmatprep.mubr.bf16.mxu0 0
        %1115 = vmatmul.mubr.bf16.gmra.mrb[0].mxu0 %v1076
        %v1116 = vpop.f32.mrb[0].mxu0
        %v1117 = vadd.f32 0.0, %v1116
        %v1118 = vpop.f32.mrb[0].mxu0
        %v1119 = vpop.f32.mrb[0].mxu0
        %v1120 = vpop.f32.mrb[0].mxu0
        %1121 = vdwg.mxu0
        %1122 = vrot.lane.b32.xlu0 %v1003, 112
        %v1123 = vpop.permute.xlu0 %1122
        %1124 = vrot.lane.b32.xlu0 %v1003, 80
        %v1125 = vpop.permute.xlu0 %1124
        %v1127 = vsel %vm1013, %v1123, 0
        %v1130 = vsel %vm1013, %v1125, 0
        %1132 = vmatprep.subr.bf16.mxu0 0
        %1133 = vmatpush1.bf16.xpose.msra.mxu0 %v1130
        %1134 = vmatprep.subr.bf16.mxu0 0
        %1135 = vmatpush1.bf16.xpose.msra.mxu0 0
        %1136 = vmatprep.subr.bf16.mxu0 0
        %1137 = vmatpush1.bf16.xpose.msra.mxu0 0
        %1138 = vmatprep.subr.bf16.mxu0 0
        %1139 = vmatpush1.bf16.xpose.msra.mxu0 0
        %1140 = vmatprep.subr.bf16.mxu0 0
        %1141 = vmatpush1.bf16.xpose.msra.mxu0 0
        %1142 = vmatprep.subr.bf16.mxu0 0
        %1143 = vmatpush1.bf16.xpose.msra.mxu0 0
        %1144 = vmatprep.subr.bf16.mxu0 0
        %1145 = vmatpush1.bf16.xpose.msra.mxu0 0
        %1146 = vmatprep.subr.bf16.mxu0 0
        %1147 = vmatpush1.bf16.xpose.msra.mxu0 0
        %1148 = vmatprep.subr.bf16.mxu0 0
        %1149 = vmatpush1.bf16.xpose.msra.mxu0 0
        %1150 = vmatprep.subr.bf16.mxu0 0
        %1151 = vmatpush1.bf16.xpose.msra.mxu0 0
        %1152 = vmatprep.subr.bf16.mxu0 0
        %1153 = vmatpush1.bf16.xpose.msra.mxu0 0
        %1154 = vmatprep.subr.bf16.mxu0 0
        %1155 = vmatpush1.bf16.xpose.msra.mxu0 0
        %1156 = vmatprep.subr.bf16.mxu0 0
        %1157 = vmatpush1.bf16.xpose.msra.mxu0 0
        %1158 = vmatprep.subr.bf16.mxu0 0
        %1159 = vmatpush1.bf16.xpose.msra.mxu0 0
        %1160 = vmatprep.subr.bf16.mxu0 0
        %1161 = vmatpush1.bf16.xpose.msra.mxu0 0
        %1162 = vmatprep.subr.bf16.mxu0 0
        %1163 = vmatpush1.bf16.xpose.msra.mxu0 0
        %1164 = vmatprep.mubr.bf16.mxu0 0
        %1165 = vmatmul.mubr.bf16.gmra.mrb[0].mxu0 %v1127
        %v1166 = vpop.f32.mrb[0].mxu0
        %v1167 = vadd.f32 %v1008, %v1166
        %v1168 = vpop.f32.mrb[0].mxu0
        %v1169 = vpop.f32.mrb[0].mxu0
        %v1170 = vpop.f32.mrb[0].mxu0
        %1171 = vdwg.mxu0
        %v1172 = vsel %vm1060, %v1167, -inf
        %1173 = vmax.xlane.f32.xlu0 %v1172
        %v1174 = vpop.xlane.xlu0 %1173
        %v1175 = vsub.f32 %v1167, %v1174
        %v1176 = vmul.f32 %v1175, 1.442695
        %v1177 = vpow.pop %v1176
        %v1178 = vsel %vm1060, %v1177, 0.0
        %1179 = vadd.xlane.f32.xlu0 %v1178
        %v1180 = vpop.xlane.xlu0 %1179
        %v1181 = vrcp.pop %v1180
        %v1182 = vmul.f32 %v1177, %v1181
        %v1183 = vpack.c.bf16 %v1182, %v1182
        %1184 = vrot.lane.b32.xlu0 %v1003, 48
        %v1185 = vpop.permute.xlu0 %1184
        %v1187 = vsel %vm1060, %v1183, 0
        %v1190 = vsel %vm1078, %v1185, 0
        %1192 = vmatprep.subr.bf16.mxu0 0
        %1193 = vmatpush1.bf16.msra.mxu0 %v1190
        %1194 = vmatprep.subr.bf16.mxu0 0
        %1195 = vmatpush1.bf16.msra.mxu0 0
        %1196 = vmatprep.subr.bf16.mxu0 0
        %1197 = vmatpush1.bf16.msra.mxu0 0
        %1198 = vmatprep.subr.bf16.mxu0 0
        %1199 = vmatpush1.bf16.msra.mxu0 0
        %1200 = vmatprep.subr.bf16.mxu0 0
        %1201 = vmatpush1.bf16.msra.mxu0 0
        %1202 = vmatprep.subr.bf16.mxu0 0
        %1203 = vmatpush1.bf16.msra.mxu0 0
        %1204 = vmatprep.subr.bf16.mxu0 0
        %1205 = vmatpush1.bf16.msra.mxu0 0
        %1206 = vmatprep.subr.bf16.mxu0 0
        %1207 = vmatpush1.bf16.msra.mxu0 0
        %1208 = vmatprep.subr.bf16.mxu0 0
        %1209 = vmatpush1.bf16.msra.mxu0 0
        %1210 = vmatprep.subr.bf16.mxu0 0
        %1211 = vmatpush1.bf16.msra.mxu0 0
        %1212 = vmatprep.subr.bf16.mxu0 0
        %1213 = vmatpush1.bf16.msra.mxu0 0
        %1214 = vmatprep.subr.bf16.mxu0 0
        %1215 = vmatpush1.bf16.msra.mxu0 0
        %1216 = vmatprep.subr.bf16.mxu0 0
        %1217 = vmatpush1.bf16.msra.mxu0 0
        %1218 = vmatprep.subr.bf16.mxu0 0
        %1219 = vmatpush1.bf16.msra.mxu0 0
        %1220 = vmatprep.subr.bf16.mxu0 0
        %1221 = vmatpush1.bf16.msra.mxu0 0
        %1222 = vmatprep.subr.bf16.mxu0 0
        %1223 = vmatpush1.bf16.msra.mxu0 0
        %1224 = vmatprep.mubr.bf16.mxu0 0
        %1225 = vmatmul.mubr.bf16.gmra.mrb[0].mxu0 %v1187
        %v1226 = vpop.f32.mrb[0].mxu0
        %v1227 = vadd.f32 0.0, %v1226
        %v1228 = vpop.f32.mrb[0].mxu0
        %v1229 = vpop.f32.mrb[0].mxu0
        %v1230 = vpop.f32.mrb[0].mxu0
        %1231 = vdwg.mxu0
        %1233 = vrot.lane.b32.xlu0 %v1227, 16
        %v1234 = vpop.permute.xlu0 %1233
        %v1236 = vsel %vm1013, %v1117, %v1234
        %v1237 = vpack.c.bf16 %v1236, %v1236
        %v1238 = vld [vmem:[%s6] sm:$0xf]
        %v1239 = vld [vmem:[%s6 + $0x4] sm:$0xf]
        %v1240 = vld [vmem:[%s6 + $0x8] sm:$0xf]
        %v1241 = vld [vmem:[%s6 + $0xc] sm:$0xf]
        %v1242 = vld [vmem:[#allocation11] sm:$0x1]
        %v1244 = vlaneseq
        %v1245 = vshrl.u32 %v1244, 7
        %v1246 = vsub.s32 0, %v1245
        %v1247 = vrot.slane %v1242, %v1246
        %v1253 = vunpack.c.l.b16 %v1238
        %v1254 = vunpack.c.l.b16 %v1239
        %v1255 = vunpack.c.l.b16 %v1240
        %v1256 = vunpack.c.l.b16 %v1241
        %v1257 = vpack.c.b16 %v1254, %v1253
        %v1258 = vpack.c.b16 %v1256, %v1255
        %v1262 = vsel %vm906, %v1237, 0
        %1264 = vmatprep.subr.bf16.mxu0 0
        %1265 = vmatpush1.bf16.msra.mxu0 %v1257
        %1266 = vmatprep.subr.bf16.mxu0 0
        %1267 = vmatpush1.bf16.msra.mxu0 %v1258
        %1268 = vmatprep.subr.bf16.mxu0 0
        %1269 = vmatpush1.bf16.msra.mxu0 0
        %1270 = vmatprep.subr.bf16.mxu0 0
        %1271 = vmatpush1.bf16.msra.mxu0 0
        %1272 = vmatprep.subr.bf16.mxu0 0
        %1273 = vmatpush1.bf16.msra.mxu0 0
        %1274 = vmatprep.subr.bf16.mxu0 0
        %1275 = vmatpush1.bf16.msra.mxu0 0
        %1276 = vmatprep.subr.bf16.mxu0 0
        %1277 = vmatpush1.bf16.msra.mxu0 0
        %1278 = vmatprep.subr.bf16.mxu0 0
        %1279 = vmatpush1.bf16.msra.mxu0 0
        %1280 = vmatprep.subr.bf16.mxu0 0
        %1281 = vmatpush1.bf16.msra.mxu0 0
        %1282 = vmatprep.subr.bf16.mxu0 0
        %1283 = vmatpush1.bf16.msra.mxu0 0
        %1284 = vmatprep.subr.bf16.mxu0 0
        %1285 = vmatpush1.bf16.msra.mxu0 0
        %1286 = vmatprep.subr.bf16.mxu0 0
        %1287 = vmatpush1.bf16.msra.mxu0 0
        %1288 = vmatprep.subr.bf16.mxu0 0
        %1289 = vmatpush1.bf16.msra.mxu0 0
        %1290 = vmatprep.subr.bf16.mxu0 0
        %1291 = vmatpush1.bf16.msra.mxu0 0
        %1292 = vmatprep.subr.bf16.mxu0 0
        %1293 = vmatpush1.bf16.msra.mxu0 0
        %1294 = vmatprep.subr.bf16.mxu0 0
        %1295 = vmatpush1.bf16.msra.mxu0 0
        %1296 = vmatprep.mubr.bf16.mxu0 0
        %1297 = vmatmul.mubr.bf16.gmra.mrb[0].mxu0 %v1262
        %v1298 = vpop.f32.mrb[0].mxu0
        %v1299 = vadd.f32 %v1247, %v1298
        %v1300 = vpop.f32.mrb[0].mxu0
        %v1301 = vpop.f32.mrb[0].mxu0
        %v1302 = vpop.f32.mrb[0].mxu0
        %1303 = vdwg.mxu0
        %v1304 = vadd.f32 %v1299, %v934
        %v1305 = vld [vmem:[#allocation13] sm:$0x1]
        %v1306 = vld [vmem:[#allocation14] sm:$0x1]
        %v1307 = vsel %vm906, %v1304, 0.0
        %1308 = vadd.xlane.f32.xlu0 %v1307
        %v1309 = vpop.xlane.xlu0 %1308
        %v1310 = vmul.f32 %v1309, %v910
        %v1311 = vsub.f32 %v1304, %v1310
        %v1312 = vmul.f32 %v1311, %v1311
        %v1313 = vsel %vm906, %v1312, 0.0
        %1314 = vadd.xlane.f32.xlu0 %v1313
        %v1315 = vpop.xlane.xlu0 %1314
        %v1316 = vmul.f32 %v1315, %v910
        %v1317 = vadd.f32 %v1316, 1e-12
        %v1318 = vrsqrt.pop %v1317
        %v1319 = vmul.f32 %v1311, %v1318
        %v1321 = vlaneseq
        %v1322 = vshrl.u32 %v1321, 7
        %v1323 = vsub.s32 0, %v1322
        %v1324 = vrot.slane %v1305, %v1323
        %v1326 = vmul.f32 %v1319, %v1324
        %v1328 = vlaneseq
        %v1329 = vshrl.u32 %v1328, 7
        %v1330 = vsub.s32 0, %v1329
        %v1331 = vrot.slane %v1306, %v1330
        %v1333 = vadd.f32 %v1326, %v1331
        %v1334 = vpack.c.bf16 %v1333, %v1333
        %v1335 = vld [vmem:[%s10] sm:$0xf]
        %v1336 = vld [vmem:[%s10 + $0x4] sm:$0xf]
        %v1337 = vld [vmem:[%s10 + $0x8] sm:$0xf]
        %v1338 = vld [vmem:[%s10 + $0xc] sm:$0xf]
        %v1339 = vld [vmem:[#allocation16] sm:$0x1]
        %v1341 = vlaneseq
        %v1342 = vshrl.u32 %v1341, 7
        %v1343 = vsub.s32 0, %v1342
        %v1344 = vrot.slane %v1339, %v1343
        %v1350 = vunpack.c.l.b16 %v1335
        %v1351 = vunpack.c.l.b16 %v1336
        %v1352 = vunpack.c.l.b16 %v1337
        %v1353 = vunpack.c.l.b16 %v1338
        %v1354 = vpack.c.b16 %v1351, %v1350
        %v1355 = vpack.c.b16 %v1353, %v1352
        %v1359 = vsel %vm906, %v1334, 0
        %1361 = vmatprep.subr.bf16.mxu0 0
        %1362 = vmatpush1.bf16.msra.mxu0 %v1354
        %1363 = vmatprep.subr.bf16.mxu0 0
        %1364 = vmatpush1.bf16.msra.mxu0 %v1355
        %1365 = vmatprep.subr.bf16.mxu0 0
        %1366 = vmatpush1.bf16.msra.mxu0 0
        %1367 = vmatprep.subr.bf16.mxu0 0
        %1368 = vmatpush1.bf16.msra.mxu0 0
        %1369 = vmatprep.subr.bf16.mxu0 0
        %1370 = vmatpush1.bf16.msra.mxu0 0
        %1371 = vmatprep.subr.bf16.mxu0 0
        %1372 = vmatpush1.bf16.msra.mxu0 0
        %1373 = vmatprep.subr.bf16.mxu0 0
        %1374 = vmatpush1.bf16.msra.mxu0 0
        %1375 = vmatprep.subr.bf16.mxu0 0
        %1376 = vmatpush1.bf16.msra.mxu0 0
        %1377 = vmatprep.subr.bf16.mxu0 0
        %1378 = vmatpush1.bf16.msra.mxu0 0
        %1379 = vmatprep.subr.bf16.mxu0 0
        %1380 = vmatpush1.bf16.msra.mxu0 0
        %1381 = vmatprep.subr.bf16.mxu0 0
        %1382 = vmatpush1.bf16.msra.mxu0 0
        %1383 = vmatprep.subr.bf16.mxu0 0
        %1384 = vmatpush1.bf16.msra.mxu0 0
        %1385 = vmatprep.subr.bf16.mxu0 0
        %1386 = vmatpush1.bf16.msra.mxu0 0
        %1387 = vmatprep.subr.bf16.mxu0 0
        %1388 = vmatpush1.bf16.msra.mxu0 0
        %1389 = vmatprep.subr.bf16.mxu0 0
        %1390 = vmatpush1.bf16.msra.mxu0 0
        %1391 = vmatprep.subr.bf16.mxu0 0
        %1392 = vmatpush1.bf16.msra.mxu0 0
        %1393 = vmatprep.mubr.bf16.mxu0 0
        %1394 = vmatmul.mubr.bf16.gmra.mrb[0].mxu0 %v1359
        %v1395 = vpop.f32.mrb[0].mxu0
        %v1396 = vadd.f32 %v1344, %v1395
        %v1397 = vpop.f32.mrb[0].mxu0
        %v1398 = vpop.f32.mrb[0].mxu0
        %v1399 = vpop.f32.mrb[0].mxu0
        %1400 = vdwg.mxu0
        %v1401 = vmul.f32 %v1396, %v1396
        %v1402 = vmul.f32 %v1396, %v1401
        %v1403 = vmul.f32 %v1402, 0.044715
        %v1404 = vadd.f32 %v1396, %v1403
        %v1405 = vmul.f32 %v1404, 0.7978846
        %v1406 = vtanh.pop %v1405
        %v1407 = vadd.f32 %v1406, 1.0
        %v1408 = vmul.f32 %v1407, 0.5
        %v1409 = vmul.f32 %v1396, %v1408
        %v1410 = vpack.c.bf16 %v1409, %v1409
        %v1411 = vld [vmem:[%s12] sm:$0xf]
        %v1412 = vld [vmem:[%s12 + $0x4] sm:$0xf]
        %v1413 = vld [vmem:[%s12 + $0x8] sm:$0xf]
        %v1414 = vld [vmem:[%s12 + $0xc] sm:$0xf]
        %v1415 = vld [vmem:[%s12 + $0x10] sm:$0xf]
        %v1416 = vld [vmem:[%s12 + $0x14] sm:$0xf]
        %v1417 = vld [vmem:[%s12 + $0x18] sm:$0xf]
        %v1418 = vld [vmem:[%s12 + $0x1c] sm:$0xf]
        %v1419 = vld [vmem:[#allocation17] sm:$0x1]
        %v1421 = vlaneseq
        %v1422 = vshrl.u32 %v1421, 7
        %v1423 = vsub.s32 0, %v1422
        %v1424 = vrot.slane %v1419, %v1423
        %v1434 = vunpack.c.l.b16 %v1411
        %v1435 = vunpack.c.l.b16 %v1412
        %v1436 = vunpack.c.l.b16 %v1413
        %v1437 = vunpack.c.l.b16 %v1414
        %v1438 = vunpack.c.l.b16 %v1415
        %v1439 = vunpack.c.l.b16 %v1416
        %v1440 = vunpack.c.l.b16 %v1417
        %v1441 = vunpack.c.l.b16 %v1418
        %v1442 = vpack.c.b16 %v1435, %v1434
        %v1443 = vpack.c.b16 %v1437, %v1436
        %v1444 = vpack.c.b16 %v1439, %v1438
        %v1445 = vpack.c.b16 %v1441, %v1440
        %vm1450 = vcmask 523264
        %v1452 = vsel %vm1450, %v1410, 0
        %1454 = vmatprep.subr.bf16.mxu0 0
        %1455 = vmatpush1.bf16.msra.mxu0 %v1442
        %1456 = vmatprep.subr.bf16.mxu0 0
        %1457 = vmatpush1.bf16.msra.mxu0 %v1443
        %1458 = vmatprep.subr.bf16.mxu0 0
        %1459 = vmatpush1.bf16.msra.mxu0 %v1444
        %1460 = vmatprep.subr.bf16.mxu0 0
        %1461 = vmatpush1.bf16.msra.mxu0 %v1445
        %1462 = vmatprep.subr.bf16.mxu0 0
        %1463 = vmatpush1.bf16.msra.mxu0 0
        %1464 = vmatprep.subr.bf16.mxu0 0
        %1465 = vmatpush1.bf16.msra.mxu0 0
        %1466 = vmatprep.subr.bf16.mxu0 0
        %1467 = vmatpush1.bf16.msra.mxu0 0
        %1468 = vmatprep.subr.bf16.mxu0 0
        %1469 = vmatpush1.bf16.msra.mxu0 0
        %1470 = vmatprep.subr.bf16.mxu0 0
        %1471 = vmatpush1.bf16.msra.mxu0 0
        %1472 = vmatprep.subr.bf16.mxu0 0
        %1473 = vmatpush1.bf16.msra.mxu0 0
        %1474 = vmatprep.subr.bf16.mxu0 0
        %1475 = vmatpush1.bf16.msra.mxu0 0
        %1476 = vmatprep.subr.bf16.mxu0 0
        %1477 = vmatpush1.bf16.msra.mxu0 0
        %1478 = vmatprep.subr.bf16.mxu0 0
        %1479 = vmatpush1.bf16.msra.mxu0 0
        %1480 = vmatprep.subr.bf16.mxu0 0
        %1481 = vmatpush1.bf16.msra.mxu0 0
        %1482 = vmatprep.subr.bf16.mxu0 0
        %1483 = vmatpush1.bf16.msra.mxu0 0
        %1484 = vmatprep.subr.bf16.mxu0 0
        %1485 = vmatpush1.bf16.msra.mxu0 0
        %1486 = vmatprep.mubr.bf16.mxu0 0
        %1487 = vmatmul.mubr.bf16.gmra.mrb[0].mxu0 %v1452
        %v1488 = vpop.f32.mrb[0].mxu0
        %v1489 = vadd.f32 %v1424, %v1488
        %v1490 = vpop.f32.mrb[0].mxu0
        %v1491 = vpop.f32.mrb[0].mxu0
        %v1492 = vpop.f32.mrb[0].mxu0
        %1493 = vdwg.mxu0
        %v1494 = vadd.f32 %v1489, %v1333
        %v1495 = vld [vmem:[#allocation19] sm:$0x1]
        %v1496 = vld [vmem:[#allocation20] sm:$0x1]
        %v1497 = vsel %vm906, %v1494, 0.0
        %1498 = vadd.xlane.f32.xlu0 %v1497
        %v1499 = vpop.xlane.xlu0 %1498
        %v1500 = vmul.f32 %v1499, %v910
        %v1501 = vsub.f32 %v1494, %v1500
        %v1502 = vmul.f32 %v1501, %v1501
        %v1503 = vsel %vm906, %v1502, 0.0
        %1504 = vadd.xlane.f32.xlu0 %v1503
        %v1505 = vpop.xlane.xlu0 %1504
        %v1506 = vmul.f32 %v1505, %v910
        %v1507 = vadd.f32 %v1506, 1e-12
        %v1508 = vrsqrt.pop %v1507
        %v1509 = vmul.f32 %v1501, %v1508
        %v1511 = vlaneseq
        %v1512 = vshrl.u32 %v1511, 7
        %v1513 = vsub.s32 0, %v1512
        %v1514 = vrot.slane %v1495, %v1513
        %v1516 = vmul.f32 %v1509, %v1514
        %v1518 = vlaneseq
        %v1519 = vshrl.u32 %v1518, 7
        %v1520 = vsub.s32 0, %v1519
        %v1521 = vrot.slane %v1496, %v1520
        %v1523 = vadd.f32 %v1516, %v1521
        %v1524 = vpack.c.bf16 %v1523, %v1523
        %s1525 = scalar_lea.vmem %s4, 16
        %v1526 = vld [vmem:[%s1525] sm:$0xf]
        %v1527 = vld [vmem:[%s1525 + $0x4] sm:$0xf]
        %v1528 = vld [vmem:[%s1525 + $0x8] sm:$0xf]
        %v1529 = vld [vmem:[%s1525 + $0xc] sm:$0xf]
        %s1530 = scalar_lea.vmem [#allocation10], 1
        %v1531 = vld [vmem:[%s1530] sm:$0x1]
        %v1533 = vlaneseq
        %v1534 = vshrl.u32 %v1533, 7
        %v1535 = vsub.s32 0, %v1534
        %v1536 = vrot.slane %v1531, %v1535
        %v1542 = vunpack.c.l.b16 %v1526
        %v1543 = vunpack.c.l.b16 %v1527
        %v1544 = vunpack.c.l.b16 %v1528
        %v1545 = vunpack.c.l.b16 %v1529
        %v1546 = vpack.c.b16 %v1543, %v1542
        %v1547 = vpack.c.b16 %v1545, %v1544
        %v1551 = vsel %vm906, %v1524, 0
        %1553 = vmatprep.subr.bf16.mxu0 0
        %1554 = vmatpush1.bf16.msra.mxu0 %v1546
        %1555 = vmatprep.subr.bf16.mxu0 0
        %1556 = vmatpush1.bf16.msra.mxu0 %v1547
        %1557 = vmatprep.subr.bf16.mxu0 0
        %1558 = vmatpush1.bf16.msra.mxu0 0
        %1559 = vmatprep.subr.bf16.mxu0 0
        %1560 = vmatpush1.bf16.msra.mxu0 0
        %1561 = vmatprep.subr.bf16.mxu0 0
        %1562 = vmatpush1.bf16.msra.mxu0 0
        %1563 = vmatprep.subr.bf16.mxu0 0
        %1564 = vmatpush1.bf16.msra.mxu0 0
        %1565 = vmatprep.subr.bf16.mxu0 0
        %1566 = vmatpush1.bf16.msra.mxu0 0
        %1567 = vmatprep.subr.bf16.mxu0 0
        %1568 = vmatpush1.bf16.msra.mxu0 0
        %1569 = vmatprep.subr.bf16.mxu0 0
        %1570 = vmatpush1.bf16.msra.mxu0 0
        %1571 = vmatprep.subr.bf16.mxu0 0
        %1572 = vmatpush1.bf16.msra.mxu0 0
        %1573 = vmatprep.subr.bf16.mxu0 0
        %1574 = vmatpush1.bf16.msra.mxu0 0
        %1575 = vmatprep.subr.bf16.mxu0 0
        %1576 = vmatpush1.bf16.msra.mxu0 0
        %1577 = vmatprep.subr.bf16.mxu0 0
        %1578 = vmatpush1.bf16.msra.mxu0 0
        %1579 = vmatprep.subr.bf16.mxu0 0
        %1580 = vmatpush1.bf16.msra.mxu0 0
        %1581 = vmatprep.subr.bf16.mxu0 0
        %1582 = vmatpush1.bf16.msra.mxu0 0
        %1583 = vmatprep.subr.bf16.mxu0 0
        %1584 = vmatpush1.bf16.msra.mxu0 0
        %1585 = vmatprep.mubr.bf16.mxu0 0
        %1586 = vmatmul.mubr.bf16.gmra.mrb[0].mxu0 %v1551
        %v1587 = vpop.f32.mrb[0].mxu0
        %v1588 = vadd.f32 %v1536, %v1587
        %v1589 = vpop.f32.mrb[0].mxu0
        %v1590 = vpop.f32.mrb[0].mxu0
        %v1591 = vpop.f32.mrb[0].mxu0
        %1592 = vdwg.mxu0
        %v1593 = vpack.c.bf16 %v1588, %v1588
        %1595 = vrot.lane.b32.xlu0 %v1593, 96
        %v1596 = vpop.permute.xlu0 %1595
        %v1598 = vsel %vm1013, %v1593, 0
        %v1601 = vsel %vm1013, %v1596, 0
        %1603 = vmatprep.subr.bf16.mxu0 0
        %1604 = vmatpush1.bf16.xpose.msra.mxu0 %v1601
        %1605 = vmatprep.subr.bf16.mxu0 0
        %1606 = vmatpush1.bf16.xpose.msra.mxu0 0
        %1607 = vmatprep.subr.bf16.mxu0 0
        %1608 = vmatpush1.bf16.xpose.msra.mxu0 0
        %1609 = vmatprep.subr.bf16.mxu0 0
        %1610 = vmatpush1.bf16.xpose.msra.mxu0 0
        %1611 = vmatprep.subr.bf16.mxu0 0
        %1612 = vmatpush1.bf16.xpose.msra.mxu0 0
        %1613 = vmatprep.subr.bf16.mxu0 0
        %1614 = vmatpush1.bf16.xpose.msra.mxu0 0
        %1615 = vmatprep.subr.bf16.mxu0 0
        %1616 = vmatpush1.bf16.xpose.msra.mxu0 0
        %1617 = vmatprep.subr.bf16.mxu0 0
        %1618 = vmatpush1.bf16.xpose.msra.mxu0 0
        %1619 = vmatprep.subr.bf16.mxu0 0
        %1620 = vmatpush1.bf16.xpose.msra.mxu0 0
        %1621 = vmatprep.subr.bf16.mxu0 0
        %1622 = vmatpush1.bf16.xpose.msra.mxu0 0
        %1623 = vmatprep.subr.bf16.mxu0 0
        %1624 = vmatpush1.bf16.xpose.msra.mxu0 0
        %1625 = vmatprep.subr.bf16.mxu0 0
        %1626 = vmatpush1.bf16.xpose.msra.mxu0 0
        %1627 = vmatprep.subr.bf16.mxu0 0
        %1628 = vmatpush1.bf16.xpose.msra.mxu0 0
        %1629 = vmatprep.subr.bf16.mxu0 0
        %1630 = vmatpush1.bf16.xpose.msra.mxu0 0
        %1631 = vmatprep.subr.bf16.mxu0 0
        %1632 = vmatpush1.bf16.xpose.msra.mxu0 0
        %1633 = vmatprep.subr.bf16.mxu0 0
        %1634 = vmatpush1.bf16.xpose.msra.mxu0 0
        %1635 = vmatprep.mubr.bf16.mxu0 0
        %1636 = vmatmul.mubr.bf16.gmra.mrb[0].mxu0 %v1598
        %v1637 = vpop.f32.mrb[0].mxu0
        %v1638 = vadd.f32 %v1008, %v1637
        %v1639 = vpop.f32.mrb[0].mxu0
        %v1640 = vpop.f32.mrb[0].mxu0
        %v1641 = vpop.f32.mrb[0].mxu0
        %1642 = vdwg.mxu0
        %v1643 = vsel %vm1060, %v1638, -inf
        %1644 = vmax.xlane.f32.xlu0 %v1643
        %v1645 = vpop.xlane.xlu0 %1644
        %v1646 = vsub.f32 %v1638, %v1645
        %v1647 = vmul.f32 %v1646, 1.442695
        %v1648 = vpow.pop %v1647
        %v1649 = vsel %vm1060, %v1648, 0.0
        %1650 = vadd.xlane.f32.xlu0 %v1649
        %v1651 = vpop.xlane.xlu0 %1650
        %v1652 = vrcp.pop %v1651
        %v1653 = vmul.f32 %v1648, %v1652
        %v1654 = vpack.c.bf16 %v1653, %v1653
        %1655 = vrot.lane.b32.xlu0 %v1593, 64
        %v1656 = vpop.permute.xlu0 %1655
        %v1658 = vsel %vm1060, %v1654, 0
        %v1661 = vsel %vm1078, %v1656, 0
        %1663 = vmatprep.subr.bf16.mxu0 0
        %1664 = vmatpush1.bf16.msra.mxu0 %v1661
        %1665 = vmatprep.subr.bf16.mxu0 0
        %1666 = vmatpush1.bf16.msra.mxu0 0
        %1667 = vmatprep.subr.bf16.mxu0 0
        %1668 = vmatpush1.bf16.msra.mxu0 0
        %1669 = vmatprep.subr.bf16.mxu0 0
        %1670 = vmatpush1.bf16.msra.mxu0 0
        %1671 = vmatprep.subr.bf16.mxu0 0
        %1672 = vmatpush1.bf16.msra.mxu0 0
        %1673 = vmatprep.subr.bf16.mxu0 0
        %1674 = vmatpush1.bf16.msra.mxu0 0
        %1675 = vmatprep.subr.bf16.mxu0 0
        %1676 = vmatpush1.bf16.msra.mxu0 0
        %1677 = vmatprep.subr.bf16.mxu0 0
        %1678 = vmatpush1.bf16.msra.mxu0 0
        %1679 = vmatprep.subr.bf16.mxu0 0
        %1680 = vmatpush1.bf16.msra.mxu0 0
        %1681 = vmatprep.subr.bf16.mxu0 0
        %1682 = vmatpush1.bf16.msra.mxu0 0
        %1683 = vmatprep.subr.bf16.mxu0 0
        %1684 = vmatpush1.bf16.msra.mxu0 0
        %1685 = vmatprep.subr.bf16.mxu0 0
        %1686 = vmatpush1.bf16.msra.mxu0 0
        %1687 = vmatprep.subr.bf16.mxu0 0
        %1688 = vmatpush1.bf16.msra.mxu0 0
        %1689 = vmatprep.subr.bf16.mxu0 0
        %1690 = vmatpush1.bf16.msra.mxu0 0
        %1691 = vmatprep.subr.bf16.mxu0 0
        %1692 = vmatpush1.bf16.msra.mxu0 0
        %1693 = vmatprep.subr.bf16.mxu0 0
        %1694 = vmatpush1.bf16.msra.mxu0 0
        %1695 = vmatprep.mubr.bf16.mxu0 0
        %1696 = vmatmul.mubr.bf16.gmra.mrb[0].mxu0 %v1658
        %v1697 = vpop.f32.mrb[0].mxu0
        %v1698 = vadd.f32 0.0, %v1697
        %v1699 = vpop.f32.mrb[0].mxu0
        %v1700 = vpop.f32.mrb[0].mxu0
        %v1701 = vpop.f32.mrb[0].mxu0
        %1702 = vdwg.mxu0
        %1703 = vrot.lane.b32.xlu0 %v1593, 112
        %v1704 = vpop.permute.xlu0 %1703
        %1705 = vrot.lane.b32.xlu0 %v1593, 80
        %v1706 = vpop.permute.xlu0 %1705
        %v1708 = vsel %vm1013, %v1704, 0
        %v1711 = vsel %vm1013, %v1706, 0
        %1713 = vmatprep.subr.bf16.mxu0 0
        %1714 = vmatpush1.bf16.xpose.msra.mxu0 %v1711
        %1715 = vmatprep.subr.bf16.mxu0 0
        %1716 = vmatpush1.bf16.xpose.msra.mxu0 0
        %1717 = vmatprep.subr.bf16.mxu0 0
        %1718 = vmatpush1.bf16.xpose.msra.mxu0 0
        %1719 = vmatprep.subr.bf16.mxu0 0
        %1720 = vmatpush1.bf16.xpose.msra.mxu0 0
        %1721 = vmatprep.subr.bf16.mxu0 0
        %1722 = vmatpush1.bf16.xpose.msra.mxu0 0
        %1723 = vmatprep.subr.bf16.mxu0 0
        %1724 = vmatpush1.bf16.xpose.msra.mxu0 0
        %1725 = vmatprep.subr.bf16.mxu0 0
        %1726 = vmatpush1.bf16.xpose.msra.mxu0 0
        %1727 = vmatprep.subr.bf16.mxu0 0
        %1728 = vmatpush1.bf16.xpose.msra.mxu0 0
        %1729 = vmatprep.subr.bf16.mxu0 0
        %1730 = vmatpush1.bf16.xpose.msra.mxu0 0
        %1731 = vmatprep.subr.bf16.mxu0 0
        %1732 = vmatpush1.bf16.xpose.msra.mxu0 0
        %1733 = vmatprep.subr.bf16.mxu0 0
        %1734 = vmatpush1.bf16.xpose.msra.mxu0 0
        %1735 = vmatprep.subr.bf16.mxu0 0
        %1736 = vmatpush1.bf16.xpose.msra.mxu0 0
        %1737 = vmatprep.subr.bf16.mxu0 0
        %1738 = vmatpush1.bf16.xpose.msra.mxu0 0
        %1739 = vmatprep.subr.bf16.mxu0 0
        %1740 = vmatpush1.bf16.xpose.msra.mxu0 0
        %1741 = vmatprep.subr.bf16.mxu0 0
        %1742 = vmatpush1.bf16.xpose.msra.mxu0 0
        %1743 = vmatprep.subr.bf16.mxu0 0
        %1744 = vmatpush1.bf16.xpose.msra.mxu0 0
        %1745 = vmatprep.mubr.bf16.mxu0 0
        %1746 = vmatmul.mubr.bf16.gmra.mrb[0].mxu0 %v1708
        %v1747 = vpop.f32.mrb[0].mxu0
        %v1748 = vadd.f32 %v1008, %v1747
        %v1749 = vpop.f32.mrb[0].mxu0
        %v1750 = vpop.f32.mrb[0].mxu0
        %v1751 = vpop.f32.mrb[0].mxu0
        %1752 = vdwg.mxu0
        %v1753 = vsel %vm1060, %v1748, -inf
        %1754 = vmax.xlane.f32.xlu0 %v1753
        %v1755 = vpop.xlane.xlu0 %1754
        %v1756 = vsub.f32 %v1748, %v1755
        %v1757 = vmul.f32 %v1756, 1.442695
        %v1758 = vpow.pop %v1757
        %v1759 = vsel %vm1060, %v1758, 0.0
        %1760 = vadd.xlane.f32.xlu0 %v1759
        %v1761 = vpop.xlane.xlu0 %1760
        %v1762 = vrcp.pop %v1761
        %v1763 = vmul.f32 %v1758, %v1762
        %v1764 = vpack.c.bf16 %v1763, %v1763
        %1765 = vrot.lane.b32.xlu0 %v1593, 48
        %v1766 = vpop.permute.xlu0 %1765
        %v1768 = vsel %vm1060, %v1764, 0
        %v1771 = vsel %vm1078, %v1766, 0
        %1773 = vmatprep.subr.bf16.mxu0 0
        %1774 = vmatpush1.bf16.msra.mxu0 %v1771
        %1775 = vmatprep.subr.bf16.mxu0 0
        %1776 = vmatpush1.bf16.msra.mxu0 0
        %1777 = vmatprep.subr.bf16.mxu0 0
        %1778 = vmatpush1.bf16.msra.mxu0 0
        %1779 = vmatprep.subr.bf16.mxu0 0
        %1780 = vmatpush1.bf16.msra.mxu0 0
        %1781 = vmatprep.subr.bf16.mxu0 0
        %1782 = vmatpush1.bf16.msra.mxu0 0
        %1783 = vmatprep.subr.bf16.mxu0 0
        %1784 = vmatpush1.bf16.msra.mxu0 0
        %1785 = vmatprep.subr.bf16.mxu0 0
        %1786 = vmatpush1.bf16.msra.mxu0 0
        %1787 = vmatprep.subr.bf16.mxu0 0
        %1788 = vmatpush1.bf16.msra.mxu0 0
        %1789 = vmatprep.subr.bf16.mxu0 0
        %1790 = vmatpush1.bf16.msra.mxu0 0
        %1791 = vmatprep.subr.bf16.mxu0 0
        %1792 = vmatpush1.bf16.msra.mxu0 0
        %1793 = vmatprep.subr.bf16.mxu0 0
        %1794 = vmatpush1.bf16.msra.mxu0 0
        %1795 = vmatprep.subr.bf16.mxu0 0
        %1796 = vmatpush1.bf16.msra.mxu0 0
        %1797 = vmatprep.subr.bf16.mxu0 0
        %1798 = vmatpush1.bf16.msra.mxu0 0
        %1799 = vmatprep.subr.bf16.mxu0 0
        %1800 = vmatpush1.bf16.msra.mxu0 0
        %1801 = vmatprep.subr.bf16.mxu0 0
        %1802 = vmatpush1.bf16.msra.mxu0 0
        %1803 = vmatprep.subr.bf16.mxu0 0
        %1804 = vmatpush1.bf16.msra.mxu0 0
        %1805 = vmatprep.mubr.bf16.mxu0 0
        %1806 = vmatmul.mubr.bf16.gmra.mrb[0].mxu0 %v1768
        %v1807 = vpop.f32.mrb[0].mxu0
        %v1808 = vadd.f32 0.0, %v1807
        %v1809 = vpop.f32.mrb[0].mxu0
        %v1810 = vpop.f32.mrb[0].mxu0
        %v1811 = vpop.f32.mrb[0].mxu0
        %1812 = vdwg.mxu0
        %1814 = vrot.lane.b32.xlu0 %v1808, 16
        %v1815 = vpop.permute.xlu0 %1814
        %v1817 = vsel %vm1013, %v1698, %v1815
        %v1818 = vpack.c.bf16 %v1817, %v1817
        %s1819 = scalar_lea.vmem %s6, 16
        %v1820 = vld [vmem:[%s1819] sm:$0xf]
        %v1821 = vld [vmem:[%s1819 + $0x4] sm:$0xf]
        %v1822 = vld [vmem:[%s1819 + $0x8] sm:$0xf]
        %v1823 = vld [vmem:[%s1819 + $0xc] sm:$0xf]
        %s1824 = scalar_lea.vmem [#allocation11], 1
        %v1825 = vld [vmem:[%s1824] sm:$0x1]
        %v1827 = vlaneseq
        %v1828 = vshrl.u32 %v1827, 7
        %v1829 = vsub.s32 0, %v1828
        %v1830 = vrot.slane %v1825, %v1829
        %v1836 = vunpack.c.l.b16 %v1820
        %v1837 = vunpack.c.l.b16 %v1821
        %v1838 = vunpack.c.l.b16 %v1822
        %v1839 = vunpack.c.l.b16 %v1823
        %v1840 = vpack.c.b16 %v1837, %v1836
        %v1841 = vpack.c.b16 %v1839, %v1838
        %v1845 = vsel %vm906, %v1818, 0
        %1847 = vmatprep.subr.bf16.mxu0 0
        %1848 = vmatpush1.bf16.msra.mxu0 %v1840
        %1849 = vmatprep.subr.bf16.mxu0 0
        %1850 = vmatpush1.bf16.msra.mxu0 %v1841
        %1851 = vmatprep.subr.bf16.mxu0 0
        %1852 = vmatpush1.bf16.msra.mxu0 0
        %1853 = vmatprep.subr.bf16.mxu0 0
        %1854 = vmatpush1.bf16.msra.mxu0 0
        %1855 = vmatprep.subr.bf16.mxu0 0
        %1856 = vmatpush1.bf16.msra.mxu0 0
        %1857 = vmatprep.subr.bf16.mxu0 0
        %1858 = vmatpush1.bf16.msra.mxu0 0
        %1859 = vmatprep.subr.bf16.mxu0 0
        %1860 = vmatpush1.bf16.msra.mxu0 0
        %1861 = vmatprep.subr.bf16.mxu0 0
        %1862 = vmatpush1.bf16.msra.mxu0 0
        %1863 = vmatprep.subr.bf16.mxu0 0
        %1864 = vmatpush1.bf16.msra.mxu0 0
        %1865 = vmatprep.subr.bf16.mxu0 0
        %1866 = vmatpush1.bf16.msra.mxu0 0
        %1867 = vmatprep.subr.bf16.mxu0 0
        %1868 = vmatpush1.bf16.msra.mxu0 0
        %1869 = vmatprep.subr.bf16.mxu0 0
        %1870 = vmatpush1.bf16.msra.mxu0 0
        %1871 = vmatprep.subr.bf16.mxu0 0
        %1872 = vmatpush1.bf16.msra.mxu0 0
        %1873 = vmatprep.subr.bf16.mxu0 0
        %1874 = vmatpush1.bf16.msra.mxu0 0
        %1875 = vmatprep.subr.bf16.mxu0 0
        %1876 = vmatpush1.bf16.msra.mxu0 0
        %1877 = vmatprep.subr.bf16.mxu0 0
        %1878 = vmatpush1.bf16.msra.mxu0 0
        %1879 = vmatprep.mubr.bf16.mxu0 0
        %1880 = vmatmul.mubr.bf16.gmra.mrb[0].mxu0 %v1845
        %v1881 = vpop.f32.mrb[0].mxu0
        %v1882 = vadd.f32 %v1830, %v1881
        %v1883 = vpop.f32.mrb[0].mxu0
        %v1884 = vpop.f32.mrb[0].mxu0
        %v1885 = vpop.f32.mrb[0].mxu0
        %1886 = vdwg.mxu0
        %v1887 = vadd.f32 %v1882, %v1523
        %s1888 = scalar_lea.vmem [#allocation13], 1
        %v1889 = vld [vmem:[%s1888] sm:$0x1]
        %s1890 = scalar_lea.vmem [#allocation14], 1
        %v1891 = vld [vmem:[%s1890] sm:$0x1]
        %v1892 = vsel %vm906, %v1887, 0.0
        %1893 = vadd.xlane.f32.xlu0 %v1892
        %v1894 = vpop.xlane.xlu0 %1893
        %v1895 = vmul.f32 %v1894, %v910
        %v1896 = vsub.f32 %v1887, %v1895
        %v1897 = vmul.f32 %v1896, %v1896
        %v1898 = vsel %vm906, %v1897, 0.0
        %1899 = vadd.xlane.f32.xlu0 %v1898
        %v1900 = vpop.xlane.xlu0 %1899
        %v1901 = vmul.f32 %v1900, %v910
        %v1902 = vadd.f32 %v1901, 1e-12
        %v1903 = vrsqrt.pop %v1902
        %v1904 = vmul.f32 %v1896, %v1903
        %v1906 = vlaneseq
        %v1907 = vshrl.u32 %v1906, 7
        %v1908 = vsub.s32 0, %v1907
        %v1909 = vrot.slane %v1889, %v1908
        %v1911 = vmul.f32 %v1904, %v1909
        %v1913 = vlaneseq
        %v1914 = vshrl.u32 %v1913, 7
        %v1915 = vsub.s32 0, %v1914
        %v1916 = vrot.slane %v1891, %v1915
        %v1918 = vadd.f32 %v1911, %v1916
        %v1919 = vpack.c.bf16 %v1918, %v1918
        %s1920 = scalar_lea.vmem %s10, 16
        %v1921 = vld [vmem:[%s1920] sm:$0xf]
        %v1922 = vld [vmem:[%s1920 + $0x4] sm:$0xf]
        %v1923 = vld [vmem:[%s1920 + $0x8] sm:$0xf]
        %v1924 = vld [vmem:[%s1920 + $0xc] sm:$0xf]
        %s1925 = scalar_lea.vmem [#allocation16], 1
        %v1926 = vld [vmem:[%s1925] sm:$0x1]
        %v1928 = vlaneseq
        %v1929 = vshrl.u32 %v1928, 7
        %v1930 = vsub.s32 0, %v1929
        %v1931 = vrot.slane %v1926, %v1930
        %v1937 = vunpack.c.l.b16 %v1921
        %v1938 = vunpack.c.l.b16 %v1922
        %v1939 = vunpack.c.l.b16 %v1923
        %v1940 = vunpack.c.l.b16 %v1924
        %v1941 = vpack.c.b16 %v1938, %v1937
        %v1942 = vpack.c.b16 %v1940, %v1939
        %v1946 = vsel %vm906, %v1919, 0
        %1948 = vmatprep.subr.bf16.mxu0 0
        %1949 = vmatpush1.bf16.msra.mxu0 %v1941
        %1950 = vmatprep.subr.bf16.mxu0 0
        %1951 = vmatpush1.bf16.msra.mxu0 %v1942
        %1952 = vmatprep.subr.bf16.mxu0 0
        %1953 = vmatpush1.bf16.msra.mxu0 0
        %1954 = vmatprep.subr.bf16.mxu0 0
        %1955 = vmatpush1.bf16.msra.mxu0 0
        %1956 = vmatprep.subr.bf16.mxu0 0
        %1957 = vmatpush1.bf16.msra.mxu0 0
        %1958 = vmatprep.subr.bf16.mxu0 0
        %1959 = vmatpush1.bf16.msra.mxu0 0
        %1960 = vmatprep.subr.bf16.mxu0 0
        %1961 = vmatpush1.bf16.msra.mxu0 0
        %1962 = vmatprep.subr.bf16.mxu0 0
        %1963 = vmatpush1.bf16.msra.mxu0 0
        %1964 = vmatprep.subr.bf16.mxu0 0
        %1965 = vmatpush1.bf16.msra.mxu0 0
        %1966 = vmatprep.subr.bf16.mxu0 0
        %1967 = vmatpush1.bf16.msra.mxu0 0
        %1968 = vmatprep.subr.bf16.mxu0 0
        %1969 = vmatpush1.bf16.msra.mxu0 0
        %1970 = vmatprep.subr.bf16.mxu0 0
        %1971 = vmatpush1.bf16.msra.mxu0 0
        %1972 = vmatprep.subr.bf16.mxu0 0
        %1973 = vmatpush1.bf16.msra.mxu0 0
        %1974 = vmatprep.subr.bf16.mxu0 0
        %1975 = vmatpush1.bf16.msra.mxu0 0
        %1976 = vmatprep.subr.bf16.mxu0 0
        %1977 = vmatpush1.bf16.msra.mxu0 0
        %1978 = vmatprep.subr.bf16.mxu0 0
        %1979 = vmatpush1.bf16.msra.mxu0 0
        %1980 = vmatprep.mubr.bf16.mxu0 0
        %1981 = vmatmul.mubr.bf16.gmra.mrb[0].mxu0 %v1946
        %v1982 = vpop.f32.mrb[0].mxu0
        %v1983 = vadd.f32 %v1931, %v1982
        %v1984 = vpop.f32.mrb[0].mxu0
        %v1985 = vpop.f32.mrb[0].mxu0
        %v1986 = vpop.f32.mrb[0].mxu0
        %1987 = vdwg.mxu0
        %v1988 = vmul.f32 %v1983, %v1983
        %v1989 = vmul.f32 %v1983, %v1988
        %v1990 = vmul.f32 %v1989, 0.044715
        %v1991 = vadd.f32 %v1983, %v1990
        %v1992 = vmul.f32 %v1991, 0.7978846
        %v1993 = vtanh.pop %v1992
        %v1994 = vadd.f32 %v1993, 1.0
        %v1995 = vmul.f32 %v1994, 0.5
        %v1996 = vmul.f32 %v1983, %v1995
        %v1997 = vpack.c.bf16 %v1996, %v1996
        %s1998 = scalar_lea.vmem %s12, 32
        %v1999 = vld [vmem:[%s1998] sm:$0xf]
        %v2000 = vld [vmem:[%s1998 + $0x4] sm:$0xf]
        %v2001 = vld [vmem:[%s1998 + $0x8] sm:$0xf]
        %v2002 = vld [vmem:[%s1998 + $0xc] sm:$0xf]
        %v2003 = vld [vmem:[%s1998 + $0x10] sm:$0xf]
        %v2004 = vld [vmem:[%s1998 + $0x14] sm:$0xf]
        %v2005 = vld [vmem:[%s1998 + $0x18] sm:$0xf]
        %v2006 = vld [vmem:[%s1998 + $0x1c] sm:$0xf]
        %s2007 = scalar_lea.vmem [#allocation17], 1
        %v2008 = vld [vmem:[%s2007] sm:$0x1]
        %v2010 = vlaneseq
        %v2011 = vshrl.u32 %v2010, 7
        %v2012 = vsub.s32 0, %v2011
        %v2013 = vrot.slane %v2008, %v2012
        %v2023 = vunpack.c.l.b16 %v1999
        %v2024 = vunpack.c.l.b16 %v2000
        %v2025 = vunpack.c.l.b16 %v2001
        %v2026 = vunpack.c.l.b16 %v2002
        %v2027 = vunpack.c.l.b16 %v2003
        %v2028 = vunpack.c.l.b16 %v2004
        %v2029 = vunpack.c.l.b16 %v2005
        %v2030 = vunpack.c.l.b16 %v2006
        %v2031 = vpack.c.b16 %v2024, %v2023
        %v2032 = vpack.c.b16 %v2026, %v2025
        %v2033 = vpack.c.b16 %v2028, %v2027
        %v2034 = vpack.c.b16 %v2030, %v2029
        %v2040 = vsel %vm1450, %v1997, 0
        %2042 = vmatprep.subr.bf16.mxu0 0
        %2043 = vmatpush1.bf16.msra.mxu0 %v2031
        %2044 = vmatprep.subr.bf16.mxu0 0
        %2045 = vmatpush1.bf16.msra.mxu0 %v2032
        %2046 = vmatprep.subr.bf16.mxu0 0
        %2047 = vmatpush1.bf16.msra.mxu0 %v2033
        %2048 = vmatprep.subr.bf16.mxu0 0
        %2049 = vmatpush1.bf16.msra.mxu0 %v2034
        %2050 = vmatprep.subr.bf16.mxu0 0
        %2051 = vmatpush1.bf16.msra.mxu0 0
        %2052 = vmatprep.subr.bf16.mxu0 0
        %2053 = vmatpush1.bf16.msra.mxu0 0
        %2054 = vmatprep.subr.bf16.mxu0 0
        %2055 = vmatpush1.bf16.msra.mxu0 0
        %2056 = vmatprep.subr.bf16.mxu0 0
        %2057 = vmatpush1.bf16.msra.mxu0 0
        %2058 = vmatprep.subr.bf16.mxu0 0
        %2059 = vmatpush1.bf16.msra.mxu0 0
        %2060 = vmatprep.subr.bf16.mxu0 0
        %2061 = vmatpush1.bf16.msra.mxu0 0
        %2062 = vmatprep.subr.bf16.mxu0 0
        %2063 = vmatpush1.bf16.msra.mxu0 0
        %2064 = vmatprep.subr.bf16.mxu0 0
        %2065 = vmatpush1.bf16.msra.mxu0 0
        %2066 = vmatprep.subr.bf16.mxu0 0
        %2067 = vmatpush1.bf16.msra.mxu0 0
        %2068 = vmatprep.subr.bf16.mxu0 0
        %2069 = vmatpush1.bf16.msra.mxu0 0
        %2070 = vmatprep.subr.bf16.mxu0 0
        %2071 = vmatpush1.bf16.msra.mxu0 0
        %2072 = vmatprep.subr.bf16.mxu0 0
        %2073 = vmatpush1.bf16.msra.mxu0 0
        %2074 = vmatprep.mubr.bf16.mxu0 0
        %2075 = vmatmul.mubr.bf16.gmra.mrb[0].mxu0 %v2040
        %v2076 = vpop.f32.mrb[0].mxu0
        %v2077 = vadd.f32 %v2013, %v2076
        %v2078 = vpop.f32.mrb[0].mxu0
        %v2079 = vpop.f32.mrb[0].mxu0
        %v2080 = vpop.f32.mrb[0].mxu0
        %2081 = vdwg.mxu0
        %v2082 = vadd.f32 %v2077, %v1918
        %s2083 = scalar_lea.vmem [#allocation19], 1
        %v2084 = vld [vmem:[%s2083] sm:$0x1]
        %s2085 = scalar_lea.vmem [#allocation20], 1
        %v2086 = vld [vmem:[%s2085] sm:$0x1]
        %v2087 = vsel %vm906, %v2082, 0.0
        %2088 = vadd.xlane.f32.xlu0 %v2087
        %v2089 = vpop.xlane.xlu0 %2088
        %v2090 = vmul.f32 %v2089, %v910
        %v2091 = vsub.f32 %v2082, %v2090
        %v2092 = vmul.f32 %v2091, %v2091
        %v2093 = vsel %vm906, %v2092, 0.0
        %2094 = vadd.xlane.f32.xlu0 %v2093
        %v2095 = vpop.xlane.xlu0 %2094
        %v2096 = vmul.f32 %v2095, %v910
        %v2097 = vadd.f32 %v2096, 1e-12
        %v2098 = vrsqrt.pop %v2097
        %v2099 = vmul.f32 %v2091, %v2098
        %v2101 = vlaneseq
        %v2102 = vshrl.u32 %v2101, 7
        %v2103 = vsub.s32 0, %v2102
        %v2104 = vrot.slane %v2084, %v2103
        %v2106 = vmul.f32 %v2099, %v2104
        %v2108 = vlaneseq
        %v2109 = vshrl.u32 %v2108, 7
        %v2110 = vsub.s32 0, %v2109
        %v2111 = vrot.slane %v2086, %v2110
        %v2113 = vadd.f32 %v2106, %v2111
        %v2114 = vpack.c.bf16 %v2113, %v2113
        %v2115 = vld [vmem:[#allocation22] sm:$0xf]
        %v2116 = vld [vmem:[#allocation22 + $0x4] sm:$0xf]
        %v2117 = vld [vmem:[#allocation22 + $0x8] sm:$0xf]
        %v2118 = vld [vmem:[#allocation22 + $0xc] sm:$0xf]
        %v2119 = vld [vmem:[%s18] sm:$0x1]
        %v2121 = vlaneseq
        %v2122 = vshrl.u32 %v2121, 7
        %v2123 = vsub.s32 0, %v2122
        %v2124 = vrot.slane %v2119, %v2123
        %v2130 = vunpack.c.l.b16 %v2115
        %v2131 = vunpack.c.l.b16 %v2116
        %v2132 = vunpack.c.l.b16 %v2117
        %v2133 = vunpack.c.l.b16 %v2118
        %v2134 = vpack.c.b16 %v2131, %v2130
        %v2135 = vpack.c.b16 %v2133, %v2132
        %v2139 = vsel %vm906, %v2114, 0
        %2141 = vmatprep.subr.bf16.mxu0 0
        %2142 = vmatpush1.bf16.msra.mxu0 %v2134
        %2143 = vmatprep.subr.bf16.mxu0 0
        %2144 = vmatpush1.bf16.msra.mxu0 %v2135
        %2145 = vmatprep.subr.bf16.mxu0 0
        %2146 = vmatpush1.bf16.msra.mxu0 0
        %2147 = vmatprep.subr.bf16.mxu0 0
        %2148 = vmatpush1.bf16.msra.mxu0 0
        %2149 = vmatprep.subr.bf16.mxu0 0
        %2150 = vmatpush1.bf16.msra.mxu0 0
        %2151 = vmatprep.subr.bf16.mxu0 0
        %2152 = vmatpush1.bf16.msra.mxu0 0
        %2153 = vmatprep.subr.bf16.mxu0 0
        %2154 = vmatpush1.bf16.msra.mxu0 0
        %2155 = vmatprep.subr.bf16.mxu0 0
        %2156 = vmatpush1.bf16.msra.mxu0 0
        %2157 = vmatprep.subr.bf16.mxu0 0
        %2158 = vmatpush1.bf16.msra.mxu0 0
        %2159 = vmatprep.subr.bf16.mxu0 0
        %2160 = vmatpush1.bf16.msra.mxu0 0
        %2161 = vmatprep.subr.bf16.mxu0 0
        %2162 = vmatpush1.bf16.msra.mxu0 0
        %2163 = vmatprep.subr.bf16.mxu0 0
        %2164 = vmatpush1.bf16.msra.mxu0 0
        %2165 = vmatprep.subr.bf16.mxu0 0
        %2166 = vmatpush1.bf16.msra.mxu0 0
        %2167 = vmatprep.subr.bf16.mxu0 0
        %2168 = vmatpush1.bf16.msra.mxu0 0
        %2169 = vmatprep.subr.bf16.mxu0 0
        %2170 = vmatpush1.bf16.msra.mxu0 0
        %2171 = vmatprep.subr.bf16.mxu0 0
        %2172 = vmatpush1.bf16.msra.mxu0 0
        %2173 = vmatprep.mubr.bf16.mxu0 0
        %2174 = vmatmul.mubr.bf16.gmra.mrb[0].mxu0 %v2139
        %v2175 = vpop.f32.mrb[0].mxu0
        %v2176 = vadd.f32 %v2124, %v2175
        %v2177 = vpop.f32.mrb[0].mxu0
        %v2178 = vpop.f32.mrb[0].mxu0
        %v2179 = vpop.f32.mrb[0].mxu0
        %2180 = vdwg.mxu0
        %v2181 = vld [vmem:[%s17] sm:$0xff]
        %v2182 = vld [vmem:[%s17 + $0x8] sm:$0xff]
        %v2183 = vld [vmem:[%s17 + $0x10] sm:$0xff]
        %v2184 = vld [vmem:[%s17 + $0x18] sm:$0xff]
        %v2185 = vld [vmem:[%s19] sm:$0x1]
        %v2187 = vsel %vm906, 0.0, 0
        %2189 = vmatprep.subr.mxu0 0.0
        %2190 = vmatpush1.msra.mxu0 %v2181
        %2191 = vmatprep.subr.mxu0 0.0
        %2192 = vmatpush1.msra.mxu0 %v2182
        %2193 = vmatprep.subr.mxu0 0.0
        %2194 = vmatpush1.msra.mxu0 %v2183
        %2195 = vmatprep.subr.mxu0 0.0
        %2196 = vmatpush1.msra.mxu0 %v2184
        %2197 = vmatprep.subr.mxu0 0.0
        %2198 = vmatpush1.msra.mxu0 0.0
        %2199 = vmatprep.subr.mxu0 0.0
        %2200 = vmatpush1.msra.mxu0 0.0
        %2201 = vmatprep.subr.mxu0 0.0
        %2202 = vmatpush1.msra.mxu0 0.0
        %2203 = vmatprep.subr.mxu0 0.0
        %2204 = vmatpush1.msra.mxu0 0.0
        %2205 = vmatprep.subr.mxu0 0.0
        %2206 = vmatpush1.msra.mxu0 0.0
        %2207 = vmatprep.subr.mxu0 0.0
        %2208 = vmatpush1.msra.mxu0 0.0
        %2209 = vmatprep.subr.mxu0 0.0
        %2210 = vmatpush1.msra.mxu0 0.0
        %2211 = vmatprep.subr.mxu0 0.0
        %2212 = vmatpush1.msra.mxu0 0.0
        %2213 = vmatprep.subr.mxu0 0.0
        %2214 = vmatpush1.msra.mxu0 0.0
        %2215 = vmatprep.subr.mxu0 0.0
        %2216 = vmatpush1.msra.mxu0 0.0
        %2217 = vmatprep.subr.mxu0 0.0
        %2218 = vmatpush1.msra.mxu0 0.0
        %2219 = vmatprep.subr.mxu0 0.0
        %2220 = vmatpush1.msra.mxu0 0.0
        %2221 = vmatprep.subr.mxu0 0.0
        %2222 = vmatpush1.msra.mxu0 0.0
        %2223 = vmatprep.subr.mxu0 0.0
        %2224 = vmatpush1.msra.mxu0 0.0
        %2225 = vmatprep.subr.mxu0 0.0
        %2226 = vmatpush1.msra.mxu0 0.0
        %2227 = vmatprep.subr.mxu0 0.0
        %2228 = vmatpush1.msra.mxu0 0.0
        %2229 = vmatprep.subr.mxu0 0.0
        %2230 = vmatpush1.msra.mxu0 0.0
        %2231 = vmatprep.subr.mxu0 0.0
        %2232 = vmatpush1.msra.mxu0 0.0
        %2233 = vmatprep.subr.mxu0 0.0
        %2234 = vmatpush1.msra.mxu0 0.0
        %2235 = vmatprep.subr.mxu0 0.0
        %2236 = vmatpush1.msra.mxu0 0.0
        %2237 = vmatprep.subr.mxu0 0.0
        %2238 = vmatpush1.msra.mxu0 0.0
        %2239 = vmatprep.subr.mxu0 0.0
        %2240 = vmatpush1.msra.mxu0 0.0
        %2241 = vmatprep.subr.mxu0 0.0
        %2242 = vmatpush1.msra.mxu0 0.0
        %2243 = vmatprep.subr.mxu0 0.0
        %2244 = vmatpush1.msra.mxu0 0.0
        %2245 = vmatprep.subr.mxu0 0.0
        %2246 = vmatpush1.msra.mxu0 0.0
        %2247 = vmatprep.subr.mxu0 0.0
        %2248 = vmatpush1.msra.mxu0 0.0
        %2249 = vmatprep.subr.mxu0 0.0
        %2250 = vmatpush1.msra.mxu0 0.0
        %2251 = vmatprep.subr.mxu0 0.0
        %2252 = vmatpush1.msra.mxu0 0.0
        %2253 = vmatprep.mubr.f32.mxu0 0.0
        %2254 = vmatmul.mubr.f32.gmra.mrb[0].mxu0 %v2187
        %v2255 = vpop.f32.mrb[0].mxu0
        %v2256 = vadd.f32 %v2185, %v2255
        %v2257 = vpop.f32.mrb[0].mxu0
        %2258 = vdwg.mxu0
        %v2259 = vadd.f32 %v2176, %v2256
        %v2260 = vxor.u32 %v2259, 2147483648
        %v2261 = vmul.f32 %v2260, 1.442695
        %v2262 = vpow.pop %v2261
        %v2263 = vadd.f32 %v2262, 1.0
        %v2264 = vrcp.pop %v2263
        %v2265 = vmul.f32 1.0, %v2264
        %2267 = vrot.lane.b32.xlu0 %v2256, 64
        %v2268 = vpop.permute.xlu0 %2267
        %v2270 = vmul.f32 %v2265, %v2268
        %2272 = vrot.lane.b32.xlu0 %v2270, 64
        %v2273 = vpop.permute.xlu0 %2272
        %v2275 = vadd.f32 %v2176, %v2273
        %v2276 = vtanh.pop %v2275
        %v2277 = vsub.f32 1.0, %v2265
        %2279 = vrot.lane.b32.xlu0 %v2276, 96
        %v2280 = vpop.permute.xlu0 %2279
        %v2282 = vmul.f32 %v2277, %v2280
        %v2283 = vmul.f32 %v2265, 0.0
        %v2284 = vadd.f32 %v2282, %v2283
        %2286 = vrot.lane.b32.xlu0 %v2284, 96
        %v2287 = vpop.permute.xlu0 %2286
        %v2288 = vsel %vm906, %v2287, 0
        %2290 = vmatprep.subr.mxu0 0.0
        %2291 = vmatpush1.msra.mxu0 %v2181
        %2292 = vmatprep.subr.mxu0 0.0
        %2293 = vmatpush1.msra.mxu0 %v2182
        %2294 = vmatprep.subr.mxu0 0.0
        %2295 = vmatpush1.msra.mxu0 %v2183
        %2296 = vmatprep.subr.mxu0 0.0
        %2297 = vmatpush1.msra.mxu0 %v2184
        %2298 = vmatprep.subr.mxu0 0.0
        %2299 = vmatpush1.msra.mxu0 0.0
        %2300 = vmatprep.subr.mxu0 0.0
        %2301 = vmatpush1.msra.mxu0 0.0
        %2302 = vmatprep.subr.mxu0 0.0
        %2303 = vmatpush1.msra.mxu0 0.0
        %2304 = vmatprep.subr.mxu0 0.0
        %2305 = vmatpush1.msra.mxu0 0.0
        %2306 = vmatprep.subr.mxu0 0.0
        %2307 = vmatpush1.msra.mxu0 0.0
        %2308 = vmatprep.subr.mxu0 0.0
        %2309 = vmatpush1.msra.mxu0 0.0
        %2310 = vmatprep.subr.mxu0 0.0
        %2311 = vmatpush1.msra.mxu0 0.0
        %2312 = vmatprep.subr.mxu0 0.0
        %2313 = vmatpush1.msra.mxu0 0.0
        %2314 = vmatprep.subr.mxu0 0.0
        %2315 = vmatpush1.msra.mxu0 0.0
        %2316 = vmatprep.subr.mxu0 0.0
        %2317 = vmatpush1.msra.mxu0 0.0
        %2318 = vmatprep.subr.mxu0 0.0
        %2319 = vmatpush1.msra.mxu0 0.0
        %2320 = vmatprep.subr.mxu0 0.0
        %2321 = vmatpush1.msra.mxu0 0.0
        %2322 = vmatprep.subr.mxu0 0.0
        %2323 = vmatpush1.msra.mxu0 0.0
        %2324 = vmatprep.subr.mxu0 0.0
        %2325 = vmatpush1.msra.mxu0 0.0
        %2326 = vmatprep.subr.mxu0 0.0
        %2327 = vmatpush1.msra.mxu0 0.0
        %2328 = vmatprep.subr.mxu0 0.0
        %2329 = vmatpush1.msra.mxu0 0.0
        %2330 = vmatprep.subr.mxu0 0.0
        %2331 = vmatpush1.msra.mxu0 0.0
        %2332 = vmatprep.subr.mxu0 0.0
        %2333 = vmatpush1.msra.mxu0 0.0
        %2334 = vmatprep.subr.mxu0 0.0
        %2335 = vmatpush1.msra.mxu0 0.0
        %2336 = vmatprep.subr.mxu0 0.0
        %2337 = vmatpush1.msra.mxu0 0.0
        %2338 = vmatprep.subr.mxu0 0.0
        %2339 = vmatpush1.msra.mxu0 0.0
        %2340 = vmatprep.subr.mxu0 0.0
        %2341 = vmatpush1.msra.mxu0 0.0
        %2342 = vmatprep.subr.mxu0 0.0
        %2343 = vmatpush1.msra.mxu0 0.0
        %2344 = vmatprep.subr.mxu0 0.0
        %2345 = vmatpush1.msra.mxu0 0.0
        %2346 = vmatprep.subr.mxu0 0.0
        %2347 = vmatpush1.msra.mxu0 0.0
        %2348 = vmatprep.subr.mxu0 0.0
        %2349 = vmatpush1.msra.mxu0 0.0
        %2350 = vmatprep.subr.mxu0 0.0
        %2351 = vmatpush1.msra.mxu0 0.0
        %2352 = vmatprep.subr.mxu0 0.0
        %2353 = vmatpush1.msra.mxu0 0.0
        %2354 = vmatprep.mubr.f32.mxu0 0.0
        %2355 = vmatmul.mubr.f32.gmra.mrb[0].mxu0 %v2288
        %v2356 = vpop.f32.mrb[0].mxu0
        %v2357 = vadd.f32 %v2185, %v2356
        %v2358 = vpop.f32.mrb[0].mxu0
        %2359 = vdwg.mxu0
        %v2361 = vrot.slane %v2357, 7
        %v2363 = vadd.f32 %v2176, %v2361
        %v2364 = vxor.u32 %v2363, 2147483648
        %v2365 = vmul.f32 %v2364, 1.442695
        %v2366 = vpow.pop %v2365
        %v2367 = vadd.f32 %v2366, 1.0
        %v2368 = vrcp.pop %v2367
        %v2369 = vmul.f32 1.0, %v2368
        %2370 = vrot.lane.b32.xlu0 %v2361, 64
        %v2371 = vpop.permute.xlu0 %2370
        %v2373 = vmul.f32 %v2369, %v2371
        %2375 = vrot.lane.b32.xlu0 %v2373, 64
        %v2376 = vpop.permute.xlu0 %2375
        %v2378 = vadd.f32 %v2176, %v2376
        %v2379 = vtanh.pop %v2378
        %v2380 = vsub.f32 1.0, %v2369
        %2382 = vrot.lane.b32.xlu0 %v2379, 96
        %v2383 = vpop.permute.xlu0 %2382
        %v2385 = vmul.f32 %v2380, %v2383
        %v2386 = vrot.slane %v2284, 7
        %v2388 = vmul.f32 %v2369, %v2386
        %v2389 = vadd.f32 %v2385, %v2388
        %v2391 = vrot.slane %v2389, 1
        %2392 = vrot.lane.b32.xlu0 %v2391, 96
        %v2393 = vpop.permute.xlu0 %2392
        %v2394 = vsel %vm906, %v2393, 0
        %2396 = vmatprep.subr.mxu0 0.0
        %2397 = vmatpush1.msra.mxu0 %v2181
        %2398 = vmatprep.subr.mxu0 0.0
        %2399 = vmatpush1.msra.mxu0 %v2182
        %2400 = vmatprep.subr.mxu0 0.0
        %2401 = vmatpush1.msra.mxu0 %v2183
        %2402 = vmatprep.subr.mxu0 0.0
        %2403 = vmatpush1.msra.mxu0 %v2184
        %2404 = vmatprep.subr.mxu0 0.0
        %2405 = vmatpush1.msra.mxu0 0.0
        %2406 = vmatprep.subr.mxu0 0.0
        %2407 = vmatpush1.msra.mxu0 0.0
        %2408 = vmatprep.subr.mxu0 0.0
        %2409 = vmatpush1.msra.mxu0 0.0
        %2410 = vmatprep.subr.mxu0 0.0
        %2411 = vmatpush1.msra.mxu0 0.0
        %2412 = vmatprep.subr.mxu0 0.0
        %2413 = vmatpush1.msra.mxu0 0.0
        %2414 = vmatprep.subr.mxu0 0.0
        %2415 = vmatpush1.msra.mxu0 0.0
        %2416 = vmatprep.subr.mxu0 0.0
        %2417 = vmatpush1.msra.mxu0 0.0
        %2418 = vmatprep.subr.mxu0 0.0
        %2419 = vmatpush1.msra.mxu0 0.0
        %2420 = vmatprep.subr.mxu0 0.0
        %2421 = vmatpush1.msra.mxu0 0.0
        %2422 = vmatprep.subr.mxu0 0.0
        %2423 = vmatpush1.msra.mxu0 0.0
        %2424 = vmatprep.subr.mxu0 0.0
        %2425 = vmatpush1.msra.mxu0 0.0
        %2426 = vmatprep.subr.mxu0 0.0
        %2427 = vmatpush1.msra.mxu0 0.0
        %2428 = vmatprep.subr.mxu0 0.0
        %2429 = vmatpush1.msra.mxu0 0.0
        %2430 = vmatprep.subr.mxu0 0.0
        %2431 = vmatpush1.msra.mxu0 0.0
        %2432 = vmatprep.subr.mxu0 0.0
        %2433 = vmatpush1.msra.mxu0 0.0
        %2434 = vmatprep.subr.mxu0 0.0
        %2435 = vmatpush1.msra.mxu0 0.0
        %2436 = vmatprep.subr.mxu0 0.0
        %2437 = vmatpush1.msra.mxu0 0.0
        %2438 = vmatprep.subr.mxu0 0.0
        %2439 = vmatpush1.msra.mxu0 0.0
        %2440 = vmatprep.subr.mxu0 0.0
        %2441 = vmatpush1.msra.mxu0 0.0
        %2442 = vmatprep.subr.mxu0 0.0
        %2443 = vmatpush1.msra.mxu0 0.0
        %2444 = vmatprep.subr.mxu0 0.0
        %2445 = vmatpush1.msra.mxu0 0.0
        %2446 = vmatprep.subr.mxu0 0.0
        %2447 = vmatpush1.msra.mxu0 0.0
        %2448 = vmatprep.subr.mxu0 0.0
        %2449 = vmatpush1.msra.mxu0 0.0
        %2450 = vmatprep.subr.mxu0 0.0
        %2451 = vmatpush1.msra.mxu0 0.0
        %2452 = vmatprep.subr.mxu0 0.0
        %2453 = vmatpush1.msra.mxu0 0.0
        %2454 = vmatprep.subr.mxu0 0.0
        %2455 = vmatpush1.msra.mxu0 0.0
        %2456 = vmatprep.subr.mxu0 0.0
        %2457 = vmatpush1.msra.mxu0 0.0
        %2458 = vmatprep.subr.mxu0 0.0
        %2459 = vmatpush1.msra.mxu0 0.0
        %2460 = vmatprep.mubr.f32.mxu0 0.0
        %2461 = vmatmul.mubr.f32.gmra.mrb[0].mxu0 %v2394
        %v2462 = vpop.f32.mrb[0].mxu0
        %v2463 = vadd.f32 %v2185, %v2462
        %v2464 = vpop.f32.mrb[0].mxu0
        %2465 = vdwg.mxu0
        %v2467 = vrot.slane %v2463, 6
        %v2469 = vadd.f32 %v2176, %v2467
        %v2470 = vxor.u32 %v2469, 2147483648
        %v2471 = vmul.f32 %v2470, 1.442695
        %v2472 = vpow.pop %v2471
        %v2473 = vadd.f32 %v2472, 1.0
        %v2474 = vrcp.pop %v2473
        %v2475 = vmul.f32 1.0, %v2474
        %2476 = vrot.lane.b32.xlu0 %v2467, 64
        %v2477 = vpop.permute.xlu0 %2476
        %v2479 = vmul.f32 %v2475, %v2477
        %2481 = vrot.lane.b32.xlu0 %v2479, 64
        %v2482 = vpop.permute.xlu0 %2481
        %v2484 = vadd.f32 %v2176, %v2482
        %v2485 = vtanh.pop %v2484
        %v2486 = vsub.f32 1.0, %v2475
        %2488 = vrot.lane.b32.xlu0 %v2485, 96
        %v2489 = vpop.permute.xlu0 %2488
        %v2491 = vmul.f32 %v2486, %v2489
        %v2492 = vrot.slane %v2389, 7
        %v2494 = vmul.f32 %v2475, %v2492
        %v2495 = vadd.f32 %v2491, %v2494
        %v2497 = vrot.slane %v2495, 2
        %2498 = vrot.lane.b32.xlu0 %v2497, 96
        %v2499 = vpop.permute.xlu0 %2498
        %v2500 = vsel %vm906, %v2499, 0
        %2502 = vmatprep.subr.mxu0 0.0
        %2503 = vmatpush1.msra.mxu0 %v2181
        %2504 = vmatprep.subr.mxu0 0.0
        %2505 = vmatpush1.msra.mxu0 %v2182
        %2506 = vmatprep.subr.mxu0 0.0
        %2507 = vmatpush1.msra.mxu0 %v2183
        %2508 = vmatprep.subr.mxu0 0.0
        %2509 = vmatpush1.msra.mxu0 %v2184
        %2510 = vmatprep.subr.mxu0 0.0
        %2511 = vmatpush1.msra.mxu0 0.0
        %2512 = vmatprep.subr.mxu0 0.0
        %2513 = vmatpush1.msra.mxu0 0.0
        %2514 = vmatprep.subr.mxu0 0.0
        %2515 = vmatpush1.msra.mxu0 0.0
        %2516 = vmatprep.subr.mxu0 0.0
        %2517 = vmatpush1.msra.mxu0 0.0
        %2518 = vmatprep.subr.mxu0 0.0
        %2519 = vmatpush1.msra.mxu0 0.0
        %2520 = vmatprep.subr.mxu0 0.0
        %2521 = vmatpush1.msra.mxu0 0.0
        %2522 = vmatprep.subr.mxu0 0.0
        %2523 = vmatpush1.msra.mxu0 0.0
        %2524 = vmatprep.subr.mxu0 0.0
        %2525 = vmatpush1.msra.mxu0 0.0
        %2526 = vmatprep.subr.mxu0 0.0
        %2527 = vmatpush1.msra.mxu0 0.0
        %2528 = vmatprep.subr.mxu0 0.0
        %2529 = vmatpush1.msra.mxu0 0.0
        %2530 = vmatprep.subr.mxu0 0.0
        %2531 = vmatpush1.msra.mxu0 0.0
        %2532 = vmatprep.subr.mxu0 0.0
        %2533 = vmatpush1.msra.mxu0 0.0
        %2534 = vmatprep.subr.mxu0 0.0
        %2535 = vmatpush1.msra.mxu0 0.0
        %2536 = vmatprep.subr.mxu0 0.0
        %2537 = vmatpush1.msra.mxu0 0.0
        %2538 = vmatprep.subr.mxu0 0.0
        %2539 = vmatpush1.msra.mxu0 0.0
        %2540 = vmatprep.subr.mxu0 0.0
        %2541 = vmatpush1.msra.mxu0 0.0
        %2542 = vmatprep.subr.mxu0 0.0
        %2543 = vmatpush1.msra.mxu0 0.0
        %2544 = vmatprep.subr.mxu0 0.0
        %2545 = vmatpush1.msra.mxu0 0.0
        %2546 = vmatprep.subr.mxu0 0.0
        %2547 = vmatpush1.msra.mxu0 0.0
        %2548 = vmatprep.subr.mxu0 0.0
        %2549 = vmatpush1.msra.mxu0 0.0
        %2550 = vmatprep.subr.mxu0 0.0
        %2551 = vmatpush1.msra.mxu0 0.0
        %2552 = vmatprep.subr.mxu0 0.0
        %2553 = vmatpush1.msra.mxu0 0.0
        %2554 = vmatprep.subr.mxu0 0.0
        %2555 = vmatpush1.msra.mxu0 0.0
        %2556 = vmatprep.subr.mxu0 0.0
        %2557 = vmatpush1.msra.mxu0 0.0
        %2558 = vmatprep.subr.mxu0 0.0
        %2559 = vmatpush1.msra.mxu0 0.0
        %2560 = vmatprep.subr.mxu0 0.0
        %2561 = vmatpush1.msra.mxu0 0.0
        %2562 = vmatprep.subr.mxu0 0.0
        %2563 = vmatpush1.msra.mxu0 0.0
        %2564 = vmatprep.subr.mxu0 0.0
        %2565 = vmatpush1.msra.mxu0 0.0
        %2566 = vmatprep.mubr.f32.mxu0 0.0
        %2567 = vmatmul.mubr.f32.gmra.mrb[0].mxu0 %v2500
        %v2568 = vpop.f32.mrb[0].mxu0
        %v2569 = vadd.f32 %v2185, %v2568
        %v2570 = vpop.f32.mrb[0].mxu0
        %2571 = vdwg.mxu0
        %v2573 = vrot.slane %v2569, 5
        %v2575 = vadd.f32 %v2176, %v2573
        %v2576 = vxor.u32 %v2575, 2147483648
        %v2577 = vmul.f32 %v2576, 1.442695
        %v2578 = vpow.pop %v2577
        %v2579 = vadd.f32 %v2578, 1.0
        %v2580 = vrcp.pop %v2579
        %v2581 = vmul.f32 1.0, %v2580
        %2582 = vrot.lane.b32.xlu0 %v2573, 64
        %v2583 = vpop.permute.xlu0 %2582
        %v2585 = vmul.f32 %v2581, %v2583
        %2587 = vrot.lane.b32.xlu0 %v2585, 64
        %v2588 = vpop.permute.xlu0 %2587
        %v2590 = vadd.f32 %v2176, %v2588
        %v2591 = vtanh.pop %v2590
        %v2592 = vsub.f32 1.0, %v2581
        %2594 = vrot.lane.b32.xlu0 %v2591, 96
        %v2595 = vpop.permute.xlu0 %2594
        %v2597 = vmul.f32 %v2592, %v2595
        %v2598 = vrot.slane %v2495, 7
        %v2600 = vmul.f32 %v2581, %v2598
        %v2601 = vadd.f32 %v2597, %v2600
        %v2603 = vrot.slane %v2601, 3
        %2604 = vrot.lane.b32.xlu0 %v2603, 96
        %v2605 = vpop.permute.xlu0 %2604
        %v2606 = vsel %vm906, %v2605, 0
        %2608 = vmatprep.subr.mxu0 0.0
        %2609 = vmatpush1.msra.mxu0 %v2181
        %2610 = vmatprep.subr.mxu0 0.0
        %2611 = vmatpush1.msra.mxu0 %v2182
        %2612 = vmatprep.subr.mxu0 0.0
        %2613 = vmatpush1.msra.mxu0 %v2183
        %2614 = vmatprep.subr.mxu0 0.0
        %2615 = vmatpush1.msra.mxu0 %v2184
        %2616 = vmatprep.subr.mxu0 0.0
        %2617 = vmatpush1.msra.mxu0 0.0
        %2618 = vmatprep.subr.mxu0 0.0
        %2619 = vmatpush1.msra.mxu0 0.0
        %2620 = vmatprep.subr.mxu0 0.0
        %2621 = vmatpush1.msra.mxu0 0.0
        %2622 = vmatprep.subr.mxu0 0.0
        %2623 = vmatpush1.msra.mxu0 0.0
        %2624 = vmatprep.subr.mxu0 0.0
        %2625 = vmatpush1.msra.mxu0 0.0
        %2626 = vmatprep.subr.mxu0 0.0
        %2627 = vmatpush1.msra.mxu0 0.0
        %2628 = vmatprep.subr.mxu0 0.0
        %2629 = vmatpush1.msra.mxu0 0.0
        %2630 = vmatprep.subr.mxu0 0.0
        %2631 = vmatpush1.msra.mxu0 0.0
        %2632 = vmatprep.subr.mxu0 0.0
        %2633 = vmatpush1.msra.mxu0 0.0
        %2634 = vmatprep.subr.mxu0 0.0
        %2635 = vmatpush1.msra.mxu0 0.0
        %2636 = vmatprep.subr.mxu0 0.0
        %2637 = vmatpush1.msra.mxu0 0.0
        %2638 = vmatprep.subr.mxu0 0.0
        %2639 = vmatpush1.msra.mxu0 0.0
        %2640 = vmatprep.subr.mxu0 0.0
        %2641 = vmatpush1.msra.mxu0 0.0
        %2642 = vmatprep.subr.mxu0 0.0
        %2643 = vmatpush1.msra.mxu0 0.0
        %2644 = vmatprep.subr.mxu0 0.0
        %2645 = vmatpush1.msra.mxu0 0.0
        %2646 = vmatprep.subr.mxu0 0.0
        %2647 = vmatpush1.msra.mxu0 0.0
        %2648 = vmatprep.subr.mxu0 0.0
        %2649 = vmatpush1.msra.mxu0 0.0
        %2650 = vmatprep.subr.mxu0 0.0
        %2651 = vmatpush1.msra.mxu0 0.0
        %2652 = vmatprep.subr.mxu0 0.0
        %2653 = vmatpush1.msra.mxu0 0.0
        %2654 = vmatprep.subr.mxu0 0.0
        %2655 = vmatpush1.msra.mxu0 0.0
        %2656 = vmatprep.subr.mxu0 0.0
        %2657 = vmatpush1.msra.mxu0 0.0
        %2658 = vmatprep.subr.mxu0 0.0
        %2659 = vmatpush1.msra.mxu0 0.0
        %2660 = vmatprep.subr.mxu0 0.0
        %2661 = vmatpush1.msra.mxu0 0.0
        %2662 = vmatprep.subr.mxu0 0.0
        %2663 = vmatpush1.msra.mxu0 0.0
        %2664 = vmatprep.subr.mxu0 0.0
        %2665 = vmatpush1.msra.mxu0 0.0
        %2666 = vmatprep.subr.mxu0 0.0
        %2667 = vmatpush1.msra.mxu0 0.0
        %2668 = vmatprep.subr.mxu0 0.0
        %2669 = vmatpush1.msra.mxu0 0.0
        %2670 = vmatprep.subr.mxu0 0.0
        %2671 = vmatpush1.msra.mxu0 0.0
        %2672 = vmatprep.mubr.f32.mxu0 0.0
        %2673 = vmatmul.mubr.f32.gmra.mrb[0].mxu0 %v2606
        %v2674 = vpop.f32.mrb[0].mxu0
        %v2675 = vadd.f32 %v2185, %v2674
        %v2676 = vpop.f32.mrb[0].mxu0
        %2677 = vdwg.mxu0
        %v2679 = vrot.slane %v2675, 4
        %v2681 = vadd.f32 %v2176, %v2679
        %v2682 = vxor.u32 %v2681, 2147483648
        %v2683 = vmul.f32 %v2682, 1.442695
        %v2684 = vpow.pop %v2683
        %v2685 = vadd.f32 %v2684, 1.0
        %v2686 = vrcp.pop %v2685
        %v2687 = vmul.f32 1.0, %v2686
        %2688 = vrot.lane.b32.xlu0 %v2679, 64
        %v2689 = vpop.permute.xlu0 %2688
        %v2691 = vmul.f32 %v2687, %v2689
        %2693 = vrot.lane.b32.xlu0 %v2691, 64
        %v2694 = vpop.permute.xlu0 %2693
        %v2696 = vadd.f32 %v2176, %v2694
        %v2697 = vtanh.pop %v2696
        %v2698 = vsub.f32 1.0, %v2687
        %2700 = vrot.lane.b32.xlu0 %v2697, 96
        %v2701 = vpop.permute.xlu0 %2700
        %v2703 = vmul.f32 %v2698, %v2701
        %v2704 = vrot.slane %v2601, 7
        %v2706 = vmul.f32 %v2687, %v2704
        %v2707 = vadd.f32 %v2703, %v2706
        %v2709 = vrot.slane %v2707, 4
        %2710 = vrot.lane.b32.xlu0 %v2709, 96
        %v2711 = vpop.permute.xlu0 %2710
        %v2712 = vsel %vm906, %v2711, 0
        %2714 = vmatprep.subr.mxu0 0.0
        %2715 = vmatpush1.msra.mxu0 %v2181
        %2716 = vmatprep.subr.mxu0 0.0
        %2717 = vmatpush1.msra.mxu0 %v2182
        %2718 = vmatprep.subr.mxu0 0.0
        %2719 = vmatpush1.msra.mxu0 %v2183
        %2720 = vmatprep.subr.mxu0 0.0
        %2721 = vmatpush1.msra.mxu0 %v2184
        %2722 = vmatprep.subr.mxu0 0.0
        %2723 = vmatpush1.msra.mxu0 0.0
        %2724 = vmatprep.subr.mxu0 0.0
        %2725 = vmatpush1.msra.mxu0 0.0
        %2726 = vmatprep.subr.mxu0 0.0
        %2727 = vmatpush1.msra.mxu0 0.0
        %2728 = vmatprep.subr.mxu0 0.0
        %2729 = vmatpush1.msra.mxu0 0.0
        %2730 = vmatprep.subr.mxu0 0.0
        %2731 = vmatpush1.msra.mxu0 0.0
        %2732 = vmatprep.subr.mxu0 0.0
        %2733 = vmatpush1.msra.mxu0 0.0
        %2734 = vmatprep.subr.mxu0 0.0
        %2735 = vmatpush1.msra.mxu0 0.0
        %2736 = vmatprep.subr.mxu0 0.0
        %2737 = vmatpush1.msra.mxu0 0.0
        %2738 = vmatprep.subr.mxu0 0.0
        %2739 = vmatpush1.msra.mxu0 0.0
        %2740 = vmatprep.subr.mxu0 0.0
        %2741 = vmatpush1.msra.mxu0 0.0
        %2742 = vmatprep.subr.mxu0 0.0
        %2743 = vmatpush1.msra.mxu0 0.0
        %2744 = vmatprep.subr.mxu0 0.0
        %2745 = vmatpush1.msra.mxu0 0.0
        %2746 = vmatprep.subr.mxu0 0.0
        %2747 = vmatpush1.msra.mxu0 0.0
        %2748 = vmatprep.subr.mxu0 0.0
        %2749 = vmatpush1.msra.mxu0 0.0
        %2750 = vmatprep.subr.mxu0 0.0
        %2751 = vmatpush1.msra.mxu0 0.0
        %2752 = vmatprep.subr.mxu0 0.0
        %2753 = vmatpush1.msra.mxu0 0.0
        %2754 = vmatprep.subr.mxu0 0.0
        %2755 = vmatpush1.msra.mxu0 0.0
        %2756 = vmatprep.subr.mxu0 0.0
        %2757 = vmatpush1.msra.mxu0 0.0
        %2758 = vmatprep.subr.mxu0 0.0
        %2759 = vmatpush1.msra.mxu0 0.0
        %2760 = vmatprep.subr.mxu0 0.0
        %2761 = vmatpush1.msra.mxu0 0.0
        %2762 = vmatprep.subr.mxu0 0.0
        %2763 = vmatpush1.msra.mxu0 0.0
        %2764 = vmatprep.subr.mxu0 0.0
        %2765 = vmatpush1.msra.mxu0 0.0
        %2766 = vmatprep.subr.mxu0 0.0
        %2767 = vmatpush1.msra.mxu0 0.0
        %2768 = vmatprep.subr.mxu0 0.0
        %2769 = vmatpush1.msra.mxu0 0.0
        %2770 = vmatprep.subr.mxu0 0.0
        %2771 = vmatpush1.msra.mxu0 0.0
        %2772 = vmatprep.subr.mxu0 0.0
        %2773 = vmatpush1.msra.mxu0 0.0
        %2774 = vmatprep.subr.mxu0 0.0
        %2775 = vmatpush1.msra.mxu0 0.0
        %2776 = vmatprep.subr.mxu0 0.0
        %2777 = vmatpush1.msra.mxu0 0.0
        %2778 = vmatprep.mubr.f32.mxu0 0.0
        %2779 = vmatmul.mubr.f32.gmra.mrb[0].mxu0 %v2712
        %v2780 = vpop.f32.mrb[0].mxu0
        %v2781 = vadd.f32 %v2185, %v2780
        %v2782 = vpop.f32.mrb[0].mxu0
        %2783 = vdwg.mxu0
        %v2785 = vrot.slane %v2781, 3
        %v2787 = vadd.f32 %v2176, %v2785
        %v2788 = vxor.u32 %v2787, 2147483648
        %v2789 = vmul.f32 %v2788, 1.442695
        %v2790 = vpow.pop %v2789
        %v2791 = vadd.f32 %v2790, 1.0
        %v2792 = vrcp.pop %v2791
        %v2793 = vmul.f32 1.0, %v2792
        %2794 = vrot.lane.b32.xlu0 %v2785, 64
        %v2795 = vpop.permute.xlu0 %2794
        %v2797 = vmul.f32 %v2793, %v2795
        %2799 = vrot.lane.b32.xlu0 %v2797, 64
        %v2800 = vpop.permute.xlu0 %2799
        %v2802 = vadd.f32 %v2176, %v2800
        %v2803 = vtanh.pop %v2802
        %v2804 = vsub.f32 1.0, %v2793
        %2806 = vrot.lane.b32.xlu0 %v2803, 96
        %v2807 = vpop.permute.xlu0 %2806
        %v2809 = vmul.f32 %v2804, %v2807
        %v2810 = vrot.slane %v2707, 7
        %v2812 = vmul.f32 %v2793, %v2810
        %v2813 = vadd.f32 %v2809, %v2812
        %v2815 = vrot.slane %v2813, 5
        %2816 = vrot.lane.b32.xlu0 %v2815, 96
        %v2817 = vpop.permute.xlu0 %2816
        %v2818 = vsel %vm906, %v2817, 0
        %2820 = vmatprep.subr.mxu0 0.0
        %2821 = vmatpush1.msra.mxu0 %v2181
        %2822 = vmatprep.subr.mxu0 0.0
        %2823 = vmatpush1.msra.mxu0 %v2182
        %2824 = vmatprep.subr.mxu0 0.0
        %2825 = vmatpush1.msra.mxu0 %v2183
        %2826 = vmatprep.subr.mxu0 0.0
        %2827 = vmatpush1.msra.mxu0 %v2184
        %2828 = vmatprep.subr.mxu0 0.0
        %2829 = vmatpush1.msra.mxu0 0.0
        %2830 = vmatprep.subr.mxu0 0.0
        %2831 = vmatpush1.msra.mxu0 0.0
        %2832 = vmatprep.subr.mxu0 0.0
        %2833 = vmatpush1.msra.mxu0 0.0
        %2834 = vmatprep.subr.mxu0 0.0
        %2835 = vmatpush1.msra.mxu0 0.0
        %2836 = vmatprep.subr.mxu0 0.0
        %2837 = vmatpush1.msra.mxu0 0.0
        %2838 = vmatprep.subr.mxu0 0.0
        %2839 = vmatpush1.msra.mxu0 0.0
        %2840 = vmatprep.subr.mxu0 0.0
        %2841 = vmatpush1.msra.mxu0 0.0
        %2842 = vmatprep.subr.mxu0 0.0
        %2843 = vmatpush1.msra.mxu0 0.0
        %2844 = vmatprep.subr.mxu0 0.0
        %2845 = vmatpush1.msra.mxu0 0.0
        %2846 = vmatprep.subr.mxu0 0.0
        %2847 = vmatpush1.msra.mxu0 0.0
        %2848 = vmatprep.subr.mxu0 0.0
        %2849 = vmatpush1.msra.mxu0 0.0
        %2850 = vmatprep.subr.mxu0 0.0
        %2851 = vmatpush1.msra.mxu0 0.0
        %2852 = vmatprep.subr.mxu0 0.0
        %2853 = vmatpush1.msra.mxu0 0.0
        %2854 = vmatprep.subr.mxu0 0.0
        %2855 = vmatpush1.msra.mxu0 0.0
        %2856 = vmatprep.subr.mxu0 0.0
        %2857 = vmatpush1.msra.mxu0 0.0
        %2858 = vmatprep.subr.mxu0 0.0
        %2859 = vmatpush1.msra.mxu0 0.0
        %2860 = vmatprep.subr.mxu0 0.0
        %2861 = vmatpush1.msra.mxu0 0.0
        %2862 = vmatprep.subr.mxu0 0.0
        %2863 = vmatpush1.msra.mxu0 0.0
        %2864 = vmatprep.subr.mxu0 0.0
        %2865 = vmatpush1.msra.mxu0 0.0
        %2866 = vmatprep.subr.mxu0 0.0
        %2867 = vmatpush1.msra.mxu0 0.0
        %2868 = vmatprep.subr.mxu0 0.0
        %2869 = vmatpush1.msra.mxu0 0.0
        %2870 = vmatprep.subr.mxu0 0.0
        %2871 = vmatpush1.msra.mxu0 0.0
        %2872 = vmatprep.subr.mxu0 0.0
        %2873 = vmatpush1.msra.mxu0 0.0
        %2874 = vmatprep.subr.mxu0 0.0
        %2875 = vmatpush1.msra.mxu0 0.0
        %2876 = vmatprep.subr.mxu0 0.0
        %2877 = vmatpush1.msra.mxu0 0.0
        %2878 = vmatprep.subr.mxu0 0.0
        %2879 = vmatpush1.msra.mxu0 0.0
        %2880 = vmatprep.subr.mxu0 0.0
        %2881 = vmatpush1.msra.mxu0 0.0
        %2882 = vmatprep.subr.mxu0 0.0
        %2883 = vmatpush1.msra.mxu0 0.0
        %2884 = vmatprep.mubr.f32.mxu0 0.0
        %2885 = vmatmul.mubr.f32.gmra.mrb[0].mxu0 %v2818
        %v2886 = vpop.f32.mrb[0].mxu0
        %v2887 = vadd.f32 %v2185, %v2886
        %v2888 = vpop.f32.mrb[0].mxu0
        %2889 = vdwg.mxu0
        %v2891 = vrot.slane %v2887, 2
        %v2893 = vadd.f32 %v2176, %v2891
        %v2894 = vxor.u32 %v2893, 2147483648
        %v2895 = vmul.f32 %v2894, 1.442695
        %v2896 = vpow.pop %v2895
        %v2897 = vadd.f32 %v2896, 1.0
        %v2898 = vrcp.pop %v2897
        %v2899 = vmul.f32 1.0, %v2898
        %2900 = vrot.lane.b32.xlu0 %v2891, 64
        %v2901 = vpop.permute.xlu0 %2900
        %v2903 = vmul.f32 %v2899, %v2901
        %2905 = vrot.lane.b32.xlu0 %v2903, 64
        %v2906 = vpop.permute.xlu0 %2905
        %v2908 = vadd.f32 %v2176, %v2906
        %v2909 = vtanh.pop %v2908
        %v2910 = vsub.f32 1.0, %v2899
        %2912 = vrot.lane.b32.xlu0 %v2909, 96
        %v2913 = vpop.permute.xlu0 %2912
        %v2915 = vmul.f32 %v2910, %v2913
        %v2916 = vrot.slane %v2813, 7
        %v2918 = vmul.f32 %v2899, %v2916
        %v2919 = vadd.f32 %v2915, %v2918
        %v2921 = vrot.slane %v2919, 6
        %2922 = vrot.lane.b32.xlu0 %v2921, 96
        %v2923 = vpop.permute.xlu0 %2922
        %v2924 = vsel %vm906, %v2923, 0
        %2926 = vmatprep.subr.mxu0 0.0
        %2927 = vmatpush1.msra.mxu0 %v2181
        %2928 = vmatprep.subr.mxu0 0.0
        %2929 = vmatpush1.msra.mxu0 %v2182
        %2930 = vmatprep.subr.mxu0 0.0
        %2931 = vmatpush1.msra.mxu0 %v2183
        %2932 = vmatprep.subr.mxu0 0.0
        %2933 = vmatpush1.msra.mxu0 %v2184
        %2934 = vmatprep.subr.mxu0 0.0
        %2935 = vmatpush1.msra.mxu0 0.0
        %2936 = vmatprep.subr.mxu0 0.0
        %2937 = vmatpush1.msra.mxu0 0.0
        %2938 = vmatprep.subr.mxu0 0.0
        %2939 = vmatpush1.msra.mxu0 0.0
        %2940 = vmatprep.subr.mxu0 0.0
        %2941 = vmatpush1.msra.mxu0 0.0
        %2942 = vmatprep.subr.mxu0 0.0
        %2943 = vmatpush1.msra.mxu0 0.0
        %2944 = vmatprep.subr.mxu0 0.0
        %2945 = vmatpush1.msra.mxu0 0.0
        %2946 = vmatprep.subr.mxu0 0.0
        %2947 = vmatpush1.msra.mxu0 0.0
        %2948 = vmatprep.subr.mxu0 0.0
        %2949 = vmatpush1.msra.mxu0 0.0
        %2950 = vmatprep.subr.mxu0 0.0
        %2951 = vmatpush1.msra.mxu0 0.0
        %2952 = vmatprep.subr.mxu0 0.0
        %2953 = vmatpush1.msra.mxu0 0.0
        %2954 = vmatprep.subr.mxu0 0.0
        %2955 = vmatpush1.msra.mxu0 0.0
        %2956 = vmatprep.subr.mxu0 0.0
        %2957 = vmatpush1.msra.mxu0 0.0
        %2958 = vmatprep.subr.mxu0 0.0
        %2959 = vmatpush1.msra.mxu0 0.0
        %2960 = vmatprep.subr.mxu0 0.0
        %2961 = vmatpush1.msra.mxu0 0.0
        %2962 = vmatprep.subr.mxu0 0.0
        %2963 = vmatpush1.msra.mxu0 0.0
        %2964 = vmatprep.subr.mxu0 0.0
        %2965 = vmatpush1.msra.mxu0 0.0
        %2966 = vmatprep.subr.mxu0 0.0
        %2967 = vmatpush1.msra.mxu0 0.0
        %2968 = vmatprep.subr.mxu0 0.0
        %2969 = vmatpush1.msra.mxu0 0.0
        %2970 = vmatprep.subr.mxu0 0.0
        %2971 = vmatpush1.msra.mxu0 0.0
        %2972 = vmatprep.subr.mxu0 0.0
        %2973 = vmatpush1.msra.mxu0 0.0
        %2974 = vmatprep.subr.mxu0 0.0
        %2975 = vmatpush1.msra.mxu0 0.0
        %2976 = vmatprep.subr.mxu0 0.0
        %2977 = vmatpush1.msra.mxu0 0.0
        %2978 = vmatprep.subr.mxu0 0.0
        %2979 = vmatpush1.msra.mxu0 0.0
        %2980 = vmatprep.subr.mxu0 0.0
        %2981 = vmatpush1.msra.mxu0 0.0
        %2982 = vmatprep.subr.mxu0 0.0
        %2983 = vmatpush1.msra.mxu0 0.0
        %2984 = vmatprep.subr.mxu0 0.0
        %2985 = vmatpush1.msra.mxu0 0.0
        %2986 = vmatprep.subr.mxu0 0.0
        %2987 = vmatpush1.msra.mxu0 0.0
        %2988 = vmatprep.subr.mxu0 0.0
        %2989 = vmatpush1.msra.mxu0 0.0
        %2990 = vmatprep.mubr.f32.mxu0 0.0
        %2991 = vmatmul.mubr.f32.gmra.mrb[0].mxu0 %v2924
        %v2992 = vpop.f32.mrb[0].mxu0
        %v2993 = vadd.f32 %v2185, %v2992
        %v2994 = vpop.f32.mrb[0].mxu0
        %2995 = vdwg.mxu0
        %v2997 = vrot.slane %v2993, 1
        %v2999 = vadd.f32 %v2176, %v2997
        %v3000 = vxor.u32 %v2999, 2147483648
        %v3001 = vmul.f32 %v3000, 1.442695
        %v3002 = vpow.pop %v3001
        %v3003 = vadd.f32 %v3002, 1.0
        %v3004 = vrcp.pop %v3003
        %v3005 = vmul.f32 1.0, %v3004
        %3006 = vrot.lane.b32.xlu0 %v2997, 64
        %v3007 = vpop.permute.xlu0 %3006
        %v3009 = vmul.f32 %v3005, %v3007
        %3011 = vrot.lane.b32.xlu0 %v3009, 64
        %v3012 = vpop.permute.xlu0 %3011
        %v3014 = vadd.f32 %v2176, %v3012
        %v3015 = vtanh.pop %v3014
        %v3016 = vsub.f32 1.0, %v3005
        %3018 = vrot.lane.b32.xlu0 %v3015, 96
        %v3019 = vpop.permute.xlu0 %3018
        %v3021 = vmul.f32 %v3016, %v3019
        %v3022 = vrot.slane %v2919, 7
        %v3024 = vmul.f32 %v3005, %v3022
        %v3025 = vadd.f32 %v3021, %v3024
        %v3026 = vld [vmem:[#allocation23] sm:$0xff]
        %v3027 = vld [vmem:[#allocation23 + $0x8] sm:$0xff]
        %v3028 = vld [vmem:[#allocation23 + $0x10] sm:$0xff]
        %v3029 = vld [vmem:[#allocation23 + $0x18] sm:$0xff]
        %v3030 = vld [vmem:[%s21] sm:$0x1]
        %v3032 = vrot.slane %v3025, 7
        %3033 = vrot.lane.b32.xlu0 %v3032, 96
        %v3034 = vpop.permute.xlu0 %3033
        %v3035 = vsel %vm906, %v3034, 0
        %3037 = vmatprep.subr.mxu0 0.0
        %3038 = vmatpush1.msra.mxu0 %v3026
        %3039 = vmatprep.subr.mxu0 0.0
        %3040 = vmatpush1.msra.mxu0 %v3027
        %3041 = vmatprep.subr.mxu0 0.0
        %3042 = vmatpush1.msra.mxu0 %v3028
        %3043 = vmatprep.subr.mxu0 0.0
        %3044 = vmatpush1.msra.mxu0 %v3029
        %3045 = vmatprep.subr.mxu0 0.0
        %3046 = vmatpush1.msra.mxu0 0.0
        %3047 = vmatprep.subr.mxu0 0.0
        %3048 = vmatpush1.msra.mxu0 0.0
        %3049 = vmatprep.subr.mxu0 0.0
        %3050 = vmatpush1.msra.mxu0 0.0
        %3051 = vmatprep.subr.mxu0 0.0
        %3052 = vmatpush1.msra.mxu0 0.0
        %3053 = vmatprep.subr.mxu0 0.0
        %3054 = vmatpush1.msra.mxu0 0.0
        %3055 = vmatprep.subr.mxu0 0.0
        %3056 = vmatpush1.msra.mxu0 0.0
        %3057 = vmatprep.subr.mxu0 0.0
        %3058 = vmatpush1.msra.mxu0 0.0
        %3059 = vmatprep.subr.mxu0 0.0
        %3060 = vmatpush1.msra.mxu0 0.0
        %3061 = vmatprep.subr.mxu0 0.0
        %3062 = vmatpush1.msra.mxu0 0.0
        %3063 = vmatprep.subr.mxu0 0.0
        %3064 = vmatpush1.msra.mxu0 0.0
        %3065 = vmatprep.subr.mxu0 0.0
        %3066 = vmatpush1.msra.mxu0 0.0
        %3067 = vmatprep.subr.mxu0 0.0
        %3068 = vmatpush1.msra.mxu0 0.0
        %3069 = vmatprep.subr.mxu0 0.0
        %3070 = vmatpush1.msra.mxu0 0.0
        %3071 = vmatprep.subr.mxu0 0.0
        %3072 = vmatpush1.msra.mxu0 0.0
        %3073 = vmatprep.subr.mxu0 0.0
        %3074 = vmatpush1.msra.mxu0 0.0
        %3075 = vmatprep.subr.mxu0 0.0
        %3076 = vmatpush1.msra.mxu0 0.0
        %3077 = vmatprep.subr.mxu0 0.0
        %3078 = vmatpush1.msra.mxu0 0.0
        %3079 = vmatprep.subr.mxu0 0.0
        %3080 = vmatpush1.msra.mxu0 0.0
        %3081 = vmatprep.subr.mxu0 0.0
        %3082 = vmatpush1.msra.mxu0 0.0
        %3083 = vmatprep.subr.mxu0 0.0
        %3084 = vmatpush1.msra.mxu0 0.0
        %3085 = vmatprep.subr.mxu0 0.0
        %3086 = vmatpush1.msra.mxu0 0.0
        %3087 = vmatprep.subr.mxu0 0.0
        %3088 = vmatpush1.msra.mxu0 0.0
        %3089 = vmatprep.subr.mxu0 0.0
        %3090 = vmatpush1.msra.mxu0 0.0
        %3091 = vmatprep.subr.mxu0 0.0
        %3092 = vmatpush1.msra.mxu0 0.0
        %3093 = vmatprep.subr.mxu0 0.0
        %3094 = vmatpush1.msra.mxu0 0.0
        %3095 = vmatprep.subr.mxu0 0.0
        %3096 = vmatpush1.msra.mxu0 0.0
        %3097 = vmatprep.subr.mxu0 0.0
        %3098 = vmatpush1.msra.mxu0 0.0
        %3099 = vmatprep.subr.mxu0 0.0
        %3100 = vmatpush1.msra.mxu0 0.0
        %3101 = vmatprep.mubr.f32.mxu0 0.0
        %3102 = vmatmul.mubr.f32.gmra.mrb[0].mxu0 %v3035
        %v3103 = vpop.f32.mrb[0].mxu0
        %v3104 = vadd.f32 %v3030, %v3103
        %v3105 = vpop.f32.mrb[0].mxu0
        %3106 = vdwg.mxu0
        %3107 = vst [vmem:[%s901] sm:$0x1] %v3104
        %s3108 = sand.u32 %s528, 1
        %s3109 = scalar_lea.sflag [#allocation4], %s3108
        %s3110 = sand.u32 %s528, 1
        %s3111 = scalar_lea.vmem [#allocation25], %s3110
        // Predicated region
        $region165: #{tpu_custom_call.1} parent=107 // pred_check
          %p3112 = pneg %p538
        $region166: #{tpu_custom_call.1} parent=107 // pred_check_branch
          %3114 = sbr.rel (%p3112) target = $region168
        $region167: #{tpu_custom_call.1} parent=107 // pred_region
          %s3116 = ssub.s32 16, 16
          %3117 = vsyncadd %s3109, %s3116
          %s3118 = smul.addr %s48, 16
          %s3119 = scalar_lea.hbm %s22, %s3118
          %s3121 = sshll.u32 %s3111, 4
          %s3122 = int_to_ptr.vmem [resolvable:$true] %s3121
          %3124 = dma.vmem_to_hbm [thread:$0]  %s3122, 16, %s3119, %s3109
        $region168: #{tpu_custom_call.1} parent=107 // pred_fallthru
          _
      $region108: #{tpu_custom_call.1} parent=5 // pred_fallthru
        _
      %p3125 = scmp.le.s32.totalorder 2, %s43
      // Predicated region
      $region169: #{tpu_custom_call.1} parent=5 // pred_check
        %p3126 = pneg %p3125
      $region170: #{tpu_custom_call.1} parent=5 // pred_check_branch
        %3128 = sbr.rel (%p3126) target = $region172
      $region171: #{tpu_custom_call.1} parent=5 // pred_region
        %s3129 = ssub.s32 %s43, 2
        // Predicated region
        $region173: #{tpu_custom_call.1} parent=171 // pred_check
          %p3130 = pneg %p544
        $region174: #{tpu_custom_call.1} parent=171 // pred_check_branch
          %3132 = sbr.rel (%p3130) target = $region176
        $region175: #{tpu_custom_call.1} parent=171 // pred_region
          %s3133 = sand.u32 %s529, 1
          %s3134 = scalar_lea.sflag [#allocation4], %s3133
          %s3135 = sand.u32 %s529, 1
          %s3136 = scalar_lea.vmem [#allocation25], %s3135
          %3137 = dma.done %s3134, 16
        $region176: #{tpu_custom_call.1} parent=171 // pred_fallthru
          _
      $region172: #{tpu_custom_call.1} parent=5 // pred_fallthru
        _
    $region6: #{tpu_custom_call.1} parent=1 // loop_footer
      %s47 = sadd.s32 1, %s43
    $region7: #{tpu_custom_call.1} parent=1 // loop_footer_branch
      %42 = sbr.rel target = $region3
    $region8: #{tpu_custom_call.1} parent=1 // loop_exit
      _
    %3138 = vsyncpa [#allocation3], 1
    %s3139 = scalar_lea.sflag [#allocation3], 1
    %3140 = vsyncpa %s3139, 1
    %3141 = vsyncpa [#allocation6], 1
    %s3142 = scalar_lea.sflag [#allocation6], 1
    %3143 = vsyncpa %s3142, 1
    %3144 = vsyncpa [#allocation9], 1
    %3145 = vsyncpa [#allocation12], 1
    %3146 = vsyncpa [#allocation15], 1
    %3147 = vsyncpa [#allocation18], 1
    %3148 = vsyncpa [#allocation21], 1
    %3149 = vsyncpa [#allocation24], 1
    %3150 = vsyncpa [#allocation4], 1
    %s3151 = scalar_lea.sflag [#allocation4], 1
    %3152 = vsyncpa %s3151, 1

</llo_original>
